<compile_context>
chip_gen: v6e
topology: v6e:2x2x1
jax: 0.10.0
libtpu: 0.0.40
codegen_flags: <defaults>
</compile_context>

<pallas_src>
import functools

import jax
import jax.numpy as jnp
from jax import lax
from jax.experimental import pallas as pl
from jax.experimental.pallas import tpu as pltpu


def _conv_relu_pool_kernel(x_ref, w_ref, b_ref, o_ref, ybuf, hbuf, *,
                           KH, KW, stride, Hc, Wc, Hp, Wp, do_pool):
    """One batch element per grid step.

    x_ref: (Hpad, Wpad, C)   padded NHWC input block, f32
    w_ref: (KH*KW, C, Opad)  rearranged conv weight (output channels padded to 128), f32
    b_ref: (1, Opad)         padded bias, f32
    o_ref: (Hp, Wp, Opad) if do_pool else (Hc*Wc, Opad)
    ybuf:  (Hc, Wc, Opad)    VMEM scratch (conv+ReLU result)
    hbuf:  (Hp, Wc, Opad)    VMEM scratch (H-pass of the pool)
    """
    C = x_ref.shape[-1]
    Opad = o_ref.shape[-1]

    # --- Convolution as KH*KW shifted matmuls (no im2col buffer) --------------------
    acc = jnp.zeros((Hc * Wc, Opad), jnp.float32)
    for u in range(KH):
        for v in range(KW):
            if stride == 1:
                xs = x_ref[pl.ds(u, Hc), pl.ds(v, Wc), :]
            else:
                # TODO(synk): stride > 1 (e.g. AlexNet conv1) relies on multi-dim strided
                # ref loads; not exercised in this demo.
                xs = x_ref[pl.ds(u, Hc, stride), pl.ds(v, Wc, stride), :]
            xs = xs.reshape(Hc * Wc, C).astype(jnp.bfloat16)      # MXU operand in bf16
            wk = w_ref[u * KW + v].astype(jnp.bfloat16)           # (C, Opad)
            acc = acc + jnp.dot(xs, wk, preferred_element_type=jnp.float32)

    # --- Fused bias + ReLU (f32 elementwise) ----------------------------------------
    y = jnp.maximum(acc + b_ref[...], 0.0)

    if not do_pool:
        o_ref[...] = y.astype(o_ref.dtype)
    else:
        # --- Separable 3x3 / stride-2 max pool (H pass then W pass) -----------------
        ybuf[...] = y.reshape(Hc, Wc, Opad)
        hmax = jnp.maximum(
            jnp.maximum(ybuf[pl.ds(0, Hp, stride=2), :, :],
                        ybuf[pl.ds(1, Hp, stride=2), :, :]),
            ybuf[pl.ds(2, Hp, stride=2), :, :])                   # (Hp, Wc, Opad)
        hbuf[...] = hmax
        pooled = jnp.maximum(
            jnp.maximum(hbuf[:, pl.ds(0, Wp, stride=2), :],
                        hbuf[:, pl.ds(1, Wp, stride=2), :]),
            hbuf[:, pl.ds(2, Wp, stride=2), :])                   # (Hp, Wp, Opad)
        o_ref[...] = pooled.astype(o_ref.dtype)


def conv_block(x, weight, bias, current_layer, *, padding, stride):
    """Equivalent of ConvBlock.forward(x, weight, bias, current_layer).

    x:      (N, C, H, W)   float32, NCHW (PyTorch convention)
    weight: (O, C, KH, KW) float32
    bias:   (O,)           float32
    Returns NCHW output; max-pooled iff current_layer in {0, 1, 4}.
    (MXU operands are rounded to bf16; accumulation stays in f32.)
    """
    N, C, H, W = x.shape
    O, _, KH, KW = weight.shape
    Hc = (H + 2 * padding - KH) // stride + 1
    Wc = (W + 2 * padding - KW) // stride + 1

    do_pool = current_layer in (0, 1, 4)
    if do_pool:
        Hp, Wp = (Hc - 3) // 2 + 1, (Wc - 3) // 2 + 1
        out_shape = (N, Hp, Wp)
    else:
        Hp, Wp = 1, 1
        out_shape = (N, Hc * Wc)

    Opad = ((O + 127) // 128) * 128                      # lane-dense output channels

    # NCHW -> padded NHWC (channels on the lane dim inside the kernel).
    xh = jnp.pad(x, ((0, 0), (0, 0), (padding, padding), (padding, padding)))
    xh = xh.transpose(0, 2, 3, 1)                        # (N, Hpad, Wpad, C)
    Hpad, Wpad = xh.shape[1], xh.shape[2]

    # (O, C, KH, KW) -> (KH*KW, C, Opad); zero-pad the output-channel (lane) dim.
    wk = weight.transpose(2, 3, 1, 0).reshape(KH * KW, C, O)
    wk = jnp.pad(wk, ((0, 0), (0, 0), (0, Opad - O)))
    bk = jnp.pad(bias, (0, Opad - O)).reshape(1, Opad)

    kernel = functools.partial(
        _conv_relu_pool_kernel,
        KH=KH, KW=KW, stride=stride, Hc=Hc, Wc=Wc, Hp=Hp, Wp=Wp, do_pool=do_pool)

    if do_pool:
        out_spec = pl.BlockSpec((None, Hp, Wp, Opad), lambda n: (n, 0, 0, 0))
    else:
        out_spec = pl.BlockSpec((None, Hc * Wc, Opad), lambda n: (n, 0, 0))

    out_padded = pl.pallas_call(
        kernel,
        out_shape=jax.ShapeDtypeStruct(out_shape + (Opad,), jnp.float32),
        grid=(N,),
        in_specs=[
            pl.BlockSpec((None, Hpad, Wpad, C), lambda n: (n, 0, 0, 0)),   # per-batch block
            pl.BlockSpec((KH * KW, C, Opad), lambda n: (0, 0, 0)),         # full weights
            pl.BlockSpec((1, Opad), lambda n: (0, 0)),                     # full bias
        ],
        out_specs=out_spec,
        scratch_shapes=[
            pltpu.VMEM((Hc, Wc, Opad), jnp.float32),
            pltpu.VMEM((Hp, Wc, Opad), jnp.float32),
        ],
        compiler_params=pltpu.CompilerParams(
            dimension_semantics=("parallel",)),
    )(xh, wk, bk)

    out = out_padded[..., :O]                            # drop lane padding
    if do_pool:
        out = out.reshape(N, Hp, Wp, O)
    else:
        out = out.reshape(N, Hc, Wc, O)
    return out.transpose(0, 3, 1, 2)                     # back to PyTorch NCHW


if __name__ == "__main__":
    key = jax.random.PRNGKey(0)
    k1, k2, k3 = jax.random.split(key, 3)

    # Small shapes consistent with ConvBlock's forward.
    N, C, H, W = 2, 4, 16, 16
    O, K = 8, 3
    pad, st = 1, 1
    current_layer = 0  # layers 0/1/4 take the max-pool branch

    x = jax.random.normal(k1, (N, C, H, W), dtype=jnp.float32)
    weight = 0.1 * jax.random.normal(k2, (O, C, K, K), dtype=jnp.float32)
    bias = 0.1 * jax.random.normal(k3, (O,), dtype=jnp.float32)

    out = conv_block(x, weight, bias, current_layer, padding=pad, stride=st)
    out = jax.block_until_ready(out)

    # Pure-JAX reference with the same bf16 operand rounding (f32 accumulation).
    xb = x.astype(jnp.bfloat16).astype(jnp.float32)
    wb = weight.astype(jnp.bfloat16).astype(jnp.float32)
    conv_ref = lax.conv_general_dilated(
        xb, wb, (st, st), [(pad, pad), (pad, pad)],
        dimension_numbers=("NCHW", "OIHW", "NCHW"),
        precision=lax.Precision.HIGHEST,
    )
    ref = jnp.maximum(conv_ref + bias[None, :, None, None], 0.0)
    ref = lax.reduce_window(
        ref, -jnp.inf, lax.max, (1, 1, 3, 3), (1, 1, 2, 2), "VALID"
    )

    assert out.shape == ref.shape, (out.shape, ref.shape)
    assert bool(jnp.allclose(out, ref, rtol=2e-4, atol=2e-4)), "mismatch vs reference"
    print("KERNEL_OK")
</pallas_src>

<mosaic_0001>
module attributes {stable_mosaic.version = 11 : i64} {
  func.func @_conv_relu_pool_kernel(%arg0: i32, %arg1: memref<1x18x18x4xf32, #tpu.memory_space<vmem>>, %arg2: memref<9x4x128xf32, #tpu.memory_space<vmem>>, %arg3: memref<1x128xf32, #tpu.memory_space<vmem>>, %arg4: memref<1x7x7x128xf32, #tpu.memory_space<vmem>>, %arg5: memref<16x16x128xf32, #tpu.memory_space<vmem>>, %arg6: memref<7x16x128xf32, #tpu.memory_space<vmem>>) attributes {dimension_semantics = [#tpu.dimension_semantics<parallel>], iteration_bounds = array<i64: 2>, scalar_prefetch = 0 : i64, scratch_operands = 2 : i64, tpu.core_type = #tpu.core_type<tc>, window_params = [{transform_indices = @transform_0, window_bounds = array<i64: 1, 18, 18, 4>}, {pipeline_mode = #tpu.pipeline_mode<synchronous>, transform_indices = @transform_1, window_bounds = array<i64: 9, 4, 128>}, {pipeline_mode = #tpu.pipeline_mode<synchronous>, transform_indices = @transform_2, window_bounds = array<i64: 1, 128>}, {transform_indices = @transform_3, window_bounds = array<i64: 1, 7, 7, 128>}]} {
    %cst = arith.constant 0.000000e+00 : f32
    %0 = vector.broadcast %cst : f32 to vector<256x128xf32>
    %c0 = arith.constant 0 : index
    %c0_0 = arith.constant 0 : index
    %c0_1 = arith.constant 0 : index
    %c0_2 = arith.constant 0 : index
    %1 = vector.load %arg1[%c0, %c0_0, %c0_1, %c0_2] : memref<1x18x18x4xf32, #tpu.memory_space<vmem>>, vector<1x16x16x4xf32>
    %2 = vector.shape_cast %1 : vector<1x16x16x4xf32> to vector<16x16x4xf32>
    %3 = vector.shape_cast %2 : vector<16x16x4xf32> to vector<256x4xf32>
    %4 = arith.truncf %3 : vector<256x4xf32> to vector<256x4xbf16>
    %c0_3 = arith.constant 0 : index
    %c0_4 = arith.constant 0 : index
    %c0_5 = arith.constant 0 : index
    %5 = vector.load %arg2[%c0_3, %c0_4, %c0_5] : memref<9x4x128xf32, #tpu.memory_space<vmem>>, vector<1x4x128xf32>
    %6 = vector.shape_cast %5 : vector<1x4x128xf32> to vector<4x128xf32>
    %7 = arith.truncf %6 : vector<4x128xf32> to vector<4x128xbf16>
    %cst_6 = arith.constant dense<0.000000e+00> : vector<256x128xf32>
    %8 = tpu.matmul %4, %7, %cst_6 {dimension_numbers = #tpu.dot_dimension_numbers<[1], [0], [0], [1], [0, 0, 1, 1], [], []>} : vector<256x4xbf16>, vector<4x128xbf16>, vector<256x128xf32> -> vector<256x128xf32>
    %9 = arith.addf %0, %8 : vector<256x128xf32>
    %c0_7 = arith.constant 0 : index
    %c0_8 = arith.constant 0 : index
    %c1 = arith.constant 1 : index
    %c0_9 = arith.constant 0 : index
    %10 = vector.load %arg1[%c0_7, %c0_8, %c1, %c0_9] : memref<1x18x18x4xf32, #tpu.memory_space<vmem>>, vector<1x16x16x4xf32>
    %11 = vector.shape_cast %10 : vector<1x16x16x4xf32> to vector<16x16x4xf32>
    %12 = vector.shape_cast %11 : vector<16x16x4xf32> to vector<256x4xf32>
    %13 = arith.truncf %12 : vector<256x4xf32> to vector<256x4xbf16>
    %c1_10 = arith.constant 1 : index
    %c0_11 = arith.constant 0 : index
    %c0_12 = arith.constant 0 : index
    %14 = vector.load %arg2[%c1_10, %c0_11, %c0_12] : memref<9x4x128xf32, #tpu.memory_space<vmem>>, vector<1x4x128xf32>
    %15 = vector.shape_cast %14 : vector<1x4x128xf32> to vector<4x128xf32>
    %16 = arith.truncf %15 : vector<4x128xf32> to vector<4x128xbf16>
    %cst_13 = arith.constant dense<0.000000e+00> : vector<256x128xf32>
    %17 = tpu.matmul %13, %16, %cst_13 {dimension_numbers = #tpu.dot_dimension_numbers<[1], [0], [0], [1], [0, 0, 1, 1], [], []>} : vector<256x4xbf16>, vector<4x128xbf16>, vector<256x128xf32> -> vector<256x128xf32>
    %18 = arith.addf %9, %17 : vector<256x128xf32>
    %c0_14 = arith.constant 0 : index
    %c0_15 = arith.constant 0 : index
    %c2 = arith.constant 2 : index
    %c0_16 = arith.constant 0 : index
    %19 = vector.load %arg1[%c0_14, %c0_15, %c2, %c0_16] : memref<1x18x18x4xf32, #tpu.memory_space<vmem>>, vector<1x16x16x4xf32>
    %20 = vector.shape_cast %19 : vector<1x16x16x4xf32> to vector<16x16x4xf32>
    %21 = vector.shape_cast %20 : vector<16x16x4xf32> to vector<256x4xf32>
    %22 = arith.truncf %21 : vector<256x4xf32> to vector<256x4xbf16>
    %c2_17 = arith.constant 2 : index
    %c0_18 = arith.constant 0 : index
    %c0_19 = arith.constant 0 : index
    %23 = vector.load %arg2[%c2_17, %c0_18, %c0_19] : memref<9x4x128xf32, #tpu.memory_space<vmem>>, vector<1x4x128xf32>
    %24 = vector.shape_cast %23 : vector<1x4x128xf32> to vector<4x128xf32>
    %25 = arith.truncf %24 : vector<4x128xf32> to vector<4x128xbf16>
    %cst_20 = arith.constant dense<0.000000e+00> : vector<256x128xf32>
    %26 = tpu.matmul %22, %25, %cst_20 {dimension_numbers = #tpu.dot_dimension_numbers<[1], [0], [0], [1], [0, 0, 1, 1], [], []>} : vector<256x4xbf16>, vector<4x128xbf16>, vector<256x128xf32> -> vector<256x128xf32>
    %27 = arith.addf %18, %26 : vector<256x128xf32>
    %c0_21 = arith.constant 0 : index
    %c1_22 = arith.constant 1 : index
    %c0_23 = arith.constant 0 : index
    %c0_24 = arith.constant 0 : index
    %28 = vector.load %arg1[%c0_21, %c1_22, %c0_23, %c0_24] : memref<1x18x18x4xf32, #tpu.memory_space<vmem>>, vector<1x16x16x4xf32>
    %29 = vector.shape_cast %28 : vector<1x16x16x4xf32> to vector<16x16x4xf32>
    %30 = vector.shape_cast %29 : vector<16x16x4xf32> to vector<256x4xf32>
    %31 = arith.truncf %30 : vector<256x4xf32> to vector<256x4xbf16>
    %c3 = arith.constant 3 : index
    %c0_25 = arith.constant 0 : index
    %c0_26 = arith.constant 0 : index
    %32 = vector.load %arg2[%c3, %c0_25, %c0_26] : memref<9x4x128xf32, #tpu.memory_space<vmem>>, vector<1x4x128xf32>
    %33 = vector.shape_cast %32 : vector<1x4x128xf32> to vector<4x128xf32>
    %34 = arith.truncf %33 : vector<4x128xf32> to vector<4x128xbf16>
    %cst_27 = arith.constant dense<0.000000e+00> : vector<256x128xf32>
    %35 = tpu.matmul %31, %34, %cst_27 {dimension_numbers = #tpu.dot_dimension_numbers<[1], [0], [0], [1], [0, 0, 1, 1], [], []>} : vector<256x4xbf16>, vector<4x128xbf16>, vector<256x128xf32> -> vector<256x128xf32>
    %36 = arith.addf %27, %35 : vector<256x128xf32>
    %c0_28 = arith.constant 0 : index
    %c1_29 = arith.constant 1 : index
    %c1_30 = arith.constant 1 : index
    %c0_31 = arith.constant 0 : index
    %37 = vector.load %arg1[%c0_28, %c1_29, %c1_30, %c0_31] : memref<1x18x18x4xf32, #tpu.memory_space<vmem>>, vector<1x16x16x4xf32>
    %38 = vector.shape_cast %37 : vector<1x16x16x4xf32> to vector<16x16x4xf32>
    %39 = vector.shape_cast %38 : vector<16x16x4xf32> to vector<256x4xf32>
    %40 = arith.truncf %39 : vector<256x4xf32> to vector<256x4xbf16>
    %c4 = arith.constant 4 : index
    %c0_32 = arith.constant 0 : index
    %c0_33 = arith.constant 0 : index
    %41 = vector.load %arg2[%c4, %c0_32, %c0_33] : memref<9x4x128xf32, #tpu.memory_space<vmem>>, vector<1x4x128xf32>
    %42 = vector.shape_cast %41 : vector<1x4x128xf32> to vector<4x128xf32>
    %43 = arith.truncf %42 : vector<4x128xf32> to vector<4x128xbf16>
    %cst_34 = arith.constant dense<0.000000e+00> : vector<256x128xf32>
    %44 = tpu.matmul %40, %43, %cst_34 {dimension_numbers = #tpu.dot_dimension_numbers<[1], [0], [0], [1], [0, 0, 1, 1], [], []>} : vector<256x4xbf16>, vector<4x128xbf16>, vector<256x128xf32> -> vector<256x128xf32>
    %45 = arith.addf %36, %44 : vector<256x128xf32>
    %c0_35 = arith.constant 0 : index
    %c1_36 = arith.constant 1 : index
    %c2_37 = arith.constant 2 : index
    %c0_38 = arith.constant 0 : index
    %46 = vector.load %arg1[%c0_35, %c1_36, %c2_37, %c0_38] : memref<1x18x18x4xf32, #tpu.memory_space<vmem>>, vector<1x16x16x4xf32>
    %47 = vector.shape_cast %46 : vector<1x16x16x4xf32> to vector<16x16x4xf32>
    %48 = vector.shape_cast %47 : vector<16x16x4xf32> to vector<256x4xf32>
    %49 = arith.truncf %48 : vector<256x4xf32> to vector<256x4xbf16>
    %c5 = arith.constant 5 : index
    %c0_39 = arith.constant 0 : index
    %c0_40 = arith.constant 0 : index
    %50 = vector.load %arg2[%c5, %c0_39, %c0_40] : memref<9x4x128xf32, #tpu.memory_space<vmem>>, vector<1x4x128xf32>
    %51 = vector.shape_cast %50 : vector<1x4x128xf32> to vector<4x128xf32>
    %52 = arith.truncf %51 : vector<4x128xf32> to vector<4x128xbf16>
    %cst_41 = arith.constant dense<0.000000e+00> : vector<256x128xf32>
    %53 = tpu.matmul %49, %52, %cst_41 {dimension_numbers = #tpu.dot_dimension_numbers<[1], [0], [0], [1], [0, 0, 1, 1], [], []>} : vector<256x4xbf16>, vector<4x128xbf16>, vector<256x128xf32> -> vector<256x128xf32>
    %54 = arith.addf %45, %53 : vector<256x128xf32>
    %c0_42 = arith.constant 0 : index
    %c2_43 = arith.constant 2 : index
    %c0_44 = arith.constant 0 : index
    %c0_45 = arith.constant 0 : index
    %55 = vector.load %arg1[%c0_42, %c2_43, %c0_44, %c0_45] : memref<1x18x18x4xf32, #tpu.memory_space<vmem>>, vector<1x16x16x4xf32>
    %56 = vector.shape_cast %55 : vector<1x16x16x4xf32> to vector<16x16x4xf32>
    %57 = vector.shape_cast %56 : vector<16x16x4xf32> to vector<256x4xf32>
    %58 = arith.truncf %57 : vector<256x4xf32> to vector<256x4xbf16>
    %c6 = arith.constant 6 : index
    %c0_46 = arith.constant 0 : index
    %c0_47 = arith.constant 0 : index
    %59 = vector.load %arg2[%c6, %c0_46, %c0_47] : memref<9x4x128xf32, #tpu.memory_space<vmem>>, vector<1x4x128xf32>
    %60 = vector.shape_cast %59 : vector<1x4x128xf32> to vector<4x128xf32>
    %61 = arith.truncf %60 : vector<4x128xf32> to vector<4x128xbf16>
    %cst_48 = arith.constant dense<0.000000e+00> : vector<256x128xf32>
    %62 = tpu.matmul %58, %61, %cst_48 {dimension_numbers = #tpu.dot_dimension_numbers<[1], [0], [0], [1], [0, 0, 1, 1], [], []>} : vector<256x4xbf16>, vector<4x128xbf16>, vector<256x128xf32> -> vector<256x128xf32>
    %63 = arith.addf %54, %62 : vector<256x128xf32>
    %c0_49 = arith.constant 0 : index
    %c2_50 = arith.constant 2 : index
    %c1_51 = arith.constant 1 : index
    %c0_52 = arith.constant 0 : index
    %64 = vector.load %arg1[%c0_49, %c2_50, %c1_51, %c0_52] : memref<1x18x18x4xf32, #tpu.memory_space<vmem>>, vector<1x16x16x4xf32>
    %65 = vector.shape_cast %64 : vector<1x16x16x4xf32> to vector<16x16x4xf32>
    %66 = vector.shape_cast %65 : vector<16x16x4xf32> to vector<256x4xf32>
    %67 = arith.truncf %66 : vector<256x4xf32> to vector<256x4xbf16>
    %c7 = arith.constant 7 : index
    %c0_53 = arith.constant 0 : index
    %c0_54 = arith.constant 0 : index
    %68 = vector.load %arg2[%c7, %c0_53, %c0_54] : memref<9x4x128xf32, #tpu.memory_space<vmem>>, vector<1x4x128xf32>
    %69 = vector.shape_cast %68 : vector<1x4x128xf32> to vector<4x128xf32>
    %70 = arith.truncf %69 : vector<4x128xf32> to vector<4x128xbf16>
    %cst_55 = arith.constant dense<0.000000e+00> : vector<256x128xf32>
    %71 = tpu.matmul %67, %70, %cst_55 {dimension_numbers = #tpu.dot_dimension_numbers<[1], [0], [0], [1], [0, 0, 1, 1], [], []>} : vector<256x4xbf16>, vector<4x128xbf16>, vector<256x128xf32> -> vector<256x128xf32>
    %72 = arith.addf %63, %71 : vector<256x128xf32>
    %c0_56 = arith.constant 0 : index
    %c2_57 = arith.constant 2 : index
    %c2_58 = arith.constant 2 : index
    %c0_59 = arith.constant 0 : index
    %73 = vector.load %arg1[%c0_56, %c2_57, %c2_58, %c0_59] : memref<1x18x18x4xf32, #tpu.memory_space<vmem>>, vector<1x16x16x4xf32>
    %74 = vector.shape_cast %73 : vector<1x16x16x4xf32> to vector<16x16x4xf32>
    %75 = vector.shape_cast %74 : vector<16x16x4xf32> to vector<256x4xf32>
    %76 = arith.truncf %75 : vector<256x4xf32> to vector<256x4xbf16>
    %c8 = arith.constant 8 : index
    %c0_60 = arith.constant 0 : index
    %c0_61 = arith.constant 0 : index
    %77 = vector.load %arg2[%c8, %c0_60, %c0_61] : memref<9x4x128xf32, #tpu.memory_space<vmem>>, vector<1x4x128xf32>
    %78 = vector.shape_cast %77 : vector<1x4x128xf32> to vector<4x128xf32>
    %79 = arith.truncf %78 : vector<4x128xf32> to vector<4x128xbf16>
    %cst_62 = arith.constant dense<0.000000e+00> : vector<256x128xf32>
    %80 = tpu.matmul %76, %79, %cst_62 {dimension_numbers = #tpu.dot_dimension_numbers<[1], [0], [0], [1], [0, 0, 1, 1], [], []>} : vector<256x4xbf16>, vector<4x128xbf16>, vector<256x128xf32> -> vector<256x128xf32>
    %81 = arith.addf %72, %80 : vector<256x128xf32>
    %c0_63 = arith.constant 0 : index
    %c0_64 = arith.constant 0 : index
    %82 = vector.load %arg3[%c0_63, %c0_64] : memref<1x128xf32, #tpu.memory_space<vmem>>, vector<1x128xf32>
    %83 = vector.broadcast %82 : vector<1x128xf32> to vector<256x128xf32>
    %84 = arith.addf %81, %83 : vector<256x128xf32>
    %cst_65 = arith.constant 0.000000e+00 : f32
    %85 = vector.broadcast %cst_65 : f32 to vector<256x128xf32>
    %86 = arith.maximumf %84, %85 : vector<256x128xf32>
    %87 = vector.shape_cast %86 : vector<256x128xf32> to vector<16x16x128xf32>
    %c0_66 = arith.constant 0 : index
    %c0_67 = arith.constant 0 : index
    %c0_68 = arith.constant 0 : index
    %88 = vector.load %arg5[%c0_66, %c0_67, %c0_68] : memref<16x16x128xf32, #tpu.memory_space<vmem>>, vector<16x16x128xf32>
    tpu.vector_store %arg5[%c0_66, %c0_67, %c0_68], %87 {strides = array<i32>} : memref<16x16x128xf32, #tpu.memory_space<vmem>>, vector<16x16x128xf32>,
    %c0_69 = arith.constant 0 : index
    %c0_70 = arith.constant 0 : index
    %c0_71 = arith.constant 0 : index
    %89 = tpu.strided_load %arg5[%c0_69, %c0_70, %c0_71] {strides = array<i32: 2, 1, 1>} : memref<16x16x128xf32, #tpu.memory_space<vmem>>, vector<7x16x128xf32>
    %c1_72 = arith.constant 1 : index
    %c0_73 = arith.constant 0 : index
    %c0_74 = arith.constant 0 : index
    %90 = tpu.strided_load %arg5[%c1_72, %c0_73, %c0_74] {strides = array<i32: 2, 1, 1>} : memref<16x16x128xf32, #tpu.memory_space<vmem>>, vector<7x16x128xf32>
    %91 = arith.maximumf %89, %90 : vector<7x16x128xf32>
    %c2_75 = arith.constant 2 : index
    %c0_76 = arith.constant 0 : index
    %c0_77 = arith.constant 0 : index
    %92 = tpu.strided_load %arg5[%c2_75, %c0_76, %c0_77] {strides = array<i32: 2, 1, 1>} : memref<16x16x128xf32, #tpu.memory_space<vmem>>, vector<7x16x128xf32>
    %93 = arith.maximumf %91, %92 : vector<7x16x128xf32>
    %c0_78 = arith.constant 0 : index
    %c0_79 = arith.constant 0 : index
    %c0_80 = arith.constant 0 : index
    %94 = vector.load %arg6[%c0_78, %c0_79, %c0_80] : memref<7x16x128xf32, #tpu.memory_space<vmem>>, vector<7x16x128xf32>
    tpu.vector_store %arg6[%c0_78, %c0_79, %c0_80], %93 {strides = array<i32>} : memref<7x16x128xf32, #tpu.memory_space<vmem>>, vector<7x16x128xf32>,
    %c0_81 = arith.constant 0 : index
    %c0_82 = arith.constant 0 : index
    %c0_83 = arith.constant 0 : index
    %95 = tpu.strided_load %arg6[%c0_81, %c0_82, %c0_83] {strides = array<i32: 1, 2, 1>} : memref<7x16x128xf32, #tpu.memory_space<vmem>>, vector<7x7x128xf32>
    %c0_84 = arith.constant 0 : index
    %c1_85 = arith.constant 1 : index
    %c0_86 = arith.constant 0 : index
    %96 = tpu.strided_load %arg6[%c0_84, %c1_85, %c0_86] {strides = array<i32: 1, 2, 1>} : memref<7x16x128xf32, #tpu.memory_space<vmem>>, vector<7x7x128xf32>
    %97 = arith.maximumf %95, %96 : vector<7x7x128xf32>
    %c0_87 = arith.constant 0 : index
    %c2_88 = arith.constant 2 : index
    %c0_89 = arith.constant 0 : index
    %98 = tpu.strided_load %arg6[%c0_87, %c2_88, %c0_89] {strides = array<i32: 1, 2, 1>} : memref<7x16x128xf32, #tpu.memory_space<vmem>>, vector<7x7x128xf32>
    %99 = arith.maximumf %97, %98 : vector<7x7x128xf32>
    %c0_90 = arith.constant 0 : index
    %c0_91 = arith.constant 0 : index
    %c0_92 = arith.constant 0 : index
    %c0_93 = arith.constant 0 : index
    %100 = vector.load %arg4[%c0_90, %c0_91, %c0_92, %c0_93] : memref<1x7x7x128xf32, #tpu.memory_space<vmem>>, vector<1x7x7x128xf32>
    %101 = vector.shape_cast %100 : vector<1x7x7x128xf32> to vector<7x7x128xf32>
    %102 = vector.shape_cast %99 : vector<7x7x128xf32> to vector<1x7x7x128xf32>
    tpu.vector_store %arg4[%c0_90, %c0_91, %c0_92, %c0_93], %102 {strides = array<i32>} : memref<1x7x7x128xf32, #tpu.memory_space<vmem>>, vector<1x7x7x128xf32>,
    return
  }
  func.func @transform_0(%arg0: i32) -> (i32, i32, i32, i32) {
    %c0_i32 = arith.constant 0 : i32
    %c0_i32_0 = arith.constant 0 : i32
    %c0_i32_1 = arith.constant 0 : i32
    %c0_i32_2 = arith.constant 0 : i32
    return %arg0, %c0_i32, %c0_i32_0, %c0_i32_1 : i32, i32, i32, i32
  }
  func.func @transform_1(%arg0: i32) -> (i32, i32, i32) {
    %c0_i32 = arith.constant 0 : i32
    %c0_i32_0 = arith.constant 0 : i32
    %c0_i32_1 = arith.constant 0 : i32
    %c0_i32_2 = arith.constant 0 : i32
    return %c0_i32, %c0_i32_0, %c0_i32_1 : i32, i32, i32
  }
  func.func @transform_2(%arg0: i32) -> (i32, i32) {
    %c0_i32 = arith.constant 0 : i32
    %c0_i32_0 = arith.constant 0 : i32
    %c0_i32_1 = arith.constant 0 : i32
    return %c0_i32, %c0_i32_0 : i32, i32
  }
  func.func @transform_3(%arg0: i32) -> (i32, i32, i32, i32) {
    %c0_i32 = arith.constant 0 : i32
    %c0_i32_0 = arith.constant 0 : i32
    %c0_i32_1 = arith.constant 0 : i32
    %c0_i32_2 = arith.constant 0 : i32
    return %arg0, %c0_i32, %c0_i32_0, %c0_i32_1 : i32, i32, i32, i32
  }
}

</mosaic_0001>

<llo_original>
// kernel: tpu_custom_call.1
$region0: #{tpu_custom_call.1}
  #allocation0 [shape = 'u32[]', space=smem, size = 0x4, offset = 0x4, fixed_abs, tag = 'smem constant byte address 0x4 - core index']
  #allocation1 [shape = 'u32[144,128]{1,0:T(1,128)}', space=vmem, size = 0x12000, scoped, tag = 'internal scratch']
  #allocation2 [shape = 'f32[16,16,128]{2,1,0:T(8,128)}', space=vmem, size = 0x20000, scoped, tag = 'scratch operand']
  #allocation3 [shape = 'f32[7,16,128]{2,1,0:T(8,128)}', space=vmem, size = 0xe000, scoped, tag = 'scratch operand']
  %s0 = inlined_call_operand.vmem [shape: f32[2,18,18,4], index: 0, kind: input, shape index: {}]
  %s1 = inlined_call_operand.vmem [shape: f32[9,4,128], index: 1, kind: input, shape index: {}]
  %s2 = inlined_call_operand.vmem [shape: f32[1,128], index: 2, kind: input, shape index: {}]
  %s3 = inlined_call_operand.vmem [shape: f32[2,7,7,128], index: 3, kind: output, shape index: {}]
  %s4 = sld [smem:[#allocation0]]
  $region45: #{tpu_custom_call.1} parent=0
    _
  %s6 = ssub.s32 1, %s4
  %s7 = scalar_select 0, %s6, %s4
  loop: start=0, step=1, limit=4
  $region2: #{tpu_custom_call.1} parent=0 // loop_pre_header
    _
  $region3: #{tpu_custom_call.1} parent=0 // loop_header
    %s9 = sphi 0, %s13
    %p10 = scmp.ge.s32.totalorder %s9, 4
    %s19 = sphi 0, %s21
    %s22 = sphi 0, %s19
    %s23 = sphi 0, %s22
    %s39 = sphi 0, %s23
    %s43 = sphi 0, %s43
    %s45 = sphi 0, %s43
    %s46 = sphi 0, %s45
    %s60 = sphi 0, %s46
    %s64 = sphi 0, %s64
    %s66 = sphi 0, %s64
    %s67 = sphi 0, %s66
    %s81 = sphi 0, %s67
    %s87 = sphi 0, %s89
    %s90 = sphi 0, %s87
    %s91 = sphi 0, %s90
    %s107 = sphi 0, %s91
  $region4: #{tpu_custom_call.1} parent=0 // loop_header_branch
    %12 = sbr.rel (%p10) target = $region8
  $region5: #{tpu_custom_call.1} parent=0 // loop_body
    %s14 = ssub.s32 %s9, 1
    %s15 = ssub.s32 %s9, 2
    %s16 = sadd.s32 %s9, 1
    %s17 = ssub.s32 %s9, %s16
    %p18 = scmp.eq.s32.totalorder %s17, 0
    %s20 = sadd.s32 %s19, 1
    %s21 = scalar_select %p18, %s19, %s20
    %p24 = pneg %p18
    %p25 = scmp.eq.s32.totalorder %s9, 1
    %p26 = por %p24, %p25
    %p27 = scmp.ne.s32.totalorder %s19, %s22
    %p28 = scmp.eq.s32.totalorder %s9, 0
    %p29 = por %p27, %p28
    %p30 = scmp.ne.s32.totalorder %s19, %s22
    %p31 = scmp.eq.s32.totalorder %s14, 1
    %p32 = por %p30, %p31
    %p33 = scmp.ne.s32.totalorder %s22, %s23
    %p34 = scmp.eq.s32.totalorder %s14, 0
    %p35 = por %p33, %p34
    %p36 = scmp.ne.s32.totalorder %s22, %s23
    %p37 = scmp.eq.s32.totalorder %s15, 1
    %p38 = por %p36, %p37
    %p40 = scmp.ne.s32.totalorder %s23, %s39
    %p41 = scmp.eq.s32.totalorder %s15, 0
    %p42 = por %p40, %p41
    %s44 = sadd.s32 %s43, 1
    %p47 = scmp.eq.s32.totalorder %s9, 1
    %p48 = scmp.ne.s32.totalorder %s43, %s45
    %p49 = scmp.eq.s32.totalorder %s9, 0
    %p50 = por %p48, %p49
    %p51 = scmp.ne.s32.totalorder %s43, %s45
    %p52 = scmp.eq.s32.totalorder %s14, 1
    %p53 = por %p51, %p52
    %p54 = scmp.ne.s32.totalorder %s45, %s46
    %p55 = scmp.eq.s32.totalorder %s14, 0
    %p56 = por %p54, %p55
    %p57 = scmp.ne.s32.totalorder %s45, %s46
    %p58 = scmp.eq.s32.totalorder %s15, 1
    %p59 = por %p57, %p58
    %p61 = scmp.ne.s32.totalorder %s46, %s60
    %p62 = scmp.eq.s32.totalorder %s15, 0
    %p63 = por %p61, %p62
    %s65 = sadd.s32 %s64, 1
    %p68 = scmp.eq.s32.totalorder %s9, 1
    %p69 = scmp.ne.s32.totalorder %s64, %s66
    %p70 = scmp.eq.s32.totalorder %s9, 0
    %p71 = por %p69, %p70
    %p72 = scmp.ne.s32.totalorder %s64, %s66
    %p73 = scmp.eq.s32.totalorder %s14, 1
    %p74 = por %p72, %p73
    %p75 = scmp.ne.s32.totalorder %s66, %s67
    %p76 = scmp.eq.s32.totalorder %s14, 0
    %p77 = por %p75, %p76
    %p78 = scmp.ne.s32.totalorder %s66, %s67
    %p79 = scmp.eq.s32.totalorder %s15, 1
    %p80 = por %p78, %p79
    %p82 = scmp.ne.s32.totalorder %s67, %s81
    %p83 = scmp.eq.s32.totalorder %s15, 0
    %p84 = por %p82, %p83
    %s85 = ssub.s32 %s9, %s16
    %p86 = scmp.eq.s32.totalorder %s85, 0
    %s88 = sadd.s32 %s87, 1
    %s89 = scalar_select %p86, %s87, %s88
    %p92 = pneg %p86
    %p93 = scmp.eq.s32.totalorder %s9, 1
    %p94 = por %p92, %p93
    %p95 = scmp.ne.s32.totalorder %s87, %s90
    %p96 = scmp.eq.s32.totalorder %s9, 0
    %p97 = por %p95, %p96
    %p98 = scmp.ne.s32.totalorder %s87, %s90
    %p99 = scmp.eq.s32.totalorder %s14, 1
    %p100 = por %p98, %p99
    %p101 = scmp.ne.s32.totalorder %s90, %s91
    %p102 = scmp.eq.s32.totalorder %s14, 0
    %p103 = por %p101, %p102
    %p104 = scmp.ne.s32.totalorder %s90, %s91
    %p105 = scmp.eq.s32.totalorder %s15, 1
    %p106 = por %p104, %p105
    %p108 = scmp.ne.s32.totalorder %s91, %s107
    %p109 = scmp.eq.s32.totalorder %s15, 0
    %p110 = por %p108, %p109
    %p111 = scmp.le.s32.totalorder 1, %s9
    %p112 = scmp.lt.s32.totalorder %s9, 3
    %p113 = pnand %p111, %p112
    %p114 = pneg %p113
    // Predicated region
    $region9: #{tpu_custom_call.1} parent=5 // pred_check
      _
    $region10: #{tpu_custom_call.1} parent=5 // pred_check_branch
      %116 = sbr.rel (%p113) target = $region12
    $region11: #{tpu_custom_call.1} parent=5 // pred_region
      %s117 = ssub.s32 %s9, 1
      // Predicated region
      $region13: #{tpu_custom_call.1} parent=11 // pred_check
        %p118 = pneg %p56
      $region14: #{tpu_custom_call.1} parent=11 // pred_check_branch
        %120 = sbr.rel (%p118) target = $region16
      $region15: #{tpu_custom_call.1} parent=11 // pred_region
        _
      $region16: #{tpu_custom_call.1} parent=11 // pred_fallthru
        _
      // Predicated region
      $region17: #{tpu_custom_call.1} parent=11 // pred_check
        %p121 = pneg %p77
      $region18: #{tpu_custom_call.1} parent=11 // pred_check_branch
        %123 = sbr.rel (%p121) target = $region20
      $region19: #{tpu_custom_call.1} parent=11 // pred_region
        _
      $region20: #{tpu_custom_call.1} parent=11 // pred_fallthru
        _
    $region12: #{tpu_custom_call.1} parent=5 // pred_fallthru
      _
    %p124 = scmp.lt.s32.totalorder %s9, 2
    // Predicated region
    $region21: #{tpu_custom_call.1} parent=5 // pred_check
      %p125 = pneg %p124
    $region22: #{tpu_custom_call.1} parent=5 // pred_check_branch
      %127 = sbr.rel (%p125) target = $region24
    $region23: #{tpu_custom_call.1} parent=5 // pred_region
      // Predicated region
      $region25: #{tpu_custom_call.1} parent=23 // pred_check
        %p128 = pneg %p29
      $region26: #{tpu_custom_call.1} parent=23 // pred_check_branch
        %130 = sbr.rel (%p128) target = $region28
      $region27: #{tpu_custom_call.1} parent=23 // pred_region
        %p131 = scmp.lt.s32.totalorder %s9, 1
        %s132 = scalar_select %p131, %s9, 1
        %s133 = smul.addr %s132, 54
        %s134 = smul.addr %s133, 8
        %s135 = scalar_lea.vmem %s0, %s134
      $region28: #{tpu_custom_call.1} parent=23 // pred_fallthru
        _
    $region24: #{tpu_custom_call.1} parent=5 // pred_fallthru
      _
    %p136 = scmp.le.s32.totalorder 1, %s9
    %p137 = scmp.lt.s32.totalorder %s9, 3
    %p138 = pnand %p136, %p137
    %p139 = pneg %p138
    // Predicated region
    $region29: #{tpu_custom_call.1} parent=5 // pred_check
      _
    $region30: #{tpu_custom_call.1} parent=5 // pred_check_branch
      %141 = sbr.rel (%p138) target = $region32
    $region31: #{tpu_custom_call.1} parent=5 // pred_region
      %s142 = ssub.s32 %s9, 1
      %p143 = scmp.lt.s32.totalorder %s14, 1
      %s144 = scalar_select %p143, %s14, 1
      %s145 = smul.addr %s144, 54
      %s146 = smul.addr %s145, 8
      %s147 = scalar_lea.vmem %s0, %s146
      %p148 = pneg %p35
      %p149 = pneg %p32
      %p150 = pneg %p56
      %p151 = pneg %p53
      %p152 = pneg %p77
      %p153 = pneg %p74
      %p154 = pneg %p103
      %p155 = pneg %p100
      %p156 = scmp.lt.s32.totalorder %s14, 1
      %s157 = scalar_select %p156, %s14, 1
      %s158 = smul.addr %s157, 7
      %s159 = smul.addr %s158, 8
      %s160 = scalar_lea.vmem %s3, %s159
      %p161 = scmp.lt.s32.totalorder %s14, 1
      %s162 = scalar_select %p161, %s14, 1
      %s163 = smul.addr %s162, 54
      %s164 = smul.addr %s163, 8
      %s165 = scalar_lea.vmem %s0, %s164
      %p166 = scmp.lt.s32.totalorder %s14, 1
      %s167 = scalar_select %p166, %s14, 1
      %s168 = smul.addr %s167, 7
      %s169 = smul.addr %s168, 8
      %s170 = scalar_lea.vmem %s3, %s169
      %v172 = vld [vmem:[%s165] sm:$0xff]
      %v173 = vld [vmem:[%s165 + $0x8] sm:$0xff]
      %v174 = vld [vmem:[%s165 + $0x18] sm:$0xff]
      %v175 = vld [vmem:[%s165 + $0x20] sm:$0xff]
      %v176 = vld [vmem:[%s165 + $0x30] sm:$0xff]
      %v177 = vld [vmem:[%s165 + $0x38] sm:$0xff]
      %v178 = vld [vmem:[%s165 + $0x48] sm:$0xff]
      %v179 = vld [vmem:[%s165 + $0x50] sm:$0xff]
      %v180 = vld [vmem:[%s165 + $0x60] sm:$0xff]
      %v181 = vld [vmem:[%s165 + $0x68] sm:$0xff]
      %v182 = vld [vmem:[%s165 + $0x78] sm:$0xff]
      %v183 = vld [vmem:[%s165 + $0x80] sm:$0xff]
      %v184 = vld [vmem:[%s165 + $0x90] sm:$0xff]
      %v185 = vld [vmem:[%s165 + $0x98] sm:$0xff]
      %v186 = vld [vmem:[%s165 + $0xa8] sm:$0xff]
      %v187 = vld [vmem:[%s165 + $0xb0] sm:$0xff]
      %v188 = vld [vmem:[%s165 + $0xc0] sm:$0xff]
      %v189 = vld [vmem:[%s165 + $0xc8] sm:$0xff]
      %v190 = vld [vmem:[%s165 + $0xd8] sm:$0xff]
      %v191 = vld [vmem:[%s165 + $0xe0] sm:$0xff]
      %v192 = vld [vmem:[%s165 + $0xf0] sm:$0xff]
      %v193 = vld [vmem:[%s165 + $0xf8] sm:$0xff]
      %v194 = vld [vmem:[%s165 + $0x108] sm:$0xff]
      %v195 = vld [vmem:[%s165 + $0x110] sm:$0xff]
      %v196 = vld [vmem:[%s165 + $0x120] sm:$0xff]
      %v197 = vld [vmem:[%s165 + $0x128] sm:$0xff]
      %v198 = vld [vmem:[%s165 + $0x138] sm:$0xff]
      %v199 = vld [vmem:[%s165 + $0x140] sm:$0xff]
      %v200 = vld [vmem:[%s165 + $0x150] sm:$0xff]
      %v201 = vld [vmem:[%s165 + $0x158] sm:$0xff]
      %v202 = vld [vmem:[%s165 + $0x168] sm:$0xff]
      %v203 = vld [vmem:[%s165 + $0x170] sm:$0xff]
      %v204 = vpack.c.bf16 %v173, %v172
      %v205 = vpack.c.bf16 %v175, %v174
      %v206 = vpack.c.bf16 %v177, %v176
      %v207 = vpack.c.bf16 %v179, %v178
      %v208 = vpack.c.bf16 %v181, %v180
      %v209 = vpack.c.bf16 %v183, %v182
      %v210 = vpack.c.bf16 %v185, %v184
      %v211 = vpack.c.bf16 %v187, %v186
      %v212 = vpack.c.bf16 %v189, %v188
      %v213 = vpack.c.bf16 %v191, %v190
      %v214 = vpack.c.bf16 %v193, %v192
      %v215 = vpack.c.bf16 %v195, %v194
      %v216 = vpack.c.bf16 %v197, %v196
      %v217 = vpack.c.bf16 %v199, %v198
      %v218 = vpack.c.bf16 %v201, %v200
      %v219 = vpack.c.bf16 %v203, %v202
      %v220 = vld [vmem:[%s1] sm:$0xf]
      %v221 = vpack.c.bf16 %v220, %v220
      %v222 = vld [vmem:[%s165 + $0x1] sm:$0xff]
      %v223 = vld [vmem:[%s165 + $0x9] sm:$0xff]
      %v224 = vld [vmem:[%s165 + $0x19] sm:$0xff]
      %v225 = vld [vmem:[%s165 + $0x21] sm:$0xff]
      %v226 = vld [vmem:[%s165 + $0x31] sm:$0xff]
      %v227 = vld [vmem:[%s165 + $0x39] sm:$0xff]
      %v228 = vld [vmem:[%s165 + $0x49] sm:$0xff]
      %v229 = vld [vmem:[%s165 + $0x51] sm:$0xff]
      %v230 = vld [vmem:[%s165 + $0x61] sm:$0xff]
      %v231 = vld [vmem:[%s165 + $0x69] sm:$0xff]
      %v232 = vld [vmem:[%s165 + $0x79] sm:$0xff]
      %v233 = vld [vmem:[%s165 + $0x81] sm:$0xff]
      %v234 = vld [vmem:[%s165 + $0x91] sm:$0xff]
      %v235 = vld [vmem:[%s165 + $0x99] sm:$0xff]
      %v236 = vld [vmem:[%s165 + $0xa9] sm:$0xff]
      %v237 = vld [vmem:[%s165 + $0xb1] sm:$0xff]
      %v238 = vld [vmem:[%s165 + $0xc1] sm:$0xff]
      %v239 = vld [vmem:[%s165 + $0xc9] sm:$0xff]
      %v240 = vld [vmem:[%s165 + $0xd9] sm:$0xff]
      %v241 = vld [vmem:[%s165 + $0xe1] sm:$0xff]
      %v242 = vld [vmem:[%s165 + $0xf1] sm:$0xff]
      %v243 = vld [vmem:[%s165 + $0xf9] sm:$0xff]
      %v244 = vld [vmem:[%s165 + $0x109] sm:$0xff]
      %v245 = vld [vmem:[%s165 + $0x111] sm:$0xff]
      %v246 = vld [vmem:[%s165 + $0x121] sm:$0xff]
      %v247 = vld [vmem:[%s165 + $0x129] sm:$0xff]
      %v248 = vld [vmem:[%s165 + $0x139] sm:$0xff]
      %v249 = vld [vmem:[%s165 + $0x141] sm:$0xff]
      %v250 = vld [vmem:[%s165 + $0x151] sm:$0xff]
      %v251 = vld [vmem:[%s165 + $0x159] sm:$0xff]
      %v252 = vld [vmem:[%s165 + $0x169] sm:$0xff]
      %v253 = vld [vmem:[%s165 + $0x171] sm:$0xff]
      %v254 = vpack.c.bf16 %v223, %v222
      %v255 = vpack.c.bf16 %v225, %v224
      %v256 = vpack.c.bf16 %v227, %v226
      %v257 = vpack.c.bf16 %v229, %v228
      %v258 = vpack.c.bf16 %v231, %v230
      %v259 = vpack.c.bf16 %v233, %v232
      %v260 = vpack.c.bf16 %v235, %v234
      %v261 = vpack.c.bf16 %v237, %v236
      %v262 = vpack.c.bf16 %v239, %v238
      %v263 = vpack.c.bf16 %v241, %v240
      %v264 = vpack.c.bf16 %v243, %v242
      %v265 = vpack.c.bf16 %v245, %v244
      %v266 = vpack.c.bf16 %v247, %v246
      %v267 = vpack.c.bf16 %v249, %v248
      %v268 = vpack.c.bf16 %v251, %v250
      %v269 = vpack.c.bf16 %v253, %v252
      %s270 = scalar_lea.vmem %s1, 4
      %v271 = vld [vmem:[%s270] sm:$0xf]
      %v272 = vpack.c.bf16 %v271, %v271
      %vm273 = vcmask 31744
      %v275 = vsel %vm273, %v254, 0
      %v278 = vsel %vm273, %v255, 0
      %v281 = vsel %vm273, %v256, 0
      %v284 = vsel %vm273, %v257, 0
      %v287 = vsel %vm273, %v258, 0
      %v290 = vsel %vm273, %v259, 0
      %v293 = vsel %vm273, %v260, 0
      %v296 = vsel %vm273, %v261, 0
      %v299 = vsel %vm273, %v262, 0
      %v302 = vsel %vm273, %v263, 0
      %v305 = vsel %vm273, %v264, 0
      %v308 = vsel %vm273, %v265, 0
      %v311 = vsel %vm273, %v266, 0
      %v314 = vsel %vm273, %v267, 0
      %v317 = vsel %vm273, %v268, 0
      %v320 = vsel %vm273, %v269, 0
      %vm322 = vcmask 1041408
      %v324 = vsel %vm322, %v272, 0
      %326 = vmatprep.subr.bf16.mxu0 0
      %327 = vmatpush1.bf16.msra.mxu0 0
      %328 = vmatprep.subr.bf16.mxu0 0
      %329 = vmatpush1.bf16.msra.mxu0 0
      %330 = vmatprep.subr.bf16.mxu0 0
      %331 = vmatpush1.bf16.msra.mxu0 0
      %332 = vmatprep.subr.bf16.mxu0 0
      %333 = vmatpush1.bf16.msra.mxu0 0
      %334 = vmatprep.subr.bf16.mxu0 0
      %335 = vmatpush1.bf16.msra.mxu0 0
      %336 = vmatprep.subr.bf16.mxu0 0
      %337 = vmatpush1.bf16.msra.mxu0 0
      %338 = vmatprep.subr.bf16.mxu0 0
      %339 = vmatpush1.bf16.msra.mxu0 0
      %340 = vmatprep.subr.bf16.mxu0 0
      %341 = vmatpush1.bf16.msra.mxu0 %v324
      %342 = vmatprep.subr.bf16.mxu0 0
      %343 = vmatpush2.bf16.msra.mxu0 0
      %344 = vmatprep.subr.bf16.mxu0 0
      %345 = vmatpush2.bf16.msra.mxu0 0
      %346 = vmatprep.subr.bf16.mxu0 0
      %347 = vmatpush2.bf16.msra.mxu0 0
      %348 = vmatprep.subr.bf16.mxu0 0
      %349 = vmatpush2.bf16.msra.mxu0 0
      %350 = vmatprep.subr.bf16.mxu0 0
      %351 = vmatpush2.bf16.msra.mxu0 0
      %352 = vmatprep.subr.bf16.mxu0 0
      %353 = vmatpush2.bf16.msra.mxu0 0
      %354 = vmatprep.subr.bf16.mxu0 0
      %355 = vmatpush2.bf16.msra.mxu0 0
      %356 = vmatprep.subr.bf16.mxu0 0
      %357 = vmatpush2.bf16.msra.mxu0 0
      %358 = vmatprep.mubr.bf16.mxu0 0
      %359 = vmatmul.mubr.bf16.gmra.mxu0 %v275
      %v360 = vpop.f32.mrf.mxu0
      %v361 = vadd.f32 0.0, %v360
      %v362 = vpop.f32.mrf.mxu0
      %v363 = vpop.f32.mrf.mxu0
      %v364 = vadd.f32 0.0, %v363
      %v365 = vpop.f32.mrf.mxu0
      %366 = vmatprep.mubr.bf16.mxu0 0
      %367 = vmatmul.mubr.bf16.gmra.mxu0 %v278
      %v368 = vpop.f32.mrf.mxu0
      %v369 = vadd.f32 0.0, %v368
      %v370 = vpop.f32.mrf.mxu0
      %v371 = vpop.f32.mrf.mxu0
      %v372 = vadd.f32 0.0, %v371
      %v373 = vpop.f32.mrf.mxu0
      %374 = vmatprep.mubr.bf16.mxu0 0
      %375 = vmatmul.mubr.bf16.gmra.mxu0 %v281
      %v376 = vpop.f32.mrf.mxu0
      %v377 = vadd.f32 0.0, %v376
      %v378 = vpop.f32.mrf.mxu0
      %v379 = vpop.f32.mrf.mxu0
      %v380 = vadd.f32 0.0, %v379
      %v381 = vpop.f32.mrf.mxu0
      %382 = vmatprep.mubr.bf16.mxu0 0
      %383 = vmatmul.mubr.bf16.gmra.mxu0 %v284
      %v384 = vpop.f32.mrf.mxu0
      %v385 = vadd.f32 0.0, %v384
      %v386 = vpop.f32.mrf.mxu0
      %v387 = vpop.f32.mrf.mxu0
      %v388 = vadd.f32 0.0, %v387
      %v389 = vpop.f32.mrf.mxu0
      %390 = vmatprep.mubr.bf16.mxu0 0
      %391 = vmatmul.mubr.bf16.gmra.mxu0 %v287
      %v392 = vpop.f32.mrf.mxu0
      %v393 = vadd.f32 0.0, %v392
      %v394 = vpop.f32.mrf.mxu0
      %v395 = vpop.f32.mrf.mxu0
      %v396 = vadd.f32 0.0, %v395
      %v397 = vpop.f32.mrf.mxu0
      %398 = vmatprep.mubr.bf16.mxu0 0
      %399 = vmatmul.mubr.bf16.gmra.mxu0 %v290
      %v400 = vpop.f32.mrf.mxu0
      %v401 = vadd.f32 0.0, %v400
      %v402 = vpop.f32.mrf.mxu0
      %v403 = vpop.f32.mrf.mxu0
      %v404 = vadd.f32 0.0, %v403
      %v405 = vpop.f32.mrf.mxu0
      %406 = vmatprep.mubr.bf16.mxu0 0
      %407 = vmatmul.mubr.bf16.gmra.mxu0 %v293
      %v408 = vpop.f32.mrf.mxu0
      %v409 = vadd.f32 0.0, %v408
      %v410 = vpop.f32.mrf.mxu0
      %v411 = vpop.f32.mrf.mxu0
      %v412 = vadd.f32 0.0, %v411
      %v413 = vpop.f32.mrf.mxu0
      %414 = vmatprep.mubr.bf16.mxu0 0
      %415 = vmatmul.mubr.bf16.gmra.mxu0 %v296
      %v416 = vpop.f32.mrf.mxu0
      %v417 = vadd.f32 0.0, %v416
      %v418 = vpop.f32.mrf.mxu0
      %v419 = vpop.f32.mrf.mxu0
      %v420 = vadd.f32 0.0, %v419
      %v421 = vpop.f32.mrf.mxu0
      %422 = vmatprep.mubr.bf16.mxu0 0
      %423 = vmatmul.mubr.bf16.gmra.mxu0 %v299
      %v424 = vpop.f32.mrf.mxu0
      %v425 = vadd.f32 0.0, %v424
      %v426 = vpop.f32.mrf.mxu0
      %v427 = vpop.f32.mrf.mxu0
      %v428 = vadd.f32 0.0, %v427
      %v429 = vpop.f32.mrf.mxu0
      %430 = vmatprep.mubr.bf16.mxu0 0
      %431 = vmatmul.mubr.bf16.gmra.mxu0 %v302
      %v432 = vpop.f32.mrf.mxu0
      %v433 = vadd.f32 0.0, %v432
      %v434 = vpop.f32.mrf.mxu0
      %v435 = vpop.f32.mrf.mxu0
      %v436 = vadd.f32 0.0, %v435
      %v437 = vpop.f32.mrf.mxu0
      %438 = vmatprep.mubr.bf16.mxu0 0
      %439 = vmatmul.mubr.bf16.gmra.mxu0 %v305
      %v440 = vpop.f32.mrf.mxu0
      %v441 = vadd.f32 0.0, %v440
      %v442 = vpop.f32.mrf.mxu0
      %v443 = vpop.f32.mrf.mxu0
      %v444 = vadd.f32 0.0, %v443
      %v445 = vpop.f32.mrf.mxu0
      %446 = vmatprep.mubr.bf16.mxu0 0
      %447 = vmatmul.mubr.bf16.gmra.mxu0 %v308
      %v448 = vpop.f32.mrf.mxu0
      %v449 = vadd.f32 0.0, %v448
      %v450 = vpop.f32.mrf.mxu0
      %v451 = vpop.f32.mrf.mxu0
      %v452 = vadd.f32 0.0, %v451
      %v453 = vpop.f32.mrf.mxu0
      %454 = vmatprep.mubr.bf16.mxu0 0
      %455 = vmatmul.mubr.bf16.gmra.mxu0 %v311
      %v456 = vpop.f32.mrf.mxu0
      %v457 = vadd.f32 0.0, %v456
      %v458 = vpop.f32.mrf.mxu0
      %v459 = vpop.f32.mrf.mxu0
      %v460 = vadd.f32 0.0, %v459
      %v461 = vpop.f32.mrf.mxu0
      %462 = vmatprep.mubr.bf16.mxu0 0
      %463 = vmatmul.mubr.bf16.gmra.mxu0 %v314
      %v464 = vpop.f32.mrf.mxu0
      %v465 = vadd.f32 0.0, %v464
      %v466 = vpop.f32.mrf.mxu0
      %v467 = vpop.f32.mrf.mxu0
      %v468 = vadd.f32 0.0, %v467
      %v469 = vpop.f32.mrf.mxu0
      %470 = vmatprep.mubr.bf16.mxu0 0
      %471 = vmatmul.mubr.bf16.gmra.mxu0 %v317
      %v472 = vpop.f32.mrf.mxu0
      %v473 = vadd.f32 0.0, %v472
      %v474 = vpop.f32.mrf.mxu0
      %v475 = vpop.f32.mrf.mxu0
      %v476 = vadd.f32 0.0, %v475
      %v477 = vpop.f32.mrf.mxu0
      %478 = vmatprep.mubr.bf16.mxu0 0
      %479 = vmatmul.mubr.bf16.gmra.mxu0 %v320
      %v480 = vpop.f32.mrf.mxu0
      %v481 = vadd.f32 0.0, %v480
      %v482 = vpop.f32.mrf.mxu0
      %v483 = vpop.f32.mrf.mxu0
      %v484 = vadd.f32 0.0, %v483
      %v485 = vpop.f32.mrf.mxu0
      %486 = vdwg.mxu0
      %v488 = vsel %vm273, %v204, 0
      %v491 = vsel %vm273, %v205, 0
      %v494 = vsel %vm273, %v206, 0
      %v497 = vsel %vm273, %v207, 0
      %v500 = vsel %vm273, %v208, 0
      %v503 = vsel %vm273, %v209, 0
      %v506 = vsel %vm273, %v210, 0
      %v509 = vsel %vm273, %v211, 0
      %v512 = vsel %vm273, %v212, 0
      %v515 = vsel %vm273, %v213, 0
      %v518 = vsel %vm273, %v214, 0
      %v521 = vsel %vm273, %v215, 0
      %v524 = vsel %vm273, %v216, 0
      %v527 = vsel %vm273, %v217, 0
      %v530 = vsel %vm273, %v218, 0
      %v533 = vsel %vm273, %v219, 0
      %v536 = vsel %vm322, %v221, 0
      %538 = vmatprep.subr.bf16.mxu0 0
      %539 = vmatpush1.bf16.msra.mxu0 0
      %540 = vmatprep.subr.bf16.mxu0 0
      %541 = vmatpush1.bf16.msra.mxu0 0
      %542 = vmatprep.subr.bf16.mxu0 0
      %543 = vmatpush1.bf16.msra.mxu0 0
      %544 = vmatprep.subr.bf16.mxu0 0
      %545 = vmatpush1.bf16.msra.mxu0 0
      %546 = vmatprep.subr.bf16.mxu0 0
      %547 = vmatpush1.bf16.msra.mxu0 0
      %548 = vmatprep.subr.bf16.mxu0 0
      %549 = vmatpush1.bf16.msra.mxu0 0
      %550 = vmatprep.subr.bf16.mxu0 0
      %551 = vmatpush1.bf16.msra.mxu0 0
      %552 = vmatprep.subr.bf16.mxu0 0
      %553 = vmatpush1.bf16.msra.mxu0 %v536
      %554 = vmatprep.subr.bf16.mxu0 0
      %555 = vmatpush2.bf16.msra.mxu0 0
      %556 = vmatprep.subr.bf16.mxu0 0
      %557 = vmatpush2.bf16.msra.mxu0 0
      %558 = vmatprep.subr.bf16.mxu0 0
      %559 = vmatpush2.bf16.msra.mxu0 0
      %560 = vmatprep.subr.bf16.mxu0 0
      %561 = vmatpush2.bf16.msra.mxu0 0
      %562 = vmatprep.subr.bf16.mxu0 0
      %563 = vmatpush2.bf16.msra.mxu0 0
      %564 = vmatprep.subr.bf16.mxu0 0
      %565 = vmatpush2.bf16.msra.mxu0 0
      %566 = vmatprep.subr.bf16.mxu0 0
      %567 = vmatpush2.bf16.msra.mxu0 0
      %568 = vmatprep.subr.bf16.mxu0 0
      %569 = vmatpush2.bf16.msra.mxu0 0
      %570 = vmatprep.mubr.bf16.mxu0 0
      %571 = vmatmul.mubr.bf16.gmra.mxu0 %v488
      %v572 = vpop.f32.mrf.mxu0
      %v573 = vadd.f32 %v361, %v572
      %v574 = vpop.f32.mrf.mxu0
      %v575 = vpop.f32.mrf.mxu0
      %v576 = vadd.f32 %v364, %v575
      %v577 = vpop.f32.mrf.mxu0
      %578 = vmatprep.mubr.bf16.mxu0 0
      %579 = vmatmul.mubr.bf16.gmra.mxu0 %v491
      %v580 = vpop.f32.mrf.mxu0
      %v581 = vadd.f32 %v369, %v580
      %v582 = vpop.f32.mrf.mxu0
      %v583 = vpop.f32.mrf.mxu0
      %v584 = vadd.f32 %v372, %v583
      %v585 = vpop.f32.mrf.mxu0
      %586 = vmatprep.mubr.bf16.mxu0 0
      %587 = vmatmul.mubr.bf16.gmra.mxu0 %v494
      %v588 = vpop.f32.mrf.mxu0
      %v589 = vadd.f32 %v377, %v588
      %v590 = vpop.f32.mrf.mxu0
      %v591 = vpop.f32.mrf.mxu0
      %v592 = vadd.f32 %v380, %v591
      %v593 = vpop.f32.mrf.mxu0
      %594 = vmatprep.mubr.bf16.mxu0 0
      %595 = vmatmul.mubr.bf16.gmra.mxu0 %v497
      %v596 = vpop.f32.mrf.mxu0
      %v597 = vadd.f32 %v385, %v596
      %v598 = vpop.f32.mrf.mxu0
      %v599 = vpop.f32.mrf.mxu0
      %v600 = vadd.f32 %v388, %v599
      %v601 = vpop.f32.mrf.mxu0
      %602 = vmatprep.mubr.bf16.mxu0 0
      %603 = vmatmul.mubr.bf16.gmra.mxu0 %v500
      %v604 = vpop.f32.mrf.mxu0
      %v605 = vadd.f32 %v393, %v604
      %v606 = vpop.f32.mrf.mxu0
      %v607 = vpop.f32.mrf.mxu0
      %v608 = vadd.f32 %v396, %v607
      %v609 = vpop.f32.mrf.mxu0
      %610 = vmatprep.mubr.bf16.mxu0 0
      %611 = vmatmul.mubr.bf16.gmra.mxu0 %v503
      %v612 = vpop.f32.mrf.mxu0
      %v613 = vadd.f32 %v401, %v612
      %v614 = vpop.f32.mrf.mxu0
      %v615 = vpop.f32.mrf.mxu0
      %v616 = vadd.f32 %v404, %v615
      %v617 = vpop.f32.mrf.mxu0
      %618 = vmatprep.mubr.bf16.mxu0 0
      %619 = vmatmul.mubr.bf16.gmra.mxu0 %v506
      %v620 = vpop.f32.mrf.mxu0
      %v621 = vadd.f32 %v409, %v620
      %v622 = vpop.f32.mrf.mxu0
      %v623 = vpop.f32.mrf.mxu0
      %v624 = vadd.f32 %v412, %v623
      %v625 = vpop.f32.mrf.mxu0
      %626 = vmatprep.mubr.bf16.mxu0 0
      %627 = vmatmul.mubr.bf16.gmra.mxu0 %v509
      %v628 = vpop.f32.mrf.mxu0
      %v629 = vadd.f32 %v417, %v628
      %v630 = vpop.f32.mrf.mxu0
      %v631 = vpop.f32.mrf.mxu0
      %v632 = vadd.f32 %v420, %v631
      %v633 = vpop.f32.mrf.mxu0
      %634 = vmatprep.mubr.bf16.mxu0 0
      %635 = vmatmul.mubr.bf16.gmra.mxu0 %v512
      %v636 = vpop.f32.mrf.mxu0
      %v637 = vadd.f32 %v425, %v636
      %v638 = vpop.f32.mrf.mxu0
      %v639 = vpop.f32.mrf.mxu0
      %v640 = vadd.f32 %v428, %v639
      %v641 = vpop.f32.mrf.mxu0
      %642 = vmatprep.mubr.bf16.mxu0 0
      %643 = vmatmul.mubr.bf16.gmra.mxu0 %v515
      %v644 = vpop.f32.mrf.mxu0
      %v645 = vadd.f32 %v433, %v644
      %v646 = vpop.f32.mrf.mxu0
      %v647 = vpop.f32.mrf.mxu0
      %v648 = vadd.f32 %v436, %v647
      %v649 = vpop.f32.mrf.mxu0
      %650 = vmatprep.mubr.bf16.mxu0 0
      %651 = vmatmul.mubr.bf16.gmra.mxu0 %v518
      %v652 = vpop.f32.mrf.mxu0
      %v653 = vadd.f32 %v441, %v652
      %v654 = vpop.f32.mrf.mxu0
      %v655 = vpop.f32.mrf.mxu0
      %v656 = vadd.f32 %v444, %v655
      %v657 = vpop.f32.mrf.mxu0
      %658 = vmatprep.mubr.bf16.mxu0 0
      %659 = vmatmul.mubr.bf16.gmra.mxu0 %v521
      %v660 = vpop.f32.mrf.mxu0
      %v661 = vadd.f32 %v449, %v660
      %v662 = vpop.f32.mrf.mxu0
      %v663 = vpop.f32.mrf.mxu0
      %v664 = vadd.f32 %v452, %v663
      %v665 = vpop.f32.mrf.mxu0
      %666 = vmatprep.mubr.bf16.mxu0 0
      %667 = vmatmul.mubr.bf16.gmra.mxu0 %v524
      %v668 = vpop.f32.mrf.mxu0
      %v669 = vadd.f32 %v457, %v668
      %v670 = vpop.f32.mrf.mxu0
      %v671 = vpop.f32.mrf.mxu0
      %v672 = vadd.f32 %v460, %v671
      %v673 = vpop.f32.mrf.mxu0
      %674 = vmatprep.mubr.bf16.mxu0 0
      %675 = vmatmul.mubr.bf16.gmra.mxu0 %v527
      %v676 = vpop.f32.mrf.mxu0
      %v677 = vadd.f32 %v465, %v676
      %v678 = vpop.f32.mrf.mxu0
      %v679 = vpop.f32.mrf.mxu0
      %v680 = vadd.f32 %v468, %v679
      %v681 = vpop.f32.mrf.mxu0
      %682 = vmatprep.mubr.bf16.mxu0 0
      %683 = vmatmul.mubr.bf16.gmra.mxu0 %v530
      %v684 = vpop.f32.mrf.mxu0
      %v685 = vadd.f32 %v473, %v684
      %v686 = vpop.f32.mrf.mxu0
      %v687 = vpop.f32.mrf.mxu0
      %v688 = vadd.f32 %v476, %v687
      %v689 = vpop.f32.mrf.mxu0
      %690 = vmatprep.mubr.bf16.mxu0 0
      %691 = vmatmul.mubr.bf16.gmra.mxu0 %v533
      %v692 = vpop.f32.mrf.mxu0
      %v693 = vadd.f32 %v481, %v692
      %v694 = vpop.f32.mrf.mxu0
      %v695 = vpop.f32.mrf.mxu0
      %v696 = vadd.f32 %v484, %v695
      %v697 = vpop.f32.mrf.mxu0
      %698 = vdwg.mxu0
      %v699 = vld [vmem:[%s165 + $0x2] sm:$0xff]
      %v700 = vld [vmem:[%s165 + $0xa] sm:$0xff]
      %v701 = vld [vmem:[%s165 + $0x1a] sm:$0xff]
      %v702 = vld [vmem:[%s165 + $0x22] sm:$0xff]
      %v703 = vld [vmem:[%s165 + $0x32] sm:$0xff]
      %v704 = vld [vmem:[%s165 + $0x3a] sm:$0xff]
      %v705 = vld [vmem:[%s165 + $0x4a] sm:$0xff]
      %v706 = vld [vmem:[%s165 + $0x52] sm:$0xff]
      %v707 = vld [vmem:[%s165 + $0x62] sm:$0xff]
      %v708 = vld [vmem:[%s165 + $0x6a] sm:$0xff]
      %v709 = vld [vmem:[%s165 + $0x7a] sm:$0xff]
      %v710 = vld [vmem:[%s165 + $0x82] sm:$0xff]
      %v711 = vld [vmem:[%s165 + $0x92] sm:$0xff]
      %v712 = vld [vmem:[%s165 + $0x9a] sm:$0xff]
      %v713 = vld [vmem:[%s165 + $0xaa] sm:$0xff]
      %v714 = vld [vmem:[%s165 + $0xb2] sm:$0xff]
      %v715 = vld [vmem:[%s165 + $0xc2] sm:$0xff]
      %v716 = vld [vmem:[%s165 + $0xca] sm:$0xff]
      %v717 = vld [vmem:[%s165 + $0xda] sm:$0xff]
      %v718 = vld [vmem:[%s165 + $0xe2] sm:$0xff]
      %v719 = vld [vmem:[%s165 + $0xf2] sm:$0xff]
      %v720 = vld [vmem:[%s165 + $0xfa] sm:$0xff]
      %v721 = vld [vmem:[%s165 + $0x10a] sm:$0xff]
      %v722 = vld [vmem:[%s165 + $0x112] sm:$0xff]
      %v723 = vld [vmem:[%s165 + $0x122] sm:$0xff]
      %v724 = vld [vmem:[%s165 + $0x12a] sm:$0xff]
      %v725 = vld [vmem:[%s165 + $0x13a] sm:$0xff]
      %v726 = vld [vmem:[%s165 + $0x142] sm:$0xff]
      %v727 = vld [vmem:[%s165 + $0x152] sm:$0xff]
      %v728 = vld [vmem:[%s165 + $0x15a] sm:$0xff]
      %v729 = vld [vmem:[%s165 + $0x16a] sm:$0xff]
      %v730 = vld [vmem:[%s165 + $0x172] sm:$0xff]
      %v731 = vpack.c.bf16 %v700, %v699
      %v732 = vpack.c.bf16 %v702, %v701
      %v733 = vpack.c.bf16 %v704, %v703
      %v734 = vpack.c.bf16 %v706, %v705
      %v735 = vpack.c.bf16 %v708, %v707
      %v736 = vpack.c.bf16 %v710, %v709
      %v737 = vpack.c.bf16 %v712, %v711
      %v738 = vpack.c.bf16 %v714, %v713
      %v739 = vpack.c.bf16 %v716, %v715
      %v740 = vpack.c.bf16 %v718, %v717
      %v741 = vpack.c.bf16 %v720, %v719
      %v742 = vpack.c.bf16 %v722, %v721
      %v743 = vpack.c.bf16 %v724, %v723
      %v744 = vpack.c.bf16 %v726, %v725
      %v745 = vpack.c.bf16 %v728, %v727
      %v746 = vpack.c.bf16 %v730, %v729
      %s747 = scalar_lea.vmem %s1, 8
      %v748 = vld [vmem:[%s747] sm:$0xf]
      %v749 = vpack.c.bf16 %v748, %v748
      %v751 = vsel %vm273, %v731, 0
      %v754 = vsel %vm273, %v732, 0
      %v757 = vsel %vm273, %v733, 0
      %v760 = vsel %vm273, %v734, 0
      %v763 = vsel %vm273, %v735, 0
      %v766 = vsel %vm273, %v736, 0
      %v769 = vsel %vm273, %v737, 0
      %v772 = vsel %vm273, %v738, 0
      %v775 = vsel %vm273, %v739, 0
      %v778 = vsel %vm273, %v740, 0
      %v781 = vsel %vm273, %v741, 0
      %v784 = vsel %vm273, %v742, 0
      %v787 = vsel %vm273, %v743, 0
      %v790 = vsel %vm273, %v744, 0
      %v793 = vsel %vm273, %v745, 0
      %v796 = vsel %vm273, %v746, 0
      %v799 = vsel %vm322, %v749, 0
      %801 = vmatprep.subr.bf16.mxu0 0
      %802 = vmatpush1.bf16.msra.mxu0 0
      %803 = vmatprep.subr.bf16.mxu0 0
      %804 = vmatpush1.bf16.msra.mxu0 0
      %805 = vmatprep.subr.bf16.mxu0 0
      %806 = vmatpush1.bf16.msra.mxu0 0
      %807 = vmatprep.subr.bf16.mxu0 0
      %808 = vmatpush1.bf16.msra.mxu0 0
      %809 = vmatprep.subr.bf16.mxu0 0
      %810 = vmatpush1.bf16.msra.mxu0 0
      %811 = vmatprep.subr.bf16.mxu0 0
      %812 = vmatpush1.bf16.msra.mxu0 0
      %813 = vmatprep.subr.bf16.mxu0 0
      %814 = vmatpush1.bf16.msra.mxu0 0
      %815 = vmatprep.subr.bf16.mxu0 0
      %816 = vmatpush1.bf16.msra.mxu0 %v799
      %817 = vmatprep.subr.bf16.mxu0 0
      %818 = vmatpush2.bf16.msra.mxu0 0
      %819 = vmatprep.subr.bf16.mxu0 0
      %820 = vmatpush2.bf16.msra.mxu0 0
      %821 = vmatprep.subr.bf16.mxu0 0
      %822 = vmatpush2.bf16.msra.mxu0 0
      %823 = vmatprep.subr.bf16.mxu0 0
      %824 = vmatpush2.bf16.msra.mxu0 0
      %825 = vmatprep.subr.bf16.mxu0 0
      %826 = vmatpush2.bf16.msra.mxu0 0
      %827 = vmatprep.subr.bf16.mxu0 0
      %828 = vmatpush2.bf16.msra.mxu0 0
      %829 = vmatprep.subr.bf16.mxu0 0
      %830 = vmatpush2.bf16.msra.mxu0 0
      %831 = vmatprep.subr.bf16.mxu0 0
      %832 = vmatpush2.bf16.msra.mxu0 0
      %833 = vmatprep.mubr.bf16.mxu0 0
      %834 = vmatmul.mubr.bf16.gmra.mxu0 %v751
      %v835 = vpop.f32.mrf.mxu0
      %v836 = vadd.f32 0.0, %v835
      %v837 = vpop.f32.mrf.mxu0
      %v838 = vpop.f32.mrf.mxu0
      %v839 = vadd.f32 0.0, %v838
      %v840 = vpop.f32.mrf.mxu0
      %841 = vmatprep.mubr.bf16.mxu0 0
      %842 = vmatmul.mubr.bf16.gmra.mxu0 %v754
      %v843 = vpop.f32.mrf.mxu0
      %v844 = vadd.f32 0.0, %v843
      %v845 = vpop.f32.mrf.mxu0
      %v846 = vpop.f32.mrf.mxu0
      %v847 = vadd.f32 0.0, %v846
      %v848 = vpop.f32.mrf.mxu0
      %849 = vmatprep.mubr.bf16.mxu0 0
      %850 = vmatmul.mubr.bf16.gmra.mxu0 %v757
      %v851 = vpop.f32.mrf.mxu0
      %v852 = vadd.f32 0.0, %v851
      %v853 = vpop.f32.mrf.mxu0
      %v854 = vpop.f32.mrf.mxu0
      %v855 = vadd.f32 0.0, %v854
      %v856 = vpop.f32.mrf.mxu0
      %857 = vmatprep.mubr.bf16.mxu0 0
      %858 = vmatmul.mubr.bf16.gmra.mxu0 %v760
      %v859 = vpop.f32.mrf.mxu0
      %v860 = vadd.f32 0.0, %v859
      %v861 = vpop.f32.mrf.mxu0
      %v862 = vpop.f32.mrf.mxu0
      %v863 = vadd.f32 0.0, %v862
      %v864 = vpop.f32.mrf.mxu0
      %865 = vmatprep.mubr.bf16.mxu0 0
      %866 = vmatmul.mubr.bf16.gmra.mxu0 %v763
      %v867 = vpop.f32.mrf.mxu0
      %v868 = vadd.f32 0.0, %v867
      %v869 = vpop.f32.mrf.mxu0
      %v870 = vpop.f32.mrf.mxu0
      %v871 = vadd.f32 0.0, %v870
      %v872 = vpop.f32.mrf.mxu0
      %873 = vmatprep.mubr.bf16.mxu0 0
      %874 = vmatmul.mubr.bf16.gmra.mxu0 %v766
      %v875 = vpop.f32.mrf.mxu0
      %v876 = vadd.f32 0.0, %v875
      %v877 = vpop.f32.mrf.mxu0
      %v878 = vpop.f32.mrf.mxu0
      %v879 = vadd.f32 0.0, %v878
      %v880 = vpop.f32.mrf.mxu0
      %881 = vmatprep.mubr.bf16.mxu0 0
      %882 = vmatmul.mubr.bf16.gmra.mxu0 %v769
      %v883 = vpop.f32.mrf.mxu0
      %v884 = vadd.f32 0.0, %v883
      %v885 = vpop.f32.mrf.mxu0
      %v886 = vpop.f32.mrf.mxu0
      %v887 = vadd.f32 0.0, %v886
      %v888 = vpop.f32.mrf.mxu0
      %889 = vmatprep.mubr.bf16.mxu0 0
      %890 = vmatmul.mubr.bf16.gmra.mxu0 %v772
      %v891 = vpop.f32.mrf.mxu0
      %v892 = vadd.f32 0.0, %v891
      %v893 = vpop.f32.mrf.mxu0
      %v894 = vpop.f32.mrf.mxu0
      %v895 = vadd.f32 0.0, %v894
      %v896 = vpop.f32.mrf.mxu0
      %897 = vmatprep.mubr.bf16.mxu0 0
      %898 = vmatmul.mubr.bf16.gmra.mxu0 %v775
      %v899 = vpop.f32.mrf.mxu0
      %v900 = vadd.f32 0.0, %v899
      %v901 = vpop.f32.mrf.mxu0
      %v902 = vpop.f32.mrf.mxu0
      %v903 = vadd.f32 0.0, %v902
      %v904 = vpop.f32.mrf.mxu0
      %905 = vmatprep.mubr.bf16.mxu0 0
      %906 = vmatmul.mubr.bf16.gmra.mxu0 %v778
      %v907 = vpop.f32.mrf.mxu0
      %v908 = vadd.f32 0.0, %v907
      %v909 = vpop.f32.mrf.mxu0
      %v910 = vpop.f32.mrf.mxu0
      %v911 = vadd.f32 0.0, %v910
      %v912 = vpop.f32.mrf.mxu0
      %913 = vmatprep.mubr.bf16.mxu0 0
      %914 = vmatmul.mubr.bf16.gmra.mxu0 %v781
      %v915 = vpop.f32.mrf.mxu0
      %v916 = vadd.f32 0.0, %v915
      %v917 = vpop.f32.mrf.mxu0
      %v918 = vpop.f32.mrf.mxu0
      %v919 = vadd.f32 0.0, %v918
      %v920 = vpop.f32.mrf.mxu0
      %921 = vmatprep.mubr.bf16.mxu0 0
      %922 = vmatmul.mubr.bf16.gmra.mxu0 %v784
      %v923 = vpop.f32.mrf.mxu0
      %v924 = vadd.f32 0.0, %v923
      %v925 = vpop.f32.mrf.mxu0
      %v926 = vpop.f32.mrf.mxu0
      %v927 = vadd.f32 0.0, %v926
      %v928 = vpop.f32.mrf.mxu0
      %929 = vmatprep.mubr.bf16.mxu0 0
      %930 = vmatmul.mubr.bf16.gmra.mxu0 %v787
      %v931 = vpop.f32.mrf.mxu0
      %v932 = vadd.f32 0.0, %v931
      %v933 = vpop.f32.mrf.mxu0
      %v934 = vpop.f32.mrf.mxu0
      %v935 = vadd.f32 0.0, %v934
      %v936 = vpop.f32.mrf.mxu0
      %937 = vmatprep.mubr.bf16.mxu0 0
      %938 = vmatmul.mubr.bf16.gmra.mxu0 %v790
      %v939 = vpop.f32.mrf.mxu0
      %v940 = vadd.f32 0.0, %v939
      %v941 = vpop.f32.mrf.mxu0
      %v942 = vpop.f32.mrf.mxu0
      %v943 = vadd.f32 0.0, %v942
      %v944 = vpop.f32.mrf.mxu0
      %945 = vmatprep.mubr.bf16.mxu0 0
      %946 = vmatmul.mubr.bf16.gmra.mxu0 %v793
      %v947 = vpop.f32.mrf.mxu0
      %v948 = vadd.f32 0.0, %v947
      %v949 = vpop.f32.mrf.mxu0
      %v950 = vpop.f32.mrf.mxu0
      %v951 = vadd.f32 0.0, %v950
      %v952 = vpop.f32.mrf.mxu0
      %953 = vmatprep.mubr.bf16.mxu0 0
      %954 = vmatmul.mubr.bf16.gmra.mxu0 %v796
      %v955 = vpop.f32.mrf.mxu0
      %v956 = vadd.f32 0.0, %v955
      %v957 = vpop.f32.mrf.mxu0
      %v958 = vpop.f32.mrf.mxu0
      %v959 = vadd.f32 0.0, %v958
      %v960 = vpop.f32.mrf.mxu0
      %961 = vdwg.mxu0
      %v962 = vadd.f32 %v573, %v836
      %v963 = vadd.f32 %v576, %v839
      %v964 = vadd.f32 %v581, %v844
      %v965 = vadd.f32 %v584, %v847
      %v966 = vadd.f32 %v589, %v852
      %v967 = vadd.f32 %v592, %v855
      %v968 = vadd.f32 %v597, %v860
      %v969 = vadd.f32 %v600, %v863
      %v970 = vadd.f32 %v605, %v868
      %v971 = vadd.f32 %v608, %v871
      %v972 = vadd.f32 %v613, %v876
      %v973 = vadd.f32 %v616, %v879
      %v974 = vadd.f32 %v621, %v884
      %v975 = vadd.f32 %v624, %v887
      %v976 = vadd.f32 %v629, %v892
      %v977 = vadd.f32 %v632, %v895
      %v978 = vadd.f32 %v637, %v900
      %v979 = vadd.f32 %v640, %v903
      %v980 = vadd.f32 %v645, %v908
      %v981 = vadd.f32 %v648, %v911
      %v982 = vadd.f32 %v653, %v916
      %v983 = vadd.f32 %v656, %v919
      %v984 = vadd.f32 %v661, %v924
      %v985 = vadd.f32 %v664, %v927
      %v986 = vadd.f32 %v669, %v932
      %v987 = vadd.f32 %v672, %v935
      %v988 = vadd.f32 %v677, %v940
      %v989 = vadd.f32 %v680, %v943
      %v990 = vadd.f32 %v685, %v948
      %v991 = vadd.f32 %v688, %v951
      %v992 = vadd.f32 %v693, %v956
      %v993 = vadd.f32 %v696, %v959
      %s994 = scalar_lea.vmem %s165, 24
      %v995 = vld [vmem:[%s994] sm:$0xff]
      %v996 = vld [vmem:[%s994 + $0x8] sm:$0xff]
      %v997 = vld [vmem:[%s994 + $0x18] sm:$0xff]
      %v998 = vld [vmem:[%s994 + $0x20] sm:$0xff]
      %v999 = vld [vmem:[%s994 + $0x30] sm:$0xff]
      %v1000 = vld [vmem:[%s994 + $0x38] sm:$0xff]
      %v1001 = vld [vmem:[%s994 + $0x48] sm:$0xff]
      %v1002 = vld [vmem:[%s994 + $0x50] sm:$0xff]
      %v1003 = vld [vmem:[%s994 + $0x60] sm:$0xff]
      %v1004 = vld [vmem:[%s994 + $0x68] sm:$0xff]
      %v1005 = vld [vmem:[%s994 + $0x78] sm:$0xff]
      %v1006 = vld [vmem:[%s994 + $0x80] sm:$0xff]
      %v1007 = vld [vmem:[%s994 + $0x90] sm:$0xff]
      %v1008 = vld [vmem:[%s994 + $0x98] sm:$0xff]
      %v1009 = vld [vmem:[%s994 + $0xa8] sm:$0xff]
      %v1010 = vld [vmem:[%s994 + $0xb0] sm:$0xff]
      %v1011 = vld [vmem:[%s994 + $0xc0] sm:$0xff]
      %v1012 = vld [vmem:[%s994 + $0xc8] sm:$0xff]
      %v1013 = vld [vmem:[%s994 + $0xd8] sm:$0xff]
      %v1014 = vld [vmem:[%s994 + $0xe0] sm:$0xff]
      %v1015 = vld [vmem:[%s994 + $0xf0] sm:$0xff]
      %v1016 = vld [vmem:[%s994 + $0xf8] sm:$0xff]
      %v1017 = vld [vmem:[%s994 + $0x108] sm:$0xff]
      %v1018 = vld [vmem:[%s994 + $0x110] sm:$0xff]
      %v1019 = vld [vmem:[%s994 + $0x120] sm:$0xff]
      %v1020 = vld [vmem:[%s994 + $0x128] sm:$0xff]
      %v1021 = vld [vmem:[%s994 + $0x138] sm:$0xff]
      %v1022 = vld [vmem:[%s994 + $0x140] sm:$0xff]
      %v1023 = vld [vmem:[%s994 + $0x150] sm:$0xff]
      %v1024 = vld [vmem:[%s994 + $0x158] sm:$0xff]
      %v1025 = vld [vmem:[%s994 + $0x168] sm:$0xff]
      %v1026 = vld [vmem:[%s994 + $0x170] sm:$0xff]
      %v1027 = vpack.c.bf16 %v996, %v995
      %v1028 = vpack.c.bf16 %v998, %v997
      %v1029 = vpack.c.bf16 %v1000, %v999
      %v1030 = vpack.c.bf16 %v1002, %v1001
      %v1031 = vpack.c.bf16 %v1004, %v1003
      %v1032 = vpack.c.bf16 %v1006, %v1005
      %v1033 = vpack.c.bf16 %v1008, %v1007
      %v1034 = vpack.c.bf16 %v1010, %v1009
      %v1035 = vpack.c.bf16 %v1012, %v1011
      %v1036 = vpack.c.bf16 %v1014, %v1013
      %v1037 = vpack.c.bf16 %v1016, %v1015
      %v1038 = vpack.c.bf16 %v1018, %v1017
      %v1039 = vpack.c.bf16 %v1020, %v1019
      %v1040 = vpack.c.bf16 %v1022, %v1021
      %v1041 = vpack.c.bf16 %v1024, %v1023
      %v1042 = vpack.c.bf16 %v1026, %v1025
      %s1043 = scalar_lea.vmem %s1, 12
      %v1044 = vld [vmem:[%s1043] sm:$0xf]
      %v1045 = vpack.c.bf16 %v1044, %v1044
      %v1047 = vsel %vm273, %v1027, 0
      %v1050 = vsel %vm273, %v1028, 0
      %v1053 = vsel %vm273, %v1029, 0
      %v1056 = vsel %vm273, %v1030, 0
      %v1059 = vsel %vm273, %v1031, 0
      %v1062 = vsel %vm273, %v1032, 0
      %v1065 = vsel %vm273, %v1033, 0
      %v1068 = vsel %vm273, %v1034, 0
      %v1071 = vsel %vm273, %v1035, 0
      %v1074 = vsel %vm273, %v1036, 0
      %v1077 = vsel %vm273, %v1037, 0
      %v1080 = vsel %vm273, %v1038, 0
      %v1083 = vsel %vm273, %v1039, 0
      %v1086 = vsel %vm273, %v1040, 0
      %v1089 = vsel %vm273, %v1041, 0
      %v1092 = vsel %vm273, %v1042, 0
      %v1095 = vsel %vm322, %v1045, 0
      %1097 = vmatprep.subr.bf16.mxu0 0
      %1098 = vmatpush1.bf16.msra.mxu0 0
      %1099 = vmatprep.subr.bf16.mxu0 0
      %1100 = vmatpush1.bf16.msra.mxu0 0
      %1101 = vmatprep.subr.bf16.mxu0 0
      %1102 = vmatpush1.bf16.msra.mxu0 0
      %1103 = vmatprep.subr.bf16.mxu0 0
      %1104 = vmatpush1.bf16.msra.mxu0 0
      %1105 = vmatprep.subr.bf16.mxu0 0
      %1106 = vmatpush1.bf16.msra.mxu0 0
      %1107 = vmatprep.subr.bf16.mxu0 0
      %1108 = vmatpush1.bf16.msra.mxu0 0
      %1109 = vmatprep.subr.bf16.mxu0 0
      %1110 = vmatpush1.bf16.msra.mxu0 0
      %1111 = vmatprep.subr.bf16.mxu0 0
      %1112 = vmatpush1.bf16.msra.mxu0 %v1095
      %1113 = vmatprep.subr.bf16.mxu0 0
      %1114 = vmatpush2.bf16.msra.mxu0 0
      %1115 = vmatprep.subr.bf16.mxu0 0
      %1116 = vmatpush2.bf16.msra.mxu0 0
      %1117 = vmatprep.subr.bf16.mxu0 0
      %1118 = vmatpush2.bf16.msra.mxu0 0
      %1119 = vmatprep.subr.bf16.mxu0 0
      %1120 = vmatpush2.bf16.msra.mxu0 0
      %1121 = vmatprep.subr.bf16.mxu0 0
      %1122 = vmatpush2.bf16.msra.mxu0 0
      %1123 = vmatprep.subr.bf16.mxu0 0
      %1124 = vmatpush2.bf16.msra.mxu0 0
      %1125 = vmatprep.subr.bf16.mxu0 0
      %1126 = vmatpush2.bf16.msra.mxu0 0
      %1127 = vmatprep.subr.bf16.mxu0 0
      %1128 = vmatpush2.bf16.msra.mxu0 0
      %1129 = vmatprep.mubr.bf16.mxu0 0
      %1130 = vmatmul.mubr.bf16.gmra.mxu0 %v1047
      %v1131 = vpop.f32.mrf.mxu0
      %v1132 = vadd.f32 0.0, %v1131
      %v1133 = vpop.f32.mrf.mxu0
      %v1134 = vpop.f32.mrf.mxu0
      %v1135 = vadd.f32 0.0, %v1134
      %v1136 = vpop.f32.mrf.mxu0
      %1137 = vmatprep.mubr.bf16.mxu0 0
      %1138 = vmatmul.mubr.bf16.gmra.mxu0 %v1050
      %v1139 = vpop.f32.mrf.mxu0
      %v1140 = vadd.f32 0.0, %v1139
      %v1141 = vpop.f32.mrf.mxu0
      %v1142 = vpop.f32.mrf.mxu0
      %v1143 = vadd.f32 0.0, %v1142
      %v1144 = vpop.f32.mrf.mxu0
      %1145 = vmatprep.mubr.bf16.mxu0 0
      %1146 = vmatmul.mubr.bf16.gmra.mxu0 %v1053
      %v1147 = vpop.f32.mrf.mxu0
      %v1148 = vadd.f32 0.0, %v1147
      %v1149 = vpop.f32.mrf.mxu0
      %v1150 = vpop.f32.mrf.mxu0
      %v1151 = vadd.f32 0.0, %v1150
      %v1152 = vpop.f32.mrf.mxu0
      %1153 = vmatprep.mubr.bf16.mxu0 0
      %1154 = vmatmul.mubr.bf16.gmra.mxu0 %v1056
      %v1155 = vpop.f32.mrf.mxu0
      %v1156 = vadd.f32 0.0, %v1155
      %v1157 = vpop.f32.mrf.mxu0
      %v1158 = vpop.f32.mrf.mxu0
      %v1159 = vadd.f32 0.0, %v1158
      %v1160 = vpop.f32.mrf.mxu0
      %1161 = vmatprep.mubr.bf16.mxu0 0
      %1162 = vmatmul.mubr.bf16.gmra.mxu0 %v1059
      %v1163 = vpop.f32.mrf.mxu0
      %v1164 = vadd.f32 0.0, %v1163
      %v1165 = vpop.f32.mrf.mxu0
      %v1166 = vpop.f32.mrf.mxu0
      %v1167 = vadd.f32 0.0, %v1166
      %v1168 = vpop.f32.mrf.mxu0
      %1169 = vmatprep.mubr.bf16.mxu0 0
      %1170 = vmatmul.mubr.bf16.gmra.mxu0 %v1062
      %v1171 = vpop.f32.mrf.mxu0
      %v1172 = vadd.f32 0.0, %v1171
      %v1173 = vpop.f32.mrf.mxu0
      %v1174 = vpop.f32.mrf.mxu0
      %v1175 = vadd.f32 0.0, %v1174
      %v1176 = vpop.f32.mrf.mxu0
      %1177 = vmatprep.mubr.bf16.mxu0 0
      %1178 = vmatmul.mubr.bf16.gmra.mxu0 %v1065
      %v1179 = vpop.f32.mrf.mxu0
      %v1180 = vadd.f32 0.0, %v1179
      %v1181 = vpop.f32.mrf.mxu0
      %v1182 = vpop.f32.mrf.mxu0
      %v1183 = vadd.f32 0.0, %v1182
      %v1184 = vpop.f32.mrf.mxu0
      %1185 = vmatprep.mubr.bf16.mxu0 0
      %1186 = vmatmul.mubr.bf16.gmra.mxu0 %v1068
      %v1187 = vpop.f32.mrf.mxu0
      %v1188 = vadd.f32 0.0, %v1187
      %v1189 = vpop.f32.mrf.mxu0
      %v1190 = vpop.f32.mrf.mxu0
      %v1191 = vadd.f32 0.0, %v1190
      %v1192 = vpop.f32.mrf.mxu0
      %1193 = vmatprep.mubr.bf16.mxu0 0
      %1194 = vmatmul.mubr.bf16.gmra.mxu0 %v1071
      %v1195 = vpop.f32.mrf.mxu0
      %v1196 = vadd.f32 0.0, %v1195
      %v1197 = vpop.f32.mrf.mxu0
      %v1198 = vpop.f32.mrf.mxu0
      %v1199 = vadd.f32 0.0, %v1198
      %v1200 = vpop.f32.mrf.mxu0
      %1201 = vmatprep.mubr.bf16.mxu0 0
      %1202 = vmatmul.mubr.bf16.gmra.mxu0 %v1074
      %v1203 = vpop.f32.mrf.mxu0
      %v1204 = vadd.f32 0.0, %v1203
      %v1205 = vpop.f32.mrf.mxu0
      %v1206 = vpop.f32.mrf.mxu0
      %v1207 = vadd.f32 0.0, %v1206
      %v1208 = vpop.f32.mrf.mxu0
      %1209 = vmatprep.mubr.bf16.mxu0 0
      %1210 = vmatmul.mubr.bf16.gmra.mxu0 %v1077
      %v1211 = vpop.f32.mrf.mxu0
      %v1212 = vadd.f32 0.0, %v1211
      %v1213 = vpop.f32.mrf.mxu0
      %v1214 = vpop.f32.mrf.mxu0
      %v1215 = vadd.f32 0.0, %v1214
      %v1216 = vpop.f32.mrf.mxu0
      %1217 = vmatprep.mubr.bf16.mxu0 0
      %1218 = vmatmul.mubr.bf16.gmra.mxu0 %v1080
      %v1219 = vpop.f32.mrf.mxu0
      %v1220 = vadd.f32 0.0, %v1219
      %v1221 = vpop.f32.mrf.mxu0
      %v1222 = vpop.f32.mrf.mxu0
      %v1223 = vadd.f32 0.0, %v1222
      %v1224 = vpop.f32.mrf.mxu0
      %1225 = vmatprep.mubr.bf16.mxu0 0
      %1226 = vmatmul.mubr.bf16.gmra.mxu0 %v1083
      %v1227 = vpop.f32.mrf.mxu0
      %v1228 = vadd.f32 0.0, %v1227
      %v1229 = vpop.f32.mrf.mxu0
      %v1230 = vpop.f32.mrf.mxu0
      %v1231 = vadd.f32 0.0, %v1230
      %v1232 = vpop.f32.mrf.mxu0
      %1233 = vmatprep.mubr.bf16.mxu0 0
      %1234 = vmatmul.mubr.bf16.gmra.mxu0 %v1086
      %v1235 = vpop.f32.mrf.mxu0
      %v1236 = vadd.f32 0.0, %v1235
      %v1237 = vpop.f32.mrf.mxu0
      %v1238 = vpop.f32.mrf.mxu0
      %v1239 = vadd.f32 0.0, %v1238
      %v1240 = vpop.f32.mrf.mxu0
      %1241 = vmatprep.mubr.bf16.mxu0 0
      %1242 = vmatmul.mubr.bf16.gmra.mxu0 %v1089
      %v1243 = vpop.f32.mrf.mxu0
      %v1244 = vadd.f32 0.0, %v1243
      %v1245 = vpop.f32.mrf.mxu0
      %v1246 = vpop.f32.mrf.mxu0
      %v1247 = vadd.f32 0.0, %v1246
      %v1248 = vpop.f32.mrf.mxu0
      %1249 = vmatprep.mubr.bf16.mxu0 0
      %1250 = vmatmul.mubr.bf16.gmra.mxu0 %v1092
      %v1251 = vpop.f32.mrf.mxu0
      %v1252 = vadd.f32 0.0, %v1251
      %v1253 = vpop.f32.mrf.mxu0
      %v1254 = vpop.f32.mrf.mxu0
      %v1255 = vadd.f32 0.0, %v1254
      %v1256 = vpop.f32.mrf.mxu0
      %1257 = vdwg.mxu0
      %v1258 = vadd.f32 %v962, %v1132
      %v1259 = vadd.f32 %v963, %v1135
      %v1260 = vadd.f32 %v964, %v1140
      %v1261 = vadd.f32 %v965, %v1143
      %v1262 = vadd.f32 %v966, %v1148
      %v1263 = vadd.f32 %v967, %v1151
      %v1264 = vadd.f32 %v968, %v1156
      %v1265 = vadd.f32 %v969, %v1159
      %v1266 = vadd.f32 %v970, %v1164
      %v1267 = vadd.f32 %v971, %v1167
      %v1268 = vadd.f32 %v972, %v1172
      %v1269 = vadd.f32 %v973, %v1175
      %v1270 = vadd.f32 %v974, %v1180
      %v1271 = vadd.f32 %v975, %v1183
      %v1272 = vadd.f32 %v976, %v1188
      %v1273 = vadd.f32 %v977, %v1191
      %v1274 = vadd.f32 %v978, %v1196
      %v1275 = vadd.f32 %v979, %v1199
      %v1276 = vadd.f32 %v980, %v1204
      %v1277 = vadd.f32 %v981, %v1207
      %v1278 = vadd.f32 %v982, %v1212
      %v1279 = vadd.f32 %v983, %v1215
      %v1280 = vadd.f32 %v984, %v1220
      %v1281 = vadd.f32 %v985, %v1223
      %v1282 = vadd.f32 %v986, %v1228
      %v1283 = vadd.f32 %v987, %v1231
      %v1284 = vadd.f32 %v988, %v1236
      %v1285 = vadd.f32 %v989, %v1239
      %v1286 = vadd.f32 %v990, %v1244
      %v1287 = vadd.f32 %v991, %v1247
      %v1288 = vadd.f32 %v992, %v1252
      %v1289 = vadd.f32 %v993, %v1255
      %v1290 = vld [vmem:[%s994 + $0x1] sm:$0xff]
      %v1291 = vld [vmem:[%s994 + $0x9] sm:$0xff]
      %v1292 = vld [vmem:[%s994 + $0x19] sm:$0xff]
      %v1293 = vld [vmem:[%s994 + $0x21] sm:$0xff]
      %v1294 = vld [vmem:[%s994 + $0x31] sm:$0xff]
      %v1295 = vld [vmem:[%s994 + $0x39] sm:$0xff]
      %v1296 = vld [vmem:[%s994 + $0x49] sm:$0xff]
      %v1297 = vld [vmem:[%s994 + $0x51] sm:$0xff]
      %v1298 = vld [vmem:[%s994 + $0x61] sm:$0xff]
      %v1299 = vld [vmem:[%s994 + $0x69] sm:$0xff]
      %v1300 = vld [vmem:[%s994 + $0x79] sm:$0xff]
      %v1301 = vld [vmem:[%s994 + $0x81] sm:$0xff]
      %v1302 = vld [vmem:[%s994 + $0x91] sm:$0xff]
      %v1303 = vld [vmem:[%s994 + $0x99] sm:$0xff]
      %v1304 = vld [vmem:[%s994 + $0xa9] sm:$0xff]
      %v1305 = vld [vmem:[%s994 + $0xb1] sm:$0xff]
      %v1306 = vld [vmem:[%s994 + $0xc1] sm:$0xff]
      %v1307 = vld [vmem:[%s994 + $0xc9] sm:$0xff]
      %v1308 = vld [vmem:[%s994 + $0xd9] sm:$0xff]
      %v1309 = vld [vmem:[%s994 + $0xe1] sm:$0xff]
      %v1310 = vld [vmem:[%s994 + $0xf1] sm:$0xff]
      %v1311 = vld [vmem:[%s994 + $0xf9] sm:$0xff]
      %v1312 = vld [vmem:[%s994 + $0x109] sm:$0xff]
      %v1313 = vld [vmem:[%s994 + $0x111] sm:$0xff]
      %v1314 = vld [vmem:[%s994 + $0x121] sm:$0xff]
      %v1315 = vld [vmem:[%s994 + $0x129] sm:$0xff]
      %v1316 = vld [vmem:[%s994 + $0x139] sm:$0xff]
      %v1317 = vld [vmem:[%s994 + $0x141] sm:$0xff]
      %v1318 = vld [vmem:[%s994 + $0x151] sm:$0xff]
      %v1319 = vld [vmem:[%s994 + $0x159] sm:$0xff]
      %v1320 = vld [vmem:[%s994 + $0x169] sm:$0xff]
      %v1321 = vld [vmem:[%s994 + $0x171] sm:$0xff]
      %v1322 = vpack.c.bf16 %v1291, %v1290
      %v1323 = vpack.c.bf16 %v1293, %v1292
      %v1324 = vpack.c.bf16 %v1295, %v1294
      %v1325 = vpack.c.bf16 %v1297, %v1296
      %v1326 = vpack.c.bf16 %v1299, %v1298
      %v1327 = vpack.c.bf16 %v1301, %v1300
      %v1328 = vpack.c.bf16 %v1303, %v1302
      %v1329 = vpack.c.bf16 %v1305, %v1304
      %v1330 = vpack.c.bf16 %v1307, %v1306
      %v1331 = vpack.c.bf16 %v1309, %v1308
      %v1332 = vpack.c.bf16 %v1311, %v1310
      %v1333 = vpack.c.bf16 %v1313, %v1312
      %v1334 = vpack.c.bf16 %v1315, %v1314
      %v1335 = vpack.c.bf16 %v1317, %v1316
      %v1336 = vpack.c.bf16 %v1319, %v1318
      %v1337 = vpack.c.bf16 %v1321, %v1320
      %s1338 = scalar_lea.vmem %s1, 16
      %v1339 = vld [vmem:[%s1338] sm:$0xf]
      %v1340 = vpack.c.bf16 %v1339, %v1339
      %v1342 = vsel %vm273, %v1322, 0
      %v1345 = vsel %vm273, %v1323, 0
      %v1348 = vsel %vm273, %v1324, 0
      %v1351 = vsel %vm273, %v1325, 0
      %v1354 = vsel %vm273, %v1326, 0
      %v1357 = vsel %vm273, %v1327, 0
      %v1360 = vsel %vm273, %v1328, 0
      %v1363 = vsel %vm273, %v1329, 0
      %v1366 = vsel %vm273, %v1330, 0
      %v1369 = vsel %vm273, %v1331, 0
      %v1372 = vsel %vm273, %v1332, 0
      %v1375 = vsel %vm273, %v1333, 0
      %v1378 = vsel %vm273, %v1334, 0
      %v1381 = vsel %vm273, %v1335, 0
      %v1384 = vsel %vm273, %v1336, 0
      %v1387 = vsel %vm273, %v1337, 0
      %v1390 = vsel %vm322, %v1340, 0
      %1392 = vmatprep.subr.bf16.mxu0 0
      %1393 = vmatpush1.bf16.msra.mxu0 0
      %1394 = vmatprep.subr.bf16.mxu0 0
      %1395 = vmatpush1.bf16.msra.mxu0 0
      %1396 = vmatprep.subr.bf16.mxu0 0
      %1397 = vmatpush1.bf16.msra.mxu0 0
      %1398 = vmatprep.subr.bf16.mxu0 0
      %1399 = vmatpush1.bf16.msra.mxu0 0
      %1400 = vmatprep.subr.bf16.mxu0 0
      %1401 = vmatpush1.bf16.msra.mxu0 0
      %1402 = vmatprep.subr.bf16.mxu0 0
      %1403 = vmatpush1.bf16.msra.mxu0 0
      %1404 = vmatprep.subr.bf16.mxu0 0
      %1405 = vmatpush1.bf16.msra.mxu0 0
      %1406 = vmatprep.subr.bf16.mxu0 0
      %1407 = vmatpush1.bf16.msra.mxu0 %v1390
      %1408 = vmatprep.subr.bf16.mxu0 0
      %1409 = vmatpush2.bf16.msra.mxu0 0
      %1410 = vmatprep.subr.bf16.mxu0 0
      %1411 = vmatpush2.bf16.msra.mxu0 0
      %1412 = vmatprep.subr.bf16.mxu0 0
      %1413 = vmatpush2.bf16.msra.mxu0 0
      %1414 = vmatprep.subr.bf16.mxu0 0
      %1415 = vmatpush2.bf16.msra.mxu0 0
      %1416 = vmatprep.subr.bf16.mxu0 0
      %1417 = vmatpush2.bf16.msra.mxu0 0
      %1418 = vmatprep.subr.bf16.mxu0 0
      %1419 = vmatpush2.bf16.msra.mxu0 0
      %1420 = vmatprep.subr.bf16.mxu0 0
      %1421 = vmatpush2.bf16.msra.mxu0 0
      %1422 = vmatprep.subr.bf16.mxu0 0
      %1423 = vmatpush2.bf16.msra.mxu0 0
      %1424 = vmatprep.mubr.bf16.mxu0 0
      %1425 = vmatmul.mubr.bf16.gmra.mxu0 %v1342
      %v1426 = vpop.f32.mrf.mxu0
      %v1427 = vadd.f32 0.0, %v1426
      %v1428 = vpop.f32.mrf.mxu0
      %v1429 = vpop.f32.mrf.mxu0
      %v1430 = vadd.f32 0.0, %v1429
      %v1431 = vpop.f32.mrf.mxu0
      %1432 = vmatprep.mubr.bf16.mxu0 0
      %1433 = vmatmul.mubr.bf16.gmra.mxu0 %v1345
      %v1434 = vpop.f32.mrf.mxu0
      %v1435 = vadd.f32 0.0, %v1434
      %v1436 = vpop.f32.mrf.mxu0
      %v1437 = vpop.f32.mrf.mxu0
      %v1438 = vadd.f32 0.0, %v1437
      %v1439 = vpop.f32.mrf.mxu0
      %1440 = vmatprep.mubr.bf16.mxu0 0
      %1441 = vmatmul.mubr.bf16.gmra.mxu0 %v1348
      %v1442 = vpop.f32.mrf.mxu0
      %v1443 = vadd.f32 0.0, %v1442
      %v1444 = vpop.f32.mrf.mxu0
      %v1445 = vpop.f32.mrf.mxu0
      %v1446 = vadd.f32 0.0, %v1445
      %v1447 = vpop.f32.mrf.mxu0
      %1448 = vmatprep.mubr.bf16.mxu0 0
      %1449 = vmatmul.mubr.bf16.gmra.mxu0 %v1351
      %v1450 = vpop.f32.mrf.mxu0
      %v1451 = vadd.f32 0.0, %v1450
      %v1452 = vpop.f32.mrf.mxu0
      %v1453 = vpop.f32.mrf.mxu0
      %v1454 = vadd.f32 0.0, %v1453
      %v1455 = vpop.f32.mrf.mxu0
      %1456 = vmatprep.mubr.bf16.mxu0 0
      %1457 = vmatmul.mubr.bf16.gmra.mxu0 %v1354
      %v1458 = vpop.f32.mrf.mxu0
      %v1459 = vadd.f32 0.0, %v1458
      %v1460 = vpop.f32.mrf.mxu0
      %v1461 = vpop.f32.mrf.mxu0
      %v1462 = vadd.f32 0.0, %v1461
      %v1463 = vpop.f32.mrf.mxu0
      %1464 = vmatprep.mubr.bf16.mxu0 0
      %1465 = vmatmul.mubr.bf16.gmra.mxu0 %v1357
      %v1466 = vpop.f32.mrf.mxu0
      %v1467 = vadd.f32 0.0, %v1466
      %v1468 = vpop.f32.mrf.mxu0
      %v1469 = vpop.f32.mrf.mxu0
      %v1470 = vadd.f32 0.0, %v1469
      %v1471 = vpop.f32.mrf.mxu0
      %1472 = vmatprep.mubr.bf16.mxu0 0
      %1473 = vmatmul.mubr.bf16.gmra.mxu0 %v1360
      %v1474 = vpop.f32.mrf.mxu0
      %v1475 = vadd.f32 0.0, %v1474
      %v1476 = vpop.f32.mrf.mxu0
      %v1477 = vpop.f32.mrf.mxu0
      %v1478 = vadd.f32 0.0, %v1477
      %v1479 = vpop.f32.mrf.mxu0
      %1480 = vmatprep.mubr.bf16.mxu0 0
      %1481 = vmatmul.mubr.bf16.gmra.mxu0 %v1363
      %v1482 = vpop.f32.mrf.mxu0
      %v1483 = vadd.f32 0.0, %v1482
      %v1484 = vpop.f32.mrf.mxu0
      %v1485 = vpop.f32.mrf.mxu0
      %v1486 = vadd.f32 0.0, %v1485
      %v1487 = vpop.f32.mrf.mxu0
      %1488 = vmatprep.mubr.bf16.mxu0 0
      %1489 = vmatmul.mubr.bf16.gmra.mxu0 %v1366
      %v1490 = vpop.f32.mrf.mxu0
      %v1491 = vadd.f32 0.0, %v1490
      %v1492 = vpop.f32.mrf.mxu0
      %v1493 = vpop.f32.mrf.mxu0
      %v1494 = vadd.f32 0.0, %v1493
      %v1495 = vpop.f32.mrf.mxu0
      %1496 = vmatprep.mubr.bf16.mxu0 0
      %1497 = vmatmul.mubr.bf16.gmra.mxu0 %v1369
      %v1498 = vpop.f32.mrf.mxu0
      %v1499 = vadd.f32 0.0, %v1498
      %v1500 = vpop.f32.mrf.mxu0
      %v1501 = vpop.f32.mrf.mxu0
      %v1502 = vadd.f32 0.0, %v1501
      %v1503 = vpop.f32.mrf.mxu0
      %1504 = vmatprep.mubr.bf16.mxu0 0
      %1505 = vmatmul.mubr.bf16.gmra.mxu0 %v1372
      %v1506 = vpop.f32.mrf.mxu0
      %v1507 = vadd.f32 0.0, %v1506
      %v1508 = vpop.f32.mrf.mxu0
      %v1509 = vpop.f32.mrf.mxu0
      %v1510 = vadd.f32 0.0, %v1509
      %v1511 = vpop.f32.mrf.mxu0
      %1512 = vmatprep.mubr.bf16.mxu0 0
      %1513 = vmatmul.mubr.bf16.gmra.mxu0 %v1375
      %v1514 = vpop.f32.mrf.mxu0
      %v1515 = vadd.f32 0.0, %v1514
      %v1516 = vpop.f32.mrf.mxu0
      %v1517 = vpop.f32.mrf.mxu0
      %v1518 = vadd.f32 0.0, %v1517
      %v1519 = vpop.f32.mrf.mxu0
      %1520 = vmatprep.mubr.bf16.mxu0 0
      %1521 = vmatmul.mubr.bf16.gmra.mxu0 %v1378
      %v1522 = vpop.f32.mrf.mxu0
      %v1523 = vadd.f32 0.0, %v1522
      %v1524 = vpop.f32.mrf.mxu0
      %v1525 = vpop.f32.mrf.mxu0
      %v1526 = vadd.f32 0.0, %v1525
      %v1527 = vpop.f32.mrf.mxu0
      %1528 = vmatprep.mubr.bf16.mxu0 0
      %1529 = vmatmul.mubr.bf16.gmra.mxu0 %v1381
      %v1530 = vpop.f32.mrf.mxu0
      %v1531 = vadd.f32 0.0, %v1530
      %v1532 = vpop.f32.mrf.mxu0
      %v1533 = vpop.f32.mrf.mxu0
      %v1534 = vadd.f32 0.0, %v1533
      %v1535 = vpop.f32.mrf.mxu0
      %1536 = vmatprep.mubr.bf16.mxu0 0
      %1537 = vmatmul.mubr.bf16.gmra.mxu0 %v1384
      %v1538 = vpop.f32.mrf.mxu0
      %v1539 = vadd.f32 0.0, %v1538
      %v1540 = vpop.f32.mrf.mxu0
      %v1541 = vpop.f32.mrf.mxu0
      %v1542 = vadd.f32 0.0, %v1541
      %v1543 = vpop.f32.mrf.mxu0
      %1544 = vmatprep.mubr.bf16.mxu0 0
      %1545 = vmatmul.mubr.bf16.gmra.mxu0 %v1387
      %v1546 = vpop.f32.mrf.mxu0
      %v1547 = vadd.f32 0.0, %v1546
      %v1548 = vpop.f32.mrf.mxu0
      %v1549 = vpop.f32.mrf.mxu0
      %v1550 = vadd.f32 0.0, %v1549
      %v1551 = vpop.f32.mrf.mxu0
      %1552 = vdwg.mxu0
      %v1553 = vadd.f32 %v1258, %v1427
      %v1554 = vadd.f32 %v1259, %v1430
      %v1555 = vadd.f32 %v1260, %v1435
      %v1556 = vadd.f32 %v1261, %v1438
      %v1557 = vadd.f32 %v1262, %v1443
      %v1558 = vadd.f32 %v1263, %v1446
      %v1559 = vadd.f32 %v1264, %v1451
      %v1560 = vadd.f32 %v1265, %v1454
      %v1561 = vadd.f32 %v1266, %v1459
      %v1562 = vadd.f32 %v1267, %v1462
      %v1563 = vadd.f32 %v1268, %v1467
      %v1564 = vadd.f32 %v1269, %v1470
      %v1565 = vadd.f32 %v1270, %v1475
      %v1566 = vadd.f32 %v1271, %v1478
      %v1567 = vadd.f32 %v1272, %v1483
      %v1568 = vadd.f32 %v1273, %v1486
      %v1569 = vadd.f32 %v1274, %v1491
      %v1570 = vadd.f32 %v1275, %v1494
      %v1571 = vadd.f32 %v1276, %v1499
      %v1572 = vadd.f32 %v1277, %v1502
      %v1573 = vadd.f32 %v1278, %v1507
      %v1574 = vadd.f32 %v1279, %v1510
      %v1575 = vadd.f32 %v1280, %v1515
      %v1576 = vadd.f32 %v1281, %v1518
      %v1577 = vadd.f32 %v1282, %v1523
      %v1578 = vadd.f32 %v1283, %v1526
      %v1579 = vadd.f32 %v1284, %v1531
      %v1580 = vadd.f32 %v1285, %v1534
      %v1581 = vadd.f32 %v1286, %v1539
      %v1582 = vadd.f32 %v1287, %v1542
      %v1583 = vadd.f32 %v1288, %v1547
      %v1584 = vadd.f32 %v1289, %v1550
      %v1585 = vld [vmem:[%s994 + $0x2] sm:$0xff]
      %v1586 = vld [vmem:[%s994 + $0xa] sm:$0xff]
      %v1587 = vld [vmem:[%s994 + $0x1a] sm:$0xff]
      %v1588 = vld [vmem:[%s994 + $0x22] sm:$0xff]
      %v1589 = vld [vmem:[%s994 + $0x32] sm:$0xff]
      %v1590 = vld [vmem:[%s994 + $0x3a] sm:$0xff]
      %v1591 = vld [vmem:[%s994 + $0x4a] sm:$0xff]
      %v1592 = vld [vmem:[%s994 + $0x52] sm:$0xff]
      %v1593 = vld [vmem:[%s994 + $0x62] sm:$0xff]
      %v1594 = vld [vmem:[%s994 + $0x6a] sm:$0xff]
      %v1595 = vld [vmem:[%s994 + $0x7a] sm:$0xff]
      %v1596 = vld [vmem:[%s994 + $0x82] sm:$0xff]
      %v1597 = vld [vmem:[%s994 + $0x92] sm:$0xff]
      %v1598 = vld [vmem:[%s994 + $0x9a] sm:$0xff]
      %v1599 = vld [vmem:[%s994 + $0xaa] sm:$0xff]
      %v1600 = vld [vmem:[%s994 + $0xb2] sm:$0xff]
      %v1601 = vld [vmem:[%s994 + $0xc2] sm:$0xff]
      %v1602 = vld [vmem:[%s994 + $0xca] sm:$0xff]
      %v1603 = vld [vmem:[%s994 + $0xda] sm:$0xff]
      %v1604 = vld [vmem:[%s994 + $0xe2] sm:$0xff]
      %v1605 = vld [vmem:[%s994 + $0xf2] sm:$0xff]
      %v1606 = vld [vmem:[%s994 + $0xfa] sm:$0xff]
      %v1607 = vld [vmem:[%s994 + $0x10a] sm:$0xff]
      %v1608 = vld [vmem:[%s994 + $0x112] sm:$0xff]
      %v1609 = vld [vmem:[%s994 + $0x122] sm:$0xff]
      %v1610 = vld [vmem:[%s994 + $0x12a] sm:$0xff]
      %v1611 = vld [vmem:[%s994 + $0x13a] sm:$0xff]
      %v1612 = vld [vmem:[%s994 + $0x142] sm:$0xff]
      %v1613 = vld [vmem:[%s994 + $0x152] sm:$0xff]
      %v1614 = vld [vmem:[%s994 + $0x15a] sm:$0xff]
      %v1615 = vld [vmem:[%s994 + $0x16a] sm:$0xff]
      %v1616 = vld [vmem:[%s994 + $0x172] sm:$0xff]
      %v1617 = vpack.c.bf16 %v1586, %v1585
      %v1618 = vpack.c.bf16 %v1588, %v1587
      %v1619 = vpack.c.bf16 %v1590, %v1589
      %v1620 = vpack.c.bf16 %v1592, %v1591
      %v1621 = vpack.c.bf16 %v1594, %v1593
      %v1622 = vpack.c.bf16 %v1596, %v1595
      %v1623 = vpack.c.bf16 %v1598, %v1597
      %v1624 = vpack.c.bf16 %v1600, %v1599
      %v1625 = vpack.c.bf16 %v1602, %v1601
      %v1626 = vpack.c.bf16 %v1604, %v1603
      %v1627 = vpack.c.bf16 %v1606, %v1605
      %v1628 = vpack.c.bf16 %v1608, %v1607
      %v1629 = vpack.c.bf16 %v1610, %v1609
      %v1630 = vpack.c.bf16 %v1612, %v1611
      %v1631 = vpack.c.bf16 %v1614, %v1613
      %v1632 = vpack.c.bf16 %v1616, %v1615
      %s1633 = scalar_lea.vmem %s1, 20
      %v1634 = vld [vmem:[%s1633] sm:$0xf]
      %v1635 = vpack.c.bf16 %v1634, %v1634
      %v1637 = vsel %vm273, %v1617, 0
      %v1640 = vsel %vm273, %v1618, 0
      %v1643 = vsel %vm273, %v1619, 0
      %v1646 = vsel %vm273, %v1620, 0
      %v1649 = vsel %vm273, %v1621, 0
      %v1652 = vsel %vm273, %v1622, 0
      %v1655 = vsel %vm273, %v1623, 0
      %v1658 = vsel %vm273, %v1624, 0
      %v1661 = vsel %vm273, %v1625, 0
      %v1664 = vsel %vm273, %v1626, 0
      %v1667 = vsel %vm273, %v1627, 0
      %v1670 = vsel %vm273, %v1628, 0
      %v1673 = vsel %vm273, %v1629, 0
      %v1676 = vsel %vm273, %v1630, 0
      %v1679 = vsel %vm273, %v1631, 0
      %v1682 = vsel %vm273, %v1632, 0
      %v1685 = vsel %vm322, %v1635, 0
      %1687 = vmatprep.subr.bf16.mxu0 0
      %1688 = vmatpush1.bf16.msra.mxu0 0
      %1689 = vmatprep.subr.bf16.mxu0 0
      %1690 = vmatpush1.bf16.msra.mxu0 0
      %1691 = vmatprep.subr.bf16.mxu0 0
      %1692 = vmatpush1.bf16.msra.mxu0 0
      %1693 = vmatprep.subr.bf16.mxu0 0
      %1694 = vmatpush1.bf16.msra.mxu0 0
      %1695 = vmatprep.subr.bf16.mxu0 0
      %1696 = vmatpush1.bf16.msra.mxu0 0
      %1697 = vmatprep.subr.bf16.mxu0 0
      %1698 = vmatpush1.bf16.msra.mxu0 0
      %1699 = vmatprep.subr.bf16.mxu0 0
      %1700 = vmatpush1.bf16.msra.mxu0 0
      %1701 = vmatprep.subr.bf16.mxu0 0
      %1702 = vmatpush1.bf16.msra.mxu0 %v1685
      %1703 = vmatprep.subr.bf16.mxu0 0
      %1704 = vmatpush2.bf16.msra.mxu0 0
      %1705 = vmatprep.subr.bf16.mxu0 0
      %1706 = vmatpush2.bf16.msra.mxu0 0
      %1707 = vmatprep.subr.bf16.mxu0 0
      %1708 = vmatpush2.bf16.msra.mxu0 0
      %1709 = vmatprep.subr.bf16.mxu0 0
      %1710 = vmatpush2.bf16.msra.mxu0 0
      %1711 = vmatprep.subr.bf16.mxu0 0
      %1712 = vmatpush2.bf16.msra.mxu0 0
      %1713 = vmatprep.subr.bf16.mxu0 0
      %1714 = vmatpush2.bf16.msra.mxu0 0
      %1715 = vmatprep.subr.bf16.mxu0 0
      %1716 = vmatpush2.bf16.msra.mxu0 0
      %1717 = vmatprep.subr.bf16.mxu0 0
      %1718 = vmatpush2.bf16.msra.mxu0 0
      %1719 = vmatprep.mubr.bf16.mxu0 0
      %1720 = vmatmul.mubr.bf16.gmra.mxu0 %v1637
      %v1721 = vpop.f32.mrf.mxu0
      %v1722 = vadd.f32 0.0, %v1721
      %v1723 = vpop.f32.mrf.mxu0
      %v1724 = vpop.f32.mrf.mxu0
      %v1725 = vadd.f32 0.0, %v1724
      %v1726 = vpop.f32.mrf.mxu0
      %1727 = vmatprep.mubr.bf16.mxu0 0
      %1728 = vmatmul.mubr.bf16.gmra.mxu0 %v1640
      %v1729 = vpop.f32.mrf.mxu0
      %v1730 = vadd.f32 0.0, %v1729
      %v1731 = vpop.f32.mrf.mxu0
      %v1732 = vpop.f32.mrf.mxu0
      %v1733 = vadd.f32 0.0, %v1732
      %v1734 = vpop.f32.mrf.mxu0
      %1735 = vmatprep.mubr.bf16.mxu0 0
      %1736 = vmatmul.mubr.bf16.gmra.mxu0 %v1643
      %v1737 = vpop.f32.mrf.mxu0
      %v1738 = vadd.f32 0.0, %v1737
      %v1739 = vpop.f32.mrf.mxu0
      %v1740 = vpop.f32.mrf.mxu0
      %v1741 = vadd.f32 0.0, %v1740
      %v1742 = vpop.f32.mrf.mxu0
      %1743 = vmatprep.mubr.bf16.mxu0 0
      %1744 = vmatmul.mubr.bf16.gmra.mxu0 %v1646
      %v1745 = vpop.f32.mrf.mxu0
      %v1746 = vadd.f32 0.0, %v1745
      %v1747 = vpop.f32.mrf.mxu0
      %v1748 = vpop.f32.mrf.mxu0
      %v1749 = vadd.f32 0.0, %v1748
      %v1750 = vpop.f32.mrf.mxu0
      %1751 = vmatprep.mubr.bf16.mxu0 0
      %1752 = vmatmul.mubr.bf16.gmra.mxu0 %v1649
      %v1753 = vpop.f32.mrf.mxu0
      %v1754 = vadd.f32 0.0, %v1753
      %v1755 = vpop.f32.mrf.mxu0
      %v1756 = vpop.f32.mrf.mxu0
      %v1757 = vadd.f32 0.0, %v1756
      %v1758 = vpop.f32.mrf.mxu0
      %1759 = vmatprep.mubr.bf16.mxu0 0
      %1760 = vmatmul.mubr.bf16.gmra.mxu0 %v1652
      %v1761 = vpop.f32.mrf.mxu0
      %v1762 = vadd.f32 0.0, %v1761
      %v1763 = vpop.f32.mrf.mxu0
      %v1764 = vpop.f32.mrf.mxu0
      %v1765 = vadd.f32 0.0, %v1764
      %v1766 = vpop.f32.mrf.mxu0
      %1767 = vmatprep.mubr.bf16.mxu0 0
      %1768 = vmatmul.mubr.bf16.gmra.mxu0 %v1655
      %v1769 = vpop.f32.mrf.mxu0
      %v1770 = vadd.f32 0.0, %v1769
      %v1771 = vpop.f32.mrf.mxu0
      %v1772 = vpop.f32.mrf.mxu0
      %v1773 = vadd.f32 0.0, %v1772
      %v1774 = vpop.f32.mrf.mxu0
      %1775 = vmatprep.mubr.bf16.mxu0 0
      %1776 = vmatmul.mubr.bf16.gmra.mxu0 %v1658
      %v1777 = vpop.f32.mrf.mxu0
      %v1778 = vadd.f32 0.0, %v1777
      %v1779 = vpop.f32.mrf.mxu0
      %v1780 = vpop.f32.mrf.mxu0
      %v1781 = vadd.f32 0.0, %v1780
      %v1782 = vpop.f32.mrf.mxu0
      %1783 = vmatprep.mubr.bf16.mxu0 0
      %1784 = vmatmul.mubr.bf16.gmra.mxu0 %v1661
      %v1785 = vpop.f32.mrf.mxu0
      %v1786 = vadd.f32 0.0, %v1785
      %v1787 = vpop.f32.mrf.mxu0
      %v1788 = vpop.f32.mrf.mxu0
      %v1789 = vadd.f32 0.0, %v1788
      %v1790 = vpop.f32.mrf.mxu0
      %1791 = vmatprep.mubr.bf16.mxu0 0
      %1792 = vmatmul.mubr.bf16.gmra.mxu0 %v1664
      %v1793 = vpop.f32.mrf.mxu0
      %v1794 = vadd.f32 0.0, %v1793
      %v1795 = vpop.f32.mrf.mxu0
      %v1796 = vpop.f32.mrf.mxu0
      %v1797 = vadd.f32 0.0, %v1796
      %v1798 = vpop.f32.mrf.mxu0
      %1799 = vmatprep.mubr.bf16.mxu0 0
      %1800 = vmatmul.mubr.bf16.gmra.mxu0 %v1667
      %v1801 = vpop.f32.mrf.mxu0
      %v1802 = vadd.f32 0.0, %v1801
      %v1803 = vpop.f32.mrf.mxu0
      %v1804 = vpop.f32.mrf.mxu0
      %v1805 = vadd.f32 0.0, %v1804
      %v1806 = vpop.f32.mrf.mxu0
      %1807 = vmatprep.mubr.bf16.mxu0 0
      %1808 = vmatmul.mubr.bf16.gmra.mxu0 %v1670
      %v1809 = vpop.f32.mrf.mxu0
      %v1810 = vadd.f32 0.0, %v1809
      %v1811 = vpop.f32.mrf.mxu0
      %v1812 = vpop.f32.mrf.mxu0
      %v1813 = vadd.f32 0.0, %v1812
      %v1814 = vpop.f32.mrf.mxu0
      %1815 = vmatprep.mubr.bf16.mxu0 0
      %1816 = vmatmul.mubr.bf16.gmra.mxu0 %v1673
      %v1817 = vpop.f32.mrf.mxu0
      %v1818 = vadd.f32 0.0, %v1817
      %v1819 = vpop.f32.mrf.mxu0
      %v1820 = vpop.f32.mrf.mxu0
      %v1821 = vadd.f32 0.0, %v1820
      %v1822 = vpop.f32.mrf.mxu0
      %1823 = vmatprep.mubr.bf16.mxu0 0
      %1824 = vmatmul.mubr.bf16.gmra.mxu0 %v1676
      %v1825 = vpop.f32.mrf.mxu0
      %v1826 = vadd.f32 0.0, %v1825
      %v1827 = vpop.f32.mrf.mxu0
      %v1828 = vpop.f32.mrf.mxu0
      %v1829 = vadd.f32 0.0, %v1828
      %v1830 = vpop.f32.mrf.mxu0
      %1831 = vmatprep.mubr.bf16.mxu0 0
      %1832 = vmatmul.mubr.bf16.gmra.mxu0 %v1679
      %v1833 = vpop.f32.mrf.mxu0
      %v1834 = vadd.f32 0.0, %v1833
      %v1835 = vpop.f32.mrf.mxu0
      %v1836 = vpop.f32.mrf.mxu0
      %v1837 = vadd.f32 0.0, %v1836
      %v1838 = vpop.f32.mrf.mxu0
      %1839 = vmatprep.mubr.bf16.mxu0 0
      %1840 = vmatmul.mubr.bf16.gmra.mxu0 %v1682
      %v1841 = vpop.f32.mrf.mxu0
      %v1842 = vadd.f32 0.0, %v1841
      %v1843 = vpop.f32.mrf.mxu0
      %v1844 = vpop.f32.mrf.mxu0
      %v1845 = vadd.f32 0.0, %v1844
      %v1846 = vpop.f32.mrf.mxu0
      %1847 = vdwg.mxu0
      %v1848 = vadd.f32 %v1553, %v1722
      %v1849 = vadd.f32 %v1554, %v1725
      %v1850 = vadd.f32 %v1555, %v1730
      %v1851 = vadd.f32 %v1556, %v1733
      %v1852 = vadd.f32 %v1557, %v1738
      %v1853 = vadd.f32 %v1558, %v1741
      %v1854 = vadd.f32 %v1559, %v1746
      %v1855 = vadd.f32 %v1560, %v1749
      %v1856 = vadd.f32 %v1561, %v1754
      %v1857 = vadd.f32 %v1562, %v1757
      %v1858 = vadd.f32 %v1563, %v1762
      %v1859 = vadd.f32 %v1564, %v1765
      %v1860 = vadd.f32 %v1565, %v1770
      %v1861 = vadd.f32 %v1566, %v1773
      %v1862 = vadd.f32 %v1567, %v1778
      %v1863 = vadd.f32 %v1568, %v1781
      %v1864 = vadd.f32 %v1569, %v1786
      %v1865 = vadd.f32 %v1570, %v1789
      %v1866 = vadd.f32 %v1571, %v1794
      %v1867 = vadd.f32 %v1572, %v1797
      %v1868 = vadd.f32 %v1573, %v1802
      %v1869 = vadd.f32 %v1574, %v1805
      %v1870 = vadd.f32 %v1575, %v1810
      %v1871 = vadd.f32 %v1576, %v1813
      %v1872 = vadd.f32 %v1577, %v1818
      %v1873 = vadd.f32 %v1578, %v1821
      %v1874 = vadd.f32 %v1579, %v1826
      %v1875 = vadd.f32 %v1580, %v1829
      %v1876 = vadd.f32 %v1581, %v1834
      %v1877 = vadd.f32 %v1582, %v1837
      %v1878 = vadd.f32 %v1583, %v1842
      %v1879 = vadd.f32 %v1584, %v1845
      %s1880 = scalar_lea.vmem %s165, 48
      %v1881 = vld [vmem:[%s1880] sm:$0xff]
      %v1882 = vld [vmem:[%s1880 + $0x8] sm:$0xff]
      %v1883 = vld [vmem:[%s1880 + $0x18] sm:$0xff]
      %v1884 = vld [vmem:[%s1880 + $0x20] sm:$0xff]
      %v1885 = vld [vmem:[%s1880 + $0x30] sm:$0xff]
      %v1886 = vld [vmem:[%s1880 + $0x38] sm:$0xff]
      %v1887 = vld [vmem:[%s1880 + $0x48] sm:$0xff]
      %v1888 = vld [vmem:[%s1880 + $0x50] sm:$0xff]
      %v1889 = vld [vmem:[%s1880 + $0x60] sm:$0xff]
      %v1890 = vld [vmem:[%s1880 + $0x68] sm:$0xff]
      %v1891 = vld [vmem:[%s1880 + $0x78] sm:$0xff]
      %v1892 = vld [vmem:[%s1880 + $0x80] sm:$0xff]
      %v1893 = vld [vmem:[%s1880 + $0x90] sm:$0xff]
      %v1894 = vld [vmem:[%s1880 + $0x98] sm:$0xff]
      %v1895 = vld [vmem:[%s1880 + $0xa8] sm:$0xff]
      %v1896 = vld [vmem:[%s1880 + $0xb0] sm:$0xff]
      %v1897 = vld [vmem:[%s1880 + $0xc0] sm:$0xff]
      %v1898 = vld [vmem:[%s1880 + $0xc8] sm:$0xff]
      %v1899 = vld [vmem:[%s1880 + $0xd8] sm:$0xff]
      %v1900 = vld [vmem:[%s1880 + $0xe0] sm:$0xff]
      %v1901 = vld [vmem:[%s1880 + $0xf0] sm:$0xff]
      %v1902 = vld [vmem:[%s1880 + $0xf8] sm:$0xff]
      %v1903 = vld [vmem:[%s1880 + $0x108] sm:$0xff]
      %v1904 = vld [vmem:[%s1880 + $0x110] sm:$0xff]
      %v1905 = vld [vmem:[%s1880 + $0x120] sm:$0xff]
      %v1906 = vld [vmem:[%s1880 + $0x128] sm:$0xff]
      %v1907 = vld [vmem:[%s1880 + $0x138] sm:$0xff]
      %v1908 = vld [vmem:[%s1880 + $0x140] sm:$0xff]
      %v1909 = vld [vmem:[%s1880 + $0x150] sm:$0xff]
      %v1910 = vld [vmem:[%s1880 + $0x158] sm:$0xff]
      %v1911 = vld [vmem:[%s1880 + $0x168] sm:$0xff]
      %v1912 = vld [vmem:[%s1880 + $0x170] sm:$0xff]
      %v1913 = vpack.c.bf16 %v1882, %v1881
      %v1914 = vpack.c.bf16 %v1884, %v1883
      %v1915 = vpack.c.bf16 %v1886, %v1885
      %v1916 = vpack.c.bf16 %v1888, %v1887
      %v1917 = vpack.c.bf16 %v1890, %v1889
      %v1918 = vpack.c.bf16 %v1892, %v1891
      %v1919 = vpack.c.bf16 %v1894, %v1893
      %v1920 = vpack.c.bf16 %v1896, %v1895
      %v1921 = vpack.c.bf16 %v1898, %v1897
      %v1922 = vpack.c.bf16 %v1900, %v1899
      %v1923 = vpack.c.bf16 %v1902, %v1901
      %v1924 = vpack.c.bf16 %v1904, %v1903
      %v1925 = vpack.c.bf16 %v1906, %v1905
      %v1926 = vpack.c.bf16 %v1908, %v1907
      %v1927 = vpack.c.bf16 %v1910, %v1909
      %v1928 = vpack.c.bf16 %v1912, %v1911
      %s1929 = scalar_lea.vmem %s1, 24
      %v1930 = vld [vmem:[%s1929] sm:$0xf]
      %v1931 = vpack.c.bf16 %v1930, %v1930
      %v1933 = vsel %vm273, %v1913, 0
      %v1936 = vsel %vm273, %v1914, 0
      %v1939 = vsel %vm273, %v1915, 0
      %v1942 = vsel %vm273, %v1916, 0
      %v1945 = vsel %vm273, %v1917, 0
      %v1948 = vsel %vm273, %v1918, 0
      %v1951 = vsel %vm273, %v1919, 0
      %v1954 = vsel %vm273, %v1920, 0
      %v1957 = vsel %vm273, %v1921, 0
      %v1960 = vsel %vm273, %v1922, 0
      %v1963 = vsel %vm273, %v1923, 0
      %v1966 = vsel %vm273, %v1924, 0
      %v1969 = vsel %vm273, %v1925, 0
      %v1972 = vsel %vm273, %v1926, 0
      %v1975 = vsel %vm273, %v1927, 0
      %v1978 = vsel %vm273, %v1928, 0
      %v1981 = vsel %vm322, %v1931, 0
      %1983 = vmatprep.subr.bf16.mxu0 0
      %1984 = vmatpush1.bf16.msra.mxu0 0
      %1985 = vmatprep.subr.bf16.mxu0 0
      %1986 = vmatpush1.bf16.msra.mxu0 0
      %1987 = vmatprep.subr.bf16.mxu0 0
      %1988 = vmatpush1.bf16.msra.mxu0 0
      %1989 = vmatprep.subr.bf16.mxu0 0
      %1990 = vmatpush1.bf16.msra.mxu0 0
      %1991 = vmatprep.subr.bf16.mxu0 0
      %1992 = vmatpush1.bf16.msra.mxu0 0
      %1993 = vmatprep.subr.bf16.mxu0 0
      %1994 = vmatpush1.bf16.msra.mxu0 0
      %1995 = vmatprep.subr.bf16.mxu0 0
      %1996 = vmatpush1.bf16.msra.mxu0 0
      %1997 = vmatprep.subr.bf16.mxu0 0
      %1998 = vmatpush1.bf16.msra.mxu0 %v1981
      %1999 = vmatprep.subr.bf16.mxu0 0
      %2000 = vmatpush2.bf16.msra.mxu0 0
      %2001 = vmatprep.subr.bf16.mxu0 0
      %2002 = vmatpush2.bf16.msra.mxu0 0
      %2003 = vmatprep.subr.bf16.mxu0 0
      %2004 = vmatpush2.bf16.msra.mxu0 0
      %2005 = vmatprep.subr.bf16.mxu0 0
      %2006 = vmatpush2.bf16.msra.mxu0 0
      %2007 = vmatprep.subr.bf16.mxu0 0
      %2008 = vmatpush2.bf16.msra.mxu0 0
      %2009 = vmatprep.subr.bf16.mxu0 0
      %2010 = vmatpush2.bf16.msra.mxu0 0
      %2011 = vmatprep.subr.bf16.mxu0 0
      %2012 = vmatpush2.bf16.msra.mxu0 0
      %2013 = vmatprep.subr.bf16.mxu0 0
      %2014 = vmatpush2.bf16.msra.mxu0 0
      %2015 = vmatprep.mubr.bf16.mxu0 0
      %2016 = vmatmul.mubr.bf16.gmra.mxu0 %v1933
      %v2017 = vpop.f32.mrf.mxu0
      %v2018 = vadd.f32 0.0, %v2017
      %v2019 = vpop.f32.mrf.mxu0
      %v2020 = vpop.f32.mrf.mxu0
      %v2021 = vadd.f32 0.0, %v2020
      %v2022 = vpop.f32.mrf.mxu0
      %2023 = vmatprep.mubr.bf16.mxu0 0
      %2024 = vmatmul.mubr.bf16.gmra.mxu0 %v1936
      %v2025 = vpop.f32.mrf.mxu0
      %v2026 = vadd.f32 0.0, %v2025
      %v2027 = vpop.f32.mrf.mxu0
      %v2028 = vpop.f32.mrf.mxu0
      %v2029 = vadd.f32 0.0, %v2028
      %v2030 = vpop.f32.mrf.mxu0
      %2031 = vmatprep.mubr.bf16.mxu0 0
      %2032 = vmatmul.mubr.bf16.gmra.mxu0 %v1939
      %v2033 = vpop.f32.mrf.mxu0
      %v2034 = vadd.f32 0.0, %v2033
      %v2035 = vpop.f32.mrf.mxu0
      %v2036 = vpop.f32.mrf.mxu0
      %v2037 = vadd.f32 0.0, %v2036
      %v2038 = vpop.f32.mrf.mxu0
      %2039 = vmatprep.mubr.bf16.mxu0 0
      %2040 = vmatmul.mubr.bf16.gmra.mxu0 %v1942
      %v2041 = vpop.f32.mrf.mxu0
      %v2042 = vadd.f32 0.0, %v2041
      %v2043 = vpop.f32.mrf.mxu0
      %v2044 = vpop.f32.mrf.mxu0
      %v2045 = vadd.f32 0.0, %v2044
      %v2046 = vpop.f32.mrf.mxu0
      %2047 = vmatprep.mubr.bf16.mxu0 0
      %2048 = vmatmul.mubr.bf16.gmra.mxu0 %v1945
      %v2049 = vpop.f32.mrf.mxu0
      %v2050 = vadd.f32 0.0, %v2049
      %v2051 = vpop.f32.mrf.mxu0
      %v2052 = vpop.f32.mrf.mxu0
      %v2053 = vadd.f32 0.0, %v2052
      %v2054 = vpop.f32.mrf.mxu0
      %2055 = vmatprep.mubr.bf16.mxu0 0
      %2056 = vmatmul.mubr.bf16.gmra.mxu0 %v1948
      %v2057 = vpop.f32.mrf.mxu0
      %v2058 = vadd.f32 0.0, %v2057
      %v2059 = vpop.f32.mrf.mxu0
      %v2060 = vpop.f32.mrf.mxu0
      %v2061 = vadd.f32 0.0, %v2060
      %v2062 = vpop.f32.mrf.mxu0
      %2063 = vmatprep.mubr.bf16.mxu0 0
      %2064 = vmatmul.mubr.bf16.gmra.mxu0 %v1951
      %v2065 = vpop.f32.mrf.mxu0
      %v2066 = vadd.f32 0.0, %v2065
      %v2067 = vpop.f32.mrf.mxu0
      %v2068 = vpop.f32.mrf.mxu0
      %v2069 = vadd.f32 0.0, %v2068
      %v2070 = vpop.f32.mrf.mxu0
      %2071 = vmatprep.mubr.bf16.mxu0 0
      %2072 = vmatmul.mubr.bf16.gmra.mxu0 %v1954
      %v2073 = vpop.f32.mrf.mxu0
      %v2074 = vadd.f32 0.0, %v2073
      %v2075 = vpop.f32.mrf.mxu0
      %v2076 = vpop.f32.mrf.mxu0
      %v2077 = vadd.f32 0.0, %v2076
      %v2078 = vpop.f32.mrf.mxu0
      %2079 = vmatprep.mubr.bf16.mxu0 0
      %2080 = vmatmul.mubr.bf16.gmra.mxu0 %v1957
      %v2081 = vpop.f32.mrf.mxu0
      %v2082 = vadd.f32 0.0, %v2081
      %v2083 = vpop.f32.mrf.mxu0
      %v2084 = vpop.f32.mrf.mxu0
      %v2085 = vadd.f32 0.0, %v2084
      %v2086 = vpop.f32.mrf.mxu0
      %2087 = vmatprep.mubr.bf16.mxu0 0
      %2088 = vmatmul.mubr.bf16.gmra.mxu0 %v1960
      %v2089 = vpop.f32.mrf.mxu0
      %v2090 = vadd.f32 0.0, %v2089
      %v2091 = vpop.f32.mrf.mxu0
      %v2092 = vpop.f32.mrf.mxu0
      %v2093 = vadd.f32 0.0, %v2092
      %v2094 = vpop.f32.mrf.mxu0
      %2095 = vmatprep.mubr.bf16.mxu0 0
      %2096 = vmatmul.mubr.bf16.gmra.mxu0 %v1963
      %v2097 = vpop.f32.mrf.mxu0
      %v2098 = vadd.f32 0.0, %v2097
      %v2099 = vpop.f32.mrf.mxu0
      %v2100 = vpop.f32.mrf.mxu0
      %v2101 = vadd.f32 0.0, %v2100
      %v2102 = vpop.f32.mrf.mxu0
      %2103 = vmatprep.mubr.bf16.mxu0 0
      %2104 = vmatmul.mubr.bf16.gmra.mxu0 %v1966
      %v2105 = vpop.f32.mrf.mxu0
      %v2106 = vadd.f32 0.0, %v2105
      %v2107 = vpop.f32.mrf.mxu0
      %v2108 = vpop.f32.mrf.mxu0
      %v2109 = vadd.f32 0.0, %v2108
      %v2110 = vpop.f32.mrf.mxu0
      %2111 = vmatprep.mubr.bf16.mxu0 0
      %2112 = vmatmul.mubr.bf16.gmra.mxu0 %v1969
      %v2113 = vpop.f32.mrf.mxu0
      %v2114 = vadd.f32 0.0, %v2113
      %v2115 = vpop.f32.mrf.mxu0
      %v2116 = vpop.f32.mrf.mxu0
      %v2117 = vadd.f32 0.0, %v2116
      %v2118 = vpop.f32.mrf.mxu0
      %2119 = vmatprep.mubr.bf16.mxu0 0
      %2120 = vmatmul.mubr.bf16.gmra.mxu0 %v1972
      %v2121 = vpop.f32.mrf.mxu0
      %v2122 = vadd.f32 0.0, %v2121
      %v2123 = vpop.f32.mrf.mxu0
      %v2124 = vpop.f32.mrf.mxu0
      %v2125 = vadd.f32 0.0, %v2124
      %v2126 = vpop.f32.mrf.mxu0
      %2127 = vmatprep.mubr.bf16.mxu0 0
      %2128 = vmatmul.mubr.bf16.gmra.mxu0 %v1975
      %v2129 = vpop.f32.mrf.mxu0
      %v2130 = vadd.f32 0.0, %v2129
      %v2131 = vpop.f32.mrf.mxu0
      %v2132 = vpop.f32.mrf.mxu0
      %v2133 = vadd.f32 0.0, %v2132
      %v2134 = vpop.f32.mrf.mxu0
      %2135 = vmatprep.mubr.bf16.mxu0 0
      %2136 = vmatmul.mubr.bf16.gmra.mxu0 %v1978
      %v2137 = vpop.f32.mrf.mxu0
      %v2138 = vadd.f32 0.0, %v2137
      %v2139 = vpop.f32.mrf.mxu0
      %v2140 = vpop.f32.mrf.mxu0
      %v2141 = vadd.f32 0.0, %v2140
      %v2142 = vpop.f32.mrf.mxu0
      %2143 = vdwg.mxu0
      %v2144 = vadd.f32 %v1848, %v2018
      %v2145 = vadd.f32 %v1849, %v2021
      %v2146 = vadd.f32 %v1850, %v2026
      %v2147 = vadd.f32 %v1851, %v2029
      %v2148 = vadd.f32 %v1852, %v2034
      %v2149 = vadd.f32 %v1853, %v2037
      %v2150 = vadd.f32 %v1854, %v2042
      %v2151 = vadd.f32 %v1855, %v2045
      %v2152 = vadd.f32 %v1856, %v2050
      %v2153 = vadd.f32 %v1857, %v2053
      %v2154 = vadd.f32 %v1858, %v2058
      %v2155 = vadd.f32 %v1859, %v2061
      %v2156 = vadd.f32 %v1860, %v2066
      %v2157 = vadd.f32 %v1861, %v2069
      %v2158 = vadd.f32 %v1862, %v2074
      %v2159 = vadd.f32 %v1863, %v2077
      %v2160 = vadd.f32 %v1864, %v2082
      %v2161 = vadd.f32 %v1865, %v2085
      %v2162 = vadd.f32 %v1866, %v2090
      %v2163 = vadd.f32 %v1867, %v2093
      %v2164 = vadd.f32 %v1868, %v2098
      %v2165 = vadd.f32 %v1869, %v2101
      %v2166 = vadd.f32 %v1870, %v2106
      %v2167 = vadd.f32 %v1871, %v2109
      %v2168 = vadd.f32 %v1872, %v2114
      %v2169 = vadd.f32 %v1873, %v2117
      %v2170 = vadd.f32 %v1874, %v2122
      %v2171 = vadd.f32 %v1875, %v2125
      %v2172 = vadd.f32 %v1876, %v2130
      %v2173 = vadd.f32 %v1877, %v2133
      %v2174 = vadd.f32 %v1878, %v2138
      %v2175 = vadd.f32 %v1879, %v2141
      %v2176 = vld [vmem:[%s1880 + $0x1] sm:$0xff]
      %v2177 = vld [vmem:[%s1880 + $0x9] sm:$0xff]
      %v2178 = vld [vmem:[%s1880 + $0x19] sm:$0xff]
      %v2179 = vld [vmem:[%s1880 + $0x21] sm:$0xff]
      %v2180 = vld [vmem:[%s1880 + $0x31] sm:$0xff]
      %v2181 = vld [vmem:[%s1880 + $0x39] sm:$0xff]
      %v2182 = vld [vmem:[%s1880 + $0x49] sm:$0xff]
      %v2183 = vld [vmem:[%s1880 + $0x51] sm:$0xff]
      %v2184 = vld [vmem:[%s1880 + $0x61] sm:$0xff]
      %v2185 = vld [vmem:[%s1880 + $0x69] sm:$0xff]
      %v2186 = vld [vmem:[%s1880 + $0x79] sm:$0xff]
      %v2187 = vld [vmem:[%s1880 + $0x81] sm:$0xff]
      %v2188 = vld [vmem:[%s1880 + $0x91] sm:$0xff]
      %v2189 = vld [vmem:[%s1880 + $0x99] sm:$0xff]
      %v2190 = vld [vmem:[%s1880 + $0xa9] sm:$0xff]
      %v2191 = vld [vmem:[%s1880 + $0xb1] sm:$0xff]
      %v2192 = vld [vmem:[%s1880 + $0xc1] sm:$0xff]
      %v2193 = vld [vmem:[%s1880 + $0xc9] sm:$0xff]
      %v2194 = vld [vmem:[%s1880 + $0xd9] sm:$0xff]
      %v2195 = vld [vmem:[%s1880 + $0xe1] sm:$0xff]
      %v2196 = vld [vmem:[%s1880 + $0xf1] sm:$0xff]
      %v2197 = vld [vmem:[%s1880 + $0xf9] sm:$0xff]
      %v2198 = vld [vmem:[%s1880 + $0x109] sm:$0xff]
      %v2199 = vld [vmem:[%s1880 + $0x111] sm:$0xff]
      %v2200 = vld [vmem:[%s1880 + $0x121] sm:$0xff]
      %v2201 = vld [vmem:[%s1880 + $0x129] sm:$0xff]
      %v2202 = vld [vmem:[%s1880 + $0x139] sm:$0xff]
      %v2203 = vld [vmem:[%s1880 + $0x141] sm:$0xff]
      %v2204 = vld [vmem:[%s1880 + $0x151] sm:$0xff]
      %v2205 = vld [vmem:[%s1880 + $0x159] sm:$0xff]
      %v2206 = vld [vmem:[%s1880 + $0x169] sm:$0xff]
      %v2207 = vld [vmem:[%s1880 + $0x171] sm:$0xff]
      %v2208 = vpack.c.bf16 %v2177, %v2176
      %v2209 = vpack.c.bf16 %v2179, %v2178
      %v2210 = vpack.c.bf16 %v2181, %v2180
      %v2211 = vpack.c.bf16 %v2183, %v2182
      %v2212 = vpack.c.bf16 %v2185, %v2184
      %v2213 = vpack.c.bf16 %v2187, %v2186
      %v2214 = vpack.c.bf16 %v2189, %v2188
      %v2215 = vpack.c.bf16 %v2191, %v2190
      %v2216 = vpack.c.bf16 %v2193, %v2192
      %v2217 = vpack.c.bf16 %v2195, %v2194
      %v2218 = vpack.c.bf16 %v2197, %v2196
      %v2219 = vpack.c.bf16 %v2199, %v2198
      %v2220 = vpack.c.bf16 %v2201, %v2200
      %v2221 = vpack.c.bf16 %v2203, %v2202
      %v2222 = vpack.c.bf16 %v2205, %v2204
      %v2223 = vpack.c.bf16 %v2207, %v2206
      %s2224 = scalar_lea.vmem %s1, 28
      %v2225 = vld [vmem:[%s2224] sm:$0xf]
      %v2226 = vpack.c.bf16 %v2225, %v2225
      %v2228 = vsel %vm273, %v2208, 0
      %v2231 = vsel %vm273, %v2209, 0
      %v2234 = vsel %vm273, %v2210, 0
      %v2237 = vsel %vm273, %v2211, 0
      %v2240 = vsel %vm273, %v2212, 0
      %v2243 = vsel %vm273, %v2213, 0
      %v2246 = vsel %vm273, %v2214, 0
      %v2249 = vsel %vm273, %v2215, 0
      %v2252 = vsel %vm273, %v2216, 0
      %v2255 = vsel %vm273, %v2217, 0
      %v2258 = vsel %vm273, %v2218, 0
      %v2261 = vsel %vm273, %v2219, 0
      %v2264 = vsel %vm273, %v2220, 0
      %v2267 = vsel %vm273, %v2221, 0
      %v2270 = vsel %vm273, %v2222, 0
      %v2273 = vsel %vm273, %v2223, 0
      %v2276 = vsel %vm322, %v2226, 0
      %2278 = vmatprep.subr.bf16.mxu0 0
      %2279 = vmatpush1.bf16.msra.mxu0 0
      %2280 = vmatprep.subr.bf16.mxu0 0
      %2281 = vmatpush1.bf16.msra.mxu0 0
      %2282 = vmatprep.subr.bf16.mxu0 0
      %2283 = vmatpush1.bf16.msra.mxu0 0
      %2284 = vmatprep.subr.bf16.mxu0 0
      %2285 = vmatpush1.bf16.msra.mxu0 0
      %2286 = vmatprep.subr.bf16.mxu0 0
      %2287 = vmatpush1.bf16.msra.mxu0 0
      %2288 = vmatprep.subr.bf16.mxu0 0
      %2289 = vmatpush1.bf16.msra.mxu0 0
      %2290 = vmatprep.subr.bf16.mxu0 0
      %2291 = vmatpush1.bf16.msra.mxu0 0
      %2292 = vmatprep.subr.bf16.mxu0 0
      %2293 = vmatpush1.bf16.msra.mxu0 %v2276
      %2294 = vmatprep.subr.bf16.mxu0 0
      %2295 = vmatpush2.bf16.msra.mxu0 0
      %2296 = vmatprep.subr.bf16.mxu0 0
      %2297 = vmatpush2.bf16.msra.mxu0 0
      %2298 = vmatprep.subr.bf16.mxu0 0
      %2299 = vmatpush2.bf16.msra.mxu0 0
      %2300 = vmatprep.subr.bf16.mxu0 0
      %2301 = vmatpush2.bf16.msra.mxu0 0
      %2302 = vmatprep.subr.bf16.mxu0 0
      %2303 = vmatpush2.bf16.msra.mxu0 0
      %2304 = vmatprep.subr.bf16.mxu0 0
      %2305 = vmatpush2.bf16.msra.mxu0 0
      %2306 = vmatprep.subr.bf16.mxu0 0
      %2307 = vmatpush2.bf16.msra.mxu0 0
      %2308 = vmatprep.subr.bf16.mxu0 0
      %2309 = vmatpush2.bf16.msra.mxu0 0
      %2310 = vmatprep.mubr.bf16.mxu0 0
      %2311 = vmatmul.mubr.bf16.gmra.mxu0 %v2228
      %v2312 = vpop.f32.mrf.mxu0
      %v2313 = vadd.f32 0.0, %v2312
      %v2314 = vpop.f32.mrf.mxu0
      %v2315 = vpop.f32.mrf.mxu0
      %v2316 = vadd.f32 0.0, %v2315
      %v2317 = vpop.f32.mrf.mxu0
      %2318 = vmatprep.mubr.bf16.mxu0 0
      %2319 = vmatmul.mubr.bf16.gmra.mxu0 %v2231
      %v2320 = vpop.f32.mrf.mxu0
      %v2321 = vadd.f32 0.0, %v2320
      %v2322 = vpop.f32.mrf.mxu0
      %v2323 = vpop.f32.mrf.mxu0
      %v2324 = vadd.f32 0.0, %v2323
      %v2325 = vpop.f32.mrf.mxu0
      %2326 = vmatprep.mubr.bf16.mxu0 0
      %2327 = vmatmul.mubr.bf16.gmra.mxu0 %v2234
      %v2328 = vpop.f32.mrf.mxu0
      %v2329 = vadd.f32 0.0, %v2328
      %v2330 = vpop.f32.mrf.mxu0
      %v2331 = vpop.f32.mrf.mxu0
      %v2332 = vadd.f32 0.0, %v2331
      %v2333 = vpop.f32.mrf.mxu0
      %2334 = vmatprep.mubr.bf16.mxu0 0
      %2335 = vmatmul.mubr.bf16.gmra.mxu0 %v2237
      %v2336 = vpop.f32.mrf.mxu0
      %v2337 = vadd.f32 0.0, %v2336
      %v2338 = vpop.f32.mrf.mxu0
      %v2339 = vpop.f32.mrf.mxu0
      %v2340 = vadd.f32 0.0, %v2339
      %v2341 = vpop.f32.mrf.mxu0
      %2342 = vmatprep.mubr.bf16.mxu0 0
      %2343 = vmatmul.mubr.bf16.gmra.mxu0 %v2240
      %v2344 = vpop.f32.mrf.mxu0
      %v2345 = vadd.f32 0.0, %v2344
      %v2346 = vpop.f32.mrf.mxu0
      %v2347 = vpop.f32.mrf.mxu0
      %v2348 = vadd.f32 0.0, %v2347
      %v2349 = vpop.f32.mrf.mxu0
      %2350 = vmatprep.mubr.bf16.mxu0 0
      %2351 = vmatmul.mubr.bf16.gmra.mxu0 %v2243
      %v2352 = vpop.f32.mrf.mxu0
      %v2353 = vadd.f32 0.0, %v2352
      %v2354 = vpop.f32.mrf.mxu0
      %v2355 = vpop.f32.mrf.mxu0
      %v2356 = vadd.f32 0.0, %v2355
      %v2357 = vpop.f32.mrf.mxu0
      %2358 = vmatprep.mubr.bf16.mxu0 0
      %2359 = vmatmul.mubr.bf16.gmra.mxu0 %v2246
      %v2360 = vpop.f32.mrf.mxu0
      %v2361 = vadd.f32 0.0, %v2360
      %v2362 = vpop.f32.mrf.mxu0
      %v2363 = vpop.f32.mrf.mxu0
      %v2364 = vadd.f32 0.0, %v2363
      %v2365 = vpop.f32.mrf.mxu0
      %2366 = vmatprep.mubr.bf16.mxu0 0
      %2367 = vmatmul.mubr.bf16.gmra.mxu0 %v2249
      %v2368 = vpop.f32.mrf.mxu0
      %v2369 = vadd.f32 0.0, %v2368
      %v2370 = vpop.f32.mrf.mxu0
      %v2371 = vpop.f32.mrf.mxu0
      %v2372 = vadd.f32 0.0, %v2371
      %v2373 = vpop.f32.mrf.mxu0
      %2374 = vmatprep.mubr.bf16.mxu0 0
      %2375 = vmatmul.mubr.bf16.gmra.mxu0 %v2252
      %v2376 = vpop.f32.mrf.mxu0
      %v2377 = vadd.f32 0.0, %v2376
      %v2378 = vpop.f32.mrf.mxu0
      %v2379 = vpop.f32.mrf.mxu0
      %v2380 = vadd.f32 0.0, %v2379
      %v2381 = vpop.f32.mrf.mxu0
      %2382 = vmatprep.mubr.bf16.mxu0 0
      %2383 = vmatmul.mubr.bf16.gmra.mxu0 %v2255
      %v2384 = vpop.f32.mrf.mxu0
      %v2385 = vadd.f32 0.0, %v2384
      %v2386 = vpop.f32.mrf.mxu0
      %v2387 = vpop.f32.mrf.mxu0
      %v2388 = vadd.f32 0.0, %v2387
      %v2389 = vpop.f32.mrf.mxu0
      %2390 = vmatprep.mubr.bf16.mxu0 0
      %2391 = vmatmul.mubr.bf16.gmra.mxu0 %v2258
      %v2392 = vpop.f32.mrf.mxu0
      %v2393 = vadd.f32 0.0, %v2392
      %v2394 = vpop.f32.mrf.mxu0
      %v2395 = vpop.f32.mrf.mxu0
      %v2396 = vadd.f32 0.0, %v2395
      %v2397 = vpop.f32.mrf.mxu0
      %2398 = vmatprep.mubr.bf16.mxu0 0
      %2399 = vmatmul.mubr.bf16.gmra.mxu0 %v2261
      %v2400 = vpop.f32.mrf.mxu0
      %v2401 = vadd.f32 0.0, %v2400
      %v2402 = vpop.f32.mrf.mxu0
      %v2403 = vpop.f32.mrf.mxu0
      %v2404 = vadd.f32 0.0, %v2403
      %v2405 = vpop.f32.mrf.mxu0
      %2406 = vmatprep.mubr.bf16.mxu0 0
      %2407 = vmatmul.mubr.bf16.gmra.mxu0 %v2264
      %v2408 = vpop.f32.mrf.mxu0
      %v2409 = vadd.f32 0.0, %v2408
      %v2410 = vpop.f32.mrf.mxu0
      %v2411 = vpop.f32.mrf.mxu0
      %v2412 = vadd.f32 0.0, %v2411
      %v2413 = vpop.f32.mrf.mxu0
      %2414 = vmatprep.mubr.bf16.mxu0 0
      %2415 = vmatmul.mubr.bf16.gmra.mxu0 %v2267
      %v2416 = vpop.f32.mrf.mxu0
      %v2417 = vadd.f32 0.0, %v2416
      %v2418 = vpop.f32.mrf.mxu0
      %v2419 = vpop.f32.mrf.mxu0
      %v2420 = vadd.f32 0.0, %v2419
      %v2421 = vpop.f32.mrf.mxu0
      %2422 = vmatprep.mubr.bf16.mxu0 0
      %2423 = vmatmul.mubr.bf16.gmra.mxu0 %v2270
      %v2424 = vpop.f32.mrf.mxu0
      %v2425 = vadd.f32 0.0, %v2424
      %v2426 = vpop.f32.mrf.mxu0
      %v2427 = vpop.f32.mrf.mxu0
      %v2428 = vadd.f32 0.0, %v2427
      %v2429 = vpop.f32.mrf.mxu0
      %2430 = vmatprep.mubr.bf16.mxu0 0
      %2431 = vmatmul.mubr.bf16.gmra.mxu0 %v2273
      %v2432 = vpop.f32.mrf.mxu0
      %v2433 = vadd.f32 0.0, %v2432
      %v2434 = vpop.f32.mrf.mxu0
      %v2435 = vpop.f32.mrf.mxu0
      %v2436 = vadd.f32 0.0, %v2435
      %v2437 = vpop.f32.mrf.mxu0
      %2438 = vdwg.mxu0
      %v2439 = vadd.f32 %v2144, %v2313
      %v2440 = vadd.f32 %v2145, %v2316
      %v2441 = vadd.f32 %v2146, %v2321
      %v2442 = vadd.f32 %v2147, %v2324
      %v2443 = vadd.f32 %v2148, %v2329
      %v2444 = vadd.f32 %v2149, %v2332
      %v2445 = vadd.f32 %v2150, %v2337
      %v2446 = vadd.f32 %v2151, %v2340
      %v2447 = vadd.f32 %v2152, %v2345
      %v2448 = vadd.f32 %v2153, %v2348
      %v2449 = vadd.f32 %v2154, %v2353
      %v2450 = vadd.f32 %v2155, %v2356
      %v2451 = vadd.f32 %v2156, %v2361
      %v2452 = vadd.f32 %v2157, %v2364
      %v2453 = vadd.f32 %v2158, %v2369
      %v2454 = vadd.f32 %v2159, %v2372
      %v2455 = vadd.f32 %v2160, %v2377
      %v2456 = vadd.f32 %v2161, %v2380
      %v2457 = vadd.f32 %v2162, %v2385
      %v2458 = vadd.f32 %v2163, %v2388
      %v2459 = vadd.f32 %v2164, %v2393
      %v2460 = vadd.f32 %v2165, %v2396
      %v2461 = vadd.f32 %v2166, %v2401
      %v2462 = vadd.f32 %v2167, %v2404
      %v2463 = vadd.f32 %v2168, %v2409
      %v2464 = vadd.f32 %v2169, %v2412
      %v2465 = vadd.f32 %v2170, %v2417
      %v2466 = vadd.f32 %v2171, %v2420
      %v2467 = vadd.f32 %v2172, %v2425
      %v2468 = vadd.f32 %v2173, %v2428
      %v2469 = vadd.f32 %v2174, %v2433
      %v2470 = vadd.f32 %v2175, %v2436
      %v2471 = vld [vmem:[%s1880 + $0x2] sm:$0xff]
      %v2472 = vld [vmem:[%s1880 + $0xa] sm:$0xff]
      %v2473 = vld [vmem:[%s1880 + $0x1a] sm:$0xff]
      %v2474 = vld [vmem:[%s1880 + $0x22] sm:$0xff]
      %v2475 = vld [vmem:[%s1880 + $0x32] sm:$0xff]
      %v2476 = vld [vmem:[%s1880 + $0x3a] sm:$0xff]
      %v2477 = vld [vmem:[%s1880 + $0x4a] sm:$0xff]
      %v2478 = vld [vmem:[%s1880 + $0x52] sm:$0xff]
      %v2479 = vld [vmem:[%s1880 + $0x62] sm:$0xff]
      %v2480 = vld [vmem:[%s1880 + $0x6a] sm:$0xff]
      %v2481 = vld [vmem:[%s1880 + $0x7a] sm:$0xff]
      %v2482 = vld [vmem:[%s1880 + $0x82] sm:$0xff]
      %v2483 = vld [vmem:[%s1880 + $0x92] sm:$0xff]
      %v2484 = vld [vmem:[%s1880 + $0x9a] sm:$0xff]
      %v2485 = vld [vmem:[%s1880 + $0xaa] sm:$0xff]
      %v2486 = vld [vmem:[%s1880 + $0xb2] sm:$0xff]
      %v2487 = vld [vmem:[%s1880 + $0xc2] sm:$0xff]
      %v2488 = vld [vmem:[%s1880 + $0xca] sm:$0xff]
      %v2489 = vld [vmem:[%s1880 + $0xda] sm:$0xff]
      %v2490 = vld [vmem:[%s1880 + $0xe2] sm:$0xff]
      %v2491 = vld [vmem:[%s1880 + $0xf2] sm:$0xff]
      %v2492 = vld [vmem:[%s1880 + $0xfa] sm:$0xff]
      %v2493 = vld [vmem:[%s1880 + $0x10a] sm:$0xff]
      %v2494 = vld [vmem:[%s1880 + $0x112] sm:$0xff]
      %v2495 = vld [vmem:[%s1880 + $0x122] sm:$0xff]
      %v2496 = vld [vmem:[%s1880 + $0x12a] sm:$0xff]
      %v2497 = vld [vmem:[%s1880 + $0x13a] sm:$0xff]
      %v2498 = vld [vmem:[%s1880 + $0x142] sm:$0xff]
      %v2499 = vld [vmem:[%s1880 + $0x152] sm:$0xff]
      %v2500 = vld [vmem:[%s1880 + $0x15a] sm:$0xff]
      %v2501 = vld [vmem:[%s1880 + $0x16a] sm:$0xff]
      %v2502 = vld [vmem:[%s1880 + $0x172] sm:$0xff]
      %v2503 = vpack.c.bf16 %v2472, %v2471
      %v2504 = vpack.c.bf16 %v2474, %v2473
      %v2505 = vpack.c.bf16 %v2476, %v2475
      %v2506 = vpack.c.bf16 %v2478, %v2477
      %v2507 = vpack.c.bf16 %v2480, %v2479
      %v2508 = vpack.c.bf16 %v2482, %v2481
      %v2509 = vpack.c.bf16 %v2484, %v2483
      %v2510 = vpack.c.bf16 %v2486, %v2485
      %v2511 = vpack.c.bf16 %v2488, %v2487
      %v2512 = vpack.c.bf16 %v2490, %v2489
      %v2513 = vpack.c.bf16 %v2492, %v2491
      %v2514 = vpack.c.bf16 %v2494, %v2493
      %v2515 = vpack.c.bf16 %v2496, %v2495
      %v2516 = vpack.c.bf16 %v2498, %v2497
      %v2517 = vpack.c.bf16 %v2500, %v2499
      %v2518 = vpack.c.bf16 %v2502, %v2501
      %s2519 = scalar_lea.vmem %s1, 32
      %v2520 = vld [vmem:[%s2519] sm:$0xf]
      %v2521 = vpack.c.bf16 %v2520, %v2520
      %v2523 = vsel %vm273, %v2503, 0
      %v2526 = vsel %vm273, %v2504, 0
      %v2529 = vsel %vm273, %v2505, 0
      %v2532 = vsel %vm273, %v2506, 0
      %v2535 = vsel %vm273, %v2507, 0
      %v2538 = vsel %vm273, %v2508, 0
      %v2541 = vsel %vm273, %v2509, 0
      %v2544 = vsel %vm273, %v2510, 0
      %v2547 = vsel %vm273, %v2511, 0
      %v2550 = vsel %vm273, %v2512, 0
      %v2553 = vsel %vm273, %v2513, 0
      %v2556 = vsel %vm273, %v2514, 0
      %v2559 = vsel %vm273, %v2515, 0
      %v2562 = vsel %vm273, %v2516, 0
      %v2565 = vsel %vm273, %v2517, 0
      %v2568 = vsel %vm273, %v2518, 0
      %v2571 = vsel %vm322, %v2521, 0
      %2573 = vmatprep.subr.bf16.mxu0 0
      %2574 = vmatpush1.bf16.msra.mxu0 0
      %2575 = vmatprep.subr.bf16.mxu0 0
      %2576 = vmatpush1.bf16.msra.mxu0 0
      %2577 = vmatprep.subr.bf16.mxu0 0
      %2578 = vmatpush1.bf16.msra.mxu0 0
      %2579 = vmatprep.subr.bf16.mxu0 0
      %2580 = vmatpush1.bf16.msra.mxu0 0
      %2581 = vmatprep.subr.bf16.mxu0 0
      %2582 = vmatpush1.bf16.msra.mxu0 0
      %2583 = vmatprep.subr.bf16.mxu0 0
      %2584 = vmatpush1.bf16.msra.mxu0 0
      %2585 = vmatprep.subr.bf16.mxu0 0
      %2586 = vmatpush1.bf16.msra.mxu0 0
      %2587 = vmatprep.subr.bf16.mxu0 0
      %2588 = vmatpush1.bf16.msra.mxu0 %v2571
      %2589 = vmatprep.subr.bf16.mxu0 0
      %2590 = vmatpush2.bf16.msra.mxu0 0
      %2591 = vmatprep.subr.bf16.mxu0 0
      %2592 = vmatpush2.bf16.msra.mxu0 0
      %2593 = vmatprep.subr.bf16.mxu0 0
      %2594 = vmatpush2.bf16.msra.mxu0 0
      %2595 = vmatprep.subr.bf16.mxu0 0
      %2596 = vmatpush2.bf16.msra.mxu0 0
      %2597 = vmatprep.subr.bf16.mxu0 0
      %2598 = vmatpush2.bf16.msra.mxu0 0
      %2599 = vmatprep.subr.bf16.mxu0 0
      %2600 = vmatpush2.bf16.msra.mxu0 0
      %2601 = vmatprep.subr.bf16.mxu0 0
      %2602 = vmatpush2.bf16.msra.mxu0 0
      %2603 = vmatprep.subr.bf16.mxu0 0
      %2604 = vmatpush2.bf16.msra.mxu0 0
      %2605 = vmatprep.mubr.bf16.mxu0 0
      %2606 = vmatmul.mubr.bf16.gmra.mxu0 %v2523
      %v2607 = vpop.f32.mrf.mxu0
      %v2608 = vadd.f32 0.0, %v2607
      %v2609 = vpop.f32.mrf.mxu0
      %v2610 = vpop.f32.mrf.mxu0
      %v2611 = vadd.f32 0.0, %v2610
      %v2612 = vpop.f32.mrf.mxu0
      %2613 = vmatprep.mubr.bf16.mxu0 0
      %2614 = vmatmul.mubr.bf16.gmra.mxu0 %v2526
      %v2615 = vpop.f32.mrf.mxu0
      %v2616 = vadd.f32 0.0, %v2615
      %v2617 = vpop.f32.mrf.mxu0
      %v2618 = vpop.f32.mrf.mxu0
      %v2619 = vadd.f32 0.0, %v2618
      %v2620 = vpop.f32.mrf.mxu0
      %2621 = vmatprep.mubr.bf16.mxu0 0
      %2622 = vmatmul.mubr.bf16.gmra.mxu0 %v2529
      %v2623 = vpop.f32.mrf.mxu0
      %v2624 = vadd.f32 0.0, %v2623
      %v2625 = vpop.f32.mrf.mxu0
      %v2626 = vpop.f32.mrf.mxu0
      %v2627 = vadd.f32 0.0, %v2626
      %v2628 = vpop.f32.mrf.mxu0
      %2629 = vmatprep.mubr.bf16.mxu0 0
      %2630 = vmatmul.mubr.bf16.gmra.mxu0 %v2532
      %v2631 = vpop.f32.mrf.mxu0
      %v2632 = vadd.f32 0.0, %v2631
      %v2633 = vpop.f32.mrf.mxu0
      %v2634 = vpop.f32.mrf.mxu0
      %v2635 = vadd.f32 0.0, %v2634
      %v2636 = vpop.f32.mrf.mxu0
      %2637 = vmatprep.mubr.bf16.mxu0 0
      %2638 = vmatmul.mubr.bf16.gmra.mxu0 %v2535
      %v2639 = vpop.f32.mrf.mxu0
      %v2640 = vadd.f32 0.0, %v2639
      %v2641 = vpop.f32.mrf.mxu0
      %v2642 = vpop.f32.mrf.mxu0
      %v2643 = vadd.f32 0.0, %v2642
      %v2644 = vpop.f32.mrf.mxu0
      %2645 = vmatprep.mubr.bf16.mxu0 0
      %2646 = vmatmul.mubr.bf16.gmra.mxu0 %v2538
      %v2647 = vpop.f32.mrf.mxu0
      %v2648 = vadd.f32 0.0, %v2647
      %v2649 = vpop.f32.mrf.mxu0
      %v2650 = vpop.f32.mrf.mxu0
      %v2651 = vadd.f32 0.0, %v2650
      %v2652 = vpop.f32.mrf.mxu0
      %2653 = vmatprep.mubr.bf16.mxu0 0
      %2654 = vmatmul.mubr.bf16.gmra.mxu0 %v2541
      %v2655 = vpop.f32.mrf.mxu0
      %v2656 = vadd.f32 0.0, %v2655
      %v2657 = vpop.f32.mrf.mxu0
      %v2658 = vpop.f32.mrf.mxu0
      %v2659 = vadd.f32 0.0, %v2658
      %v2660 = vpop.f32.mrf.mxu0
      %2661 = vmatprep.mubr.bf16.mxu0 0
      %2662 = vmatmul.mubr.bf16.gmra.mxu0 %v2544
      %v2663 = vpop.f32.mrf.mxu0
      %v2664 = vadd.f32 0.0, %v2663
      %v2665 = vpop.f32.mrf.mxu0
      %v2666 = vpop.f32.mrf.mxu0
      %v2667 = vadd.f32 0.0, %v2666
      %v2668 = vpop.f32.mrf.mxu0
      %2669 = vmatprep.mubr.bf16.mxu0 0
      %2670 = vmatmul.mubr.bf16.gmra.mxu0 %v2547
      %v2671 = vpop.f32.mrf.mxu0
      %v2672 = vadd.f32 0.0, %v2671
      %v2673 = vpop.f32.mrf.mxu0
      %v2674 = vpop.f32.mrf.mxu0
      %v2675 = vadd.f32 0.0, %v2674
      %v2676 = vpop.f32.mrf.mxu0
      %2677 = vmatprep.mubr.bf16.mxu0 0
      %2678 = vmatmul.mubr.bf16.gmra.mxu0 %v2550
      %v2679 = vpop.f32.mrf.mxu0
      %v2680 = vadd.f32 0.0, %v2679
      %v2681 = vpop.f32.mrf.mxu0
      %v2682 = vpop.f32.mrf.mxu0
      %v2683 = vadd.f32 0.0, %v2682
      %v2684 = vpop.f32.mrf.mxu0
      %2685 = vmatprep.mubr.bf16.mxu0 0
      %2686 = vmatmul.mubr.bf16.gmra.mxu0 %v2553
      %v2687 = vpop.f32.mrf.mxu0
      %v2688 = vadd.f32 0.0, %v2687
      %v2689 = vpop.f32.mrf.mxu0
      %v2690 = vpop.f32.mrf.mxu0
      %v2691 = vadd.f32 0.0, %v2690
      %v2692 = vpop.f32.mrf.mxu0
      %2693 = vmatprep.mubr.bf16.mxu0 0
      %2694 = vmatmul.mubr.bf16.gmra.mxu0 %v2556
      %v2695 = vpop.f32.mrf.mxu0
      %v2696 = vadd.f32 0.0, %v2695
      %v2697 = vpop.f32.mrf.mxu0
      %v2698 = vpop.f32.mrf.mxu0
      %v2699 = vadd.f32 0.0, %v2698
      %v2700 = vpop.f32.mrf.mxu0
      %2701 = vmatprep.mubr.bf16.mxu0 0
      %2702 = vmatmul.mubr.bf16.gmra.mxu0 %v2559
      %v2703 = vpop.f32.mrf.mxu0
      %v2704 = vadd.f32 0.0, %v2703
      %v2705 = vpop.f32.mrf.mxu0
      %v2706 = vpop.f32.mrf.mxu0
      %v2707 = vadd.f32 0.0, %v2706
      %v2708 = vpop.f32.mrf.mxu0
      %2709 = vmatprep.mubr.bf16.mxu0 0
      %2710 = vmatmul.mubr.bf16.gmra.mxu0 %v2562
      %v2711 = vpop.f32.mrf.mxu0
      %v2712 = vadd.f32 0.0, %v2711
      %v2713 = vpop.f32.mrf.mxu0
      %v2714 = vpop.f32.mrf.mxu0
      %v2715 = vadd.f32 0.0, %v2714
      %v2716 = vpop.f32.mrf.mxu0
      %2717 = vmatprep.mubr.bf16.mxu0 0
      %2718 = vmatmul.mubr.bf16.gmra.mxu0 %v2565
      %v2719 = vpop.f32.mrf.mxu0
      %v2720 = vadd.f32 0.0, %v2719
      %v2721 = vpop.f32.mrf.mxu0
      %v2722 = vpop.f32.mrf.mxu0
      %v2723 = vadd.f32 0.0, %v2722
      %v2724 = vpop.f32.mrf.mxu0
      %2725 = vmatprep.mubr.bf16.mxu0 0
      %2726 = vmatmul.mubr.bf16.gmra.mxu0 %v2568
      %v2727 = vpop.f32.mrf.mxu0
      %v2728 = vadd.f32 0.0, %v2727
      %v2729 = vpop.f32.mrf.mxu0
      %v2730 = vpop.f32.mrf.mxu0
      %v2731 = vadd.f32 0.0, %v2730
      %v2732 = vpop.f32.mrf.mxu0
      %2733 = vdwg.mxu0
      %v2734 = vadd.f32 %v2439, %v2608
      %v2735 = vadd.f32 %v2440, %v2611
      %v2736 = vadd.f32 %v2441, %v2616
      %v2737 = vadd.f32 %v2442, %v2619
      %v2738 = vadd.f32 %v2443, %v2624
      %v2739 = vadd.f32 %v2444, %v2627
      %v2740 = vadd.f32 %v2445, %v2632
      %v2741 = vadd.f32 %v2446, %v2635
      %v2742 = vadd.f32 %v2447, %v2640
      %v2743 = vadd.f32 %v2448, %v2643
      %v2744 = vadd.f32 %v2449, %v2648
      %v2745 = vadd.f32 %v2450, %v2651
      %v2746 = vadd.f32 %v2451, %v2656
      %v2747 = vadd.f32 %v2452, %v2659
      %v2748 = vadd.f32 %v2453, %v2664
      %v2749 = vadd.f32 %v2454, %v2667
      %v2750 = vadd.f32 %v2455, %v2672
      %v2751 = vadd.f32 %v2456, %v2675
      %v2752 = vadd.f32 %v2457, %v2680
      %v2753 = vadd.f32 %v2458, %v2683
      %v2754 = vadd.f32 %v2459, %v2688
      %v2755 = vadd.f32 %v2460, %v2691
      %v2756 = vadd.f32 %v2461, %v2696
      %v2757 = vadd.f32 %v2462, %v2699
      %v2758 = vadd.f32 %v2463, %v2704
      %v2759 = vadd.f32 %v2464, %v2707
      %v2760 = vadd.f32 %v2465, %v2712
      %v2761 = vadd.f32 %v2466, %v2715
      %v2762 = vadd.f32 %v2467, %v2720
      %v2763 = vadd.f32 %v2468, %v2723
      %v2764 = vadd.f32 %v2469, %v2728
      %v2765 = vadd.f32 %v2470, %v2731
      %v2766 = vld [vmem:[%s2] sm:$0x1]
      %v2768 = vlaneseq
      %v2769 = vshrl.u32 %v2768, 7
      %v2770 = vsub.s32 0, %v2769
      %v2771 = vrot.slane %v2766, %v2770
      %v2773 = vadd.f32 %v2734, %v2771
      %v2774 = vadd.f32 %v2735, %v2771
      %v2775 = vadd.f32 %v2736, %v2771
      %v2776 = vadd.f32 %v2737, %v2771
      %v2777 = vadd.f32 %v2738, %v2771
      %v2778 = vadd.f32 %v2739, %v2771
      %v2779 = vadd.f32 %v2740, %v2771
      %v2780 = vadd.f32 %v2741, %v2771
      %v2781 = vadd.f32 %v2742, %v2771
      %v2782 = vadd.f32 %v2743, %v2771
      %v2783 = vadd.f32 %v2744, %v2771
      %v2784 = vadd.f32 %v2745, %v2771
      %v2785 = vadd.f32 %v2746, %v2771
      %v2786 = vadd.f32 %v2747, %v2771
      %v2787 = vadd.f32 %v2748, %v2771
      %v2788 = vadd.f32 %v2749, %v2771
      %v2789 = vadd.f32 %v2750, %v2771
      %v2790 = vadd.f32 %v2751, %v2771
      %v2791 = vadd.f32 %v2752, %v2771
      %v2792 = vadd.f32 %v2753, %v2771
      %v2793 = vadd.f32 %v2754, %v2771
      %v2794 = vadd.f32 %v2755, %v2771
      %v2795 = vadd.f32 %v2756, %v2771
      %v2796 = vadd.f32 %v2757, %v2771
      %v2797 = vadd.f32 %v2758, %v2771
      %v2798 = vadd.f32 %v2759, %v2771
      %v2799 = vadd.f32 %v2760, %v2771
      %v2800 = vadd.f32 %v2761, %v2771
      %v2801 = vadd.f32 %v2762, %v2771
      %v2802 = vadd.f32 %v2763, %v2771
      %v2803 = vadd.f32 %v2764, %v2771
      %v2804 = vadd.f32 %v2765, %v2771
      %v2805 = vmax.f32 %v2773, 0.0
      %v2806 = vmax.f32 %v2774, 0.0
      %v2807 = vmax.f32 %v2775, 0.0
      %v2808 = vmax.f32 %v2776, 0.0
      %v2809 = vmax.f32 %v2777, 0.0
      %v2810 = vmax.f32 %v2778, 0.0
      %v2811 = vmax.f32 %v2779, 0.0
      %v2812 = vmax.f32 %v2780, 0.0
      %v2813 = vmax.f32 %v2781, 0.0
      %v2814 = vmax.f32 %v2782, 0.0
      %v2815 = vmax.f32 %v2783, 0.0
      %v2816 = vmax.f32 %v2784, 0.0
      %v2817 = vmax.f32 %v2785, 0.0
      %v2818 = vmax.f32 %v2786, 0.0
      %v2819 = vmax.f32 %v2787, 0.0
      %v2820 = vmax.f32 %v2788, 0.0
      %v2821 = vmax.f32 %v2789, 0.0
      %v2822 = vmax.f32 %v2790, 0.0
      %v2823 = vmax.f32 %v2791, 0.0
      %v2824 = vmax.f32 %v2792, 0.0
      %v2825 = vmax.f32 %v2793, 0.0
      %v2826 = vmax.f32 %v2794, 0.0
      %v2827 = vmax.f32 %v2795, 0.0
      %v2828 = vmax.f32 %v2796, 0.0
      %v2829 = vmax.f32 %v2797, 0.0
      %v2830 = vmax.f32 %v2798, 0.0
      %v2831 = vmax.f32 %v2799, 0.0
      %v2832 = vmax.f32 %v2800, 0.0
      %v2833 = vmax.f32 %v2801, 0.0
      %v2834 = vmax.f32 %v2802, 0.0
      %v2835 = vmax.f32 %v2803, 0.0
      %v2836 = vmax.f32 %v2804, 0.0
      %2837 = vst [vmem:[#allocation2] sm:$0xff] %v2805
      %2838 = vst [vmem:[#allocation2 + $0x8] sm:$0xff] %v2806
      %2839 = vst [vmem:[#allocation2 + $0x10] sm:$0xff] %v2807
      %2840 = vst [vmem:[#allocation2 + $0x18] sm:$0xff] %v2808
      %2841 = vst [vmem:[#allocation2 + $0x20] sm:$0xff] %v2809
      %2842 = vst [vmem:[#allocation2 + $0x28] sm:$0xff] %v2810
      %2843 = vst [vmem:[#allocation2 + $0x30] sm:$0xff] %v2811
      %2844 = vst [vmem:[#allocation2 + $0x38] sm:$0xff] %v2812
      %2845 = vst [vmem:[#allocation2 + $0x40] sm:$0xff] %v2813
      %2846 = vst [vmem:[#allocation2 + $0x48] sm:$0xff] %v2814
      %2847 = vst [vmem:[#allocation2 + $0x50] sm:$0xff] %v2815
      %2848 = vst [vmem:[#allocation2 + $0x58] sm:$0xff] %v2816
      %2849 = vst [vmem:[#allocation2 + $0x60] sm:$0xff] %v2817
      %2850 = vst [vmem:[#allocation2 + $0x68] sm:$0xff] %v2818
      %2851 = vst [vmem:[#allocation2 + $0x70] sm:$0xff] %v2819
      %2852 = vst [vmem:[#allocation2 + $0x78] sm:$0xff] %v2820
      %2853 = vst [vmem:[#allocation2 + $0x80] sm:$0xff] %v2821
      %2854 = vst [vmem:[#allocation2 + $0x88] sm:$0xff] %v2822
      %2855 = vst [vmem:[#allocation2 + $0x90] sm:$0xff] %v2823
      %2856 = vst [vmem:[#allocation2 + $0x98] sm:$0xff] %v2824
      %2857 = vst [vmem:[#allocation2 + $0xa0] sm:$0xff] %v2825
      %2858 = vst [vmem:[#allocation2 + $0xa8] sm:$0xff] %v2826
      %2859 = vst [vmem:[#allocation2 + $0xb0] sm:$0xff] %v2827
      %2860 = vst [vmem:[#allocation2 + $0xb8] sm:$0xff] %v2828
      %2861 = vst [vmem:[#allocation2 + $0xc0] sm:$0xff] %v2829
      %2862 = vst [vmem:[#allocation2 + $0xc8] sm:$0xff] %v2830
      %2863 = vst [vmem:[#allocation2 + $0xd0] sm:$0xff] %v2831
      %2864 = vst [vmem:[#allocation2 + $0xd8] sm:$0xff] %v2832
      %2865 = vst [vmem:[#allocation2 + $0xe0] sm:$0xff] %v2833
      %2866 = vst [vmem:[#allocation2 + $0xe8] sm:$0xff] %v2834
      %2867 = vst [vmem:[#allocation2 + $0xf0] sm:$0xff] %v2835
      %2868 = vst [vmem:[#allocation2 + $0xf8] sm:$0xff] %v2836
      %v2869 = vld [vmem:[#allocation2] sm:$0xff]
      %v2870 = vld [vmem:[#allocation2 + $0x8] sm:$0xff]
      %v2871 = vld [vmem:[#allocation2 + $0x20] sm:$0xff]
      %v2872 = vld [vmem:[#allocation2 + $0x28] sm:$0xff]
      %v2873 = vld [vmem:[#allocation2 + $0x40] sm:$0xff]
      %v2874 = vld [vmem:[#allocation2 + $0x48] sm:$0xff]
      %v2875 = vld [vmem:[#allocation2 + $0x60] sm:$0xff]
      %v2876 = vld [vmem:[#allocation2 + $0x68] sm:$0xff]
      %v2877 = vld [vmem:[#allocation2 + $0x80] sm:$0xff]
      %v2878 = vld [vmem:[#allocation2 + $0x88] sm:$0xff]
      %v2879 = vld [vmem:[#allocation2 + $0xa0] sm:$0xff]
      %v2880 = vld [vmem:[#allocation2 + $0xa8] sm:$0xff]
      %v2881 = vld [vmem:[#allocation2 + $0xc0] sm:$0xff]
      %v2882 = vld [vmem:[#allocation2 + $0xc8] sm:$0xff]
      %s2883 = scalar_lea.vmem [#allocation2], 16
      %v2884 = vld [vmem:[%s2883] sm:$0xff]
      %v2885 = vld [vmem:[%s2883 + $0x8] sm:$0xff]
      %v2886 = vld [vmem:[%s2883 + $0x20] sm:$0xff]
      %v2887 = vld [vmem:[%s2883 + $0x28] sm:$0xff]
      %v2888 = vld [vmem:[%s2883 + $0x40] sm:$0xff]
      %v2889 = vld [vmem:[%s2883 + $0x48] sm:$0xff]
      %v2890 = vld [vmem:[%s2883 + $0x60] sm:$0xff]
      %v2891 = vld [vmem:[%s2883 + $0x68] sm:$0xff]
      %v2892 = vld [vmem:[%s2883 + $0x80] sm:$0xff]
      %v2893 = vld [vmem:[%s2883 + $0x88] sm:$0xff]
      %v2894 = vld [vmem:[%s2883 + $0xa0] sm:$0xff]
      %v2895 = vld [vmem:[%s2883 + $0xa8] sm:$0xff]
      %v2896 = vld [vmem:[%s2883 + $0xc0] sm:$0xff]
      %v2897 = vld [vmem:[%s2883 + $0xc8] sm:$0xff]
      %v2898 = vmax.f32 %v2869, %v2884
      %v2899 = vmax.f32 %v2870, %v2885
      %v2900 = vmax.f32 %v2871, %v2886
      %v2901 = vmax.f32 %v2872, %v2887
      %v2902 = vmax.f32 %v2873, %v2888
      %v2903 = vmax.f32 %v2874, %v2889
      %v2904 = vmax.f32 %v2875, %v2890
      %v2905 = vmax.f32 %v2876, %v2891
      %v2906 = vmax.f32 %v2877, %v2892
      %v2907 = vmax.f32 %v2878, %v2893
      %v2908 = vmax.f32 %v2879, %v2894
      %v2909 = vmax.f32 %v2880, %v2895
      %v2910 = vmax.f32 %v2881, %v2896
      %v2911 = vmax.f32 %v2882, %v2897
      %s2912 = scalar_lea.vmem [#allocation2], 32
      %v2913 = vld [vmem:[%s2912] sm:$0xff]
      %v2914 = vld [vmem:[%s2912 + $0x8] sm:$0xff]
      %v2915 = vld [vmem:[%s2912 + $0x20] sm:$0xff]
      %v2916 = vld [vmem:[%s2912 + $0x28] sm:$0xff]
      %v2917 = vld [vmem:[%s2912 + $0x40] sm:$0xff]
      %v2918 = vld [vmem:[%s2912 + $0x48] sm:$0xff]
      %v2919 = vld [vmem:[%s2912 + $0x60] sm:$0xff]
      %v2920 = vld [vmem:[%s2912 + $0x68] sm:$0xff]
      %v2921 = vld [vmem:[%s2912 + $0x80] sm:$0xff]
      %v2922 = vld [vmem:[%s2912 + $0x88] sm:$0xff]
      %v2923 = vld [vmem:[%s2912 + $0xa0] sm:$0xff]
      %v2924 = vld [vmem:[%s2912 + $0xa8] sm:$0xff]
      %v2925 = vld [vmem:[%s2912 + $0xc0] sm:$0xff]
      %v2926 = vld [vmem:[%s2912 + $0xc8] sm:$0xff]
      %v2927 = vmax.f32 %v2898, %v2913
      %v2928 = vmax.f32 %v2899, %v2914
      %v2929 = vmax.f32 %v2900, %v2915
      %v2930 = vmax.f32 %v2901, %v2916
      %v2931 = vmax.f32 %v2902, %v2917
      %v2932 = vmax.f32 %v2903, %v2918
      %v2933 = vmax.f32 %v2904, %v2919
      %v2934 = vmax.f32 %v2905, %v2920
      %v2935 = vmax.f32 %v2906, %v2921
      %v2936 = vmax.f32 %v2907, %v2922
      %v2937 = vmax.f32 %v2908, %v2923
      %v2938 = vmax.f32 %v2909, %v2924
      %v2939 = vmax.f32 %v2910, %v2925
      %v2940 = vmax.f32 %v2911, %v2926
      %2941 = vst [vmem:[#allocation3] sm:$0xff] %v2927
      %2942 = vst [vmem:[#allocation3 + $0x8] sm:$0xff] %v2928
      %2943 = vst [vmem:[#allocation3 + $0x10] sm:$0xff] %v2929
      %2944 = vst [vmem:[#allocation3 + $0x18] sm:$0xff] %v2930
      %2945 = vst [vmem:[#allocation3 + $0x20] sm:$0xff] %v2931
      %2946 = vst [vmem:[#allocation3 + $0x28] sm:$0xff] %v2932
      %2947 = vst [vmem:[#allocation3 + $0x30] sm:$0xff] %v2933
      %2948 = vst [vmem:[#allocation3 + $0x38] sm:$0xff] %v2934
      %2949 = vst [vmem:[#allocation3 + $0x40] sm:$0xff] %v2935
      %2950 = vst [vmem:[#allocation3 + $0x48] sm:$0xff] %v2936
      %2951 = vst [vmem:[#allocation3 + $0x50] sm:$0xff] %v2937
      %2952 = vst [vmem:[#allocation3 + $0x58] sm:$0xff] %v2938
      %2953 = vst [vmem:[#allocation3 + $0x60] sm:$0xff] %v2939
      %2954 = vst [vmem:[#allocation3 + $0x68] sm:$0xff] %v2940
      %v2955 = vld [vmem:[#allocation3] ss:$2 sm:$0x7f]
      %s2956 = scalar_lea.vmem [#allocation3], 16
      %v2957 = vld [vmem:[%s2956] ss:$2 sm:$0x7f]
      %s2958 = scalar_lea.vmem [#allocation3], 32
      %v2959 = vld [vmem:[%s2958] ss:$2 sm:$0x7f]
      %s2960 = scalar_lea.vmem [#allocation3], 48
      %v2961 = vld [vmem:[%s2960] ss:$2 sm:$0x7f]
      %s2962 = scalar_lea.vmem [#allocation3], 64
      %v2963 = vld [vmem:[%s2962] ss:$2 sm:$0x7f]
      %s2964 = scalar_lea.vmem [#allocation3], 80
      %v2965 = vld [vmem:[%s2964] ss:$2 sm:$0x7f]
      %s2966 = scalar_lea.vmem [#allocation3], 96
      %v2967 = vld [vmem:[%s2966] ss:$2 sm:$0x7f]
      %s2968 = scalar_lea.vmem [#allocation3], 1
      %v2969 = vld [vmem:[%s2968] ss:$2 sm:$0x7f]
      %s2970 = scalar_lea.vmem [#allocation3], 17
      %v2971 = vld [vmem:[%s2970] ss:$2 sm:$0x7f]
      %s2972 = scalar_lea.vmem [#allocation3], 33
      %v2973 = vld [vmem:[%s2972] ss:$2 sm:$0x7f]
      %s2974 = scalar_lea.vmem [#allocation3], 49
      %v2975 = vld [vmem:[%s2974] ss:$2 sm:$0x7f]
      %s2976 = scalar_lea.vmem [#allocation3], 65
      %v2977 = vld [vmem:[%s2976] ss:$2 sm:$0x7f]
      %s2978 = scalar_lea.vmem [#allocation3], 81
      %v2979 = vld [vmem:[%s2978] ss:$2 sm:$0x7f]
      %s2980 = scalar_lea.vmem [#allocation3], 97
      %v2981 = vld [vmem:[%s2980] ss:$2 sm:$0x7f]
      %v2982 = vmax.f32 %v2955, %v2969
      %v2983 = vmax.f32 %v2957, %v2971
      %v2984 = vmax.f32 %v2959, %v2973
      %v2985 = vmax.f32 %v2961, %v2975
      %v2986 = vmax.f32 %v2963, %v2977
      %v2987 = vmax.f32 %v2965, %v2979
      %v2988 = vmax.f32 %v2967, %v2981
      %s2989 = scalar_lea.vmem [#allocation3], 2
      %v2990 = vld [vmem:[%s2989] ss:$2 sm:$0x7f]
      %s2991 = scalar_lea.vmem [#allocation3], 18
      %v2992 = vld [vmem:[%s2991] ss:$2 sm:$0x7f]
      %s2993 = scalar_lea.vmem [#allocation3], 34
      %v2994 = vld [vmem:[%s2993] ss:$2 sm:$0x7f]
      %s2995 = scalar_lea.vmem [#allocation3], 50
      %v2996 = vld [vmem:[%s2995] ss:$2 sm:$0x7f]
      %s2997 = scalar_lea.vmem [#allocation3], 66
      %v2998 = vld [vmem:[%s2997] ss:$2 sm:$0x7f]
      %s2999 = scalar_lea.vmem [#allocation3], 82
      %v3000 = vld [vmem:[%s2999] ss:$2 sm:$0x7f]
      %s3001 = scalar_lea.vmem [#allocation3], 98
      %v3002 = vld [vmem:[%s3001] ss:$2 sm:$0x7f]
      %v3003 = vmax.f32 %v2982, %v2990
      %v3004 = vmax.f32 %v2983, %v2992
      %v3005 = vmax.f32 %v2984, %v2994
      %v3006 = vmax.f32 %v2985, %v2996
      %v3007 = vmax.f32 %v2986, %v2998
      %v3008 = vmax.f32 %v2987, %v3000
      %v3009 = vmax.f32 %v2988, %v3002
      %3010 = vst [vmem:[%s170] sm:$0x7f] %v3003
      %3011 = vst [vmem:[%s170 + $0x8] sm:$0x7f] %v3004
      %3012 = vst [vmem:[%s170 + $0x10] sm:$0x7f] %v3005
      %3013 = vst [vmem:[%s170 + $0x18] sm:$0x7f] %v3006
      %3014 = vst [vmem:[%s170 + $0x20] sm:$0x7f] %v3007
      %3015 = vst [vmem:[%s170 + $0x28] sm:$0x7f] %v3008
      %3016 = vst [vmem:[%s170 + $0x30] sm:$0x7f] %v3009
      %p3017 = scmp.lt.s32.totalorder %s14, 1
      %s3018 = scalar_select %p3017, %s14, 1
      %s3019 = smul.addr %s3018, 7
      %s3020 = smul.addr %s3019, 8
      %s3021 = scalar_lea.vmem %s3, %s3020
      // Predicated region
      $region33: #{tpu_custom_call.1} parent=31 // pred_check
        %p3022 = pneg %p100
      $region34: #{tpu_custom_call.1} parent=31 // pred_check_branch
        %3024 = sbr.rel (%p3022) target = $region36
      $region35: #{tpu_custom_call.1} parent=31 // pred_region
        _
      $region36: #{tpu_custom_call.1} parent=31 // pred_fallthru
        _
    $region32: #{tpu_custom_call.1} parent=5 // pred_fallthru
      _
    %p3025 = scmp.le.s32.totalorder 2, %s9
    // Predicated region
    $region37: #{tpu_custom_call.1} parent=5 // pred_check
      %p3026 = pneg %p3025
    $region38: #{tpu_custom_call.1} parent=5 // pred_check_branch
      %3028 = sbr.rel (%p3026) target = $region40
    $region39: #{tpu_custom_call.1} parent=5 // pred_region
      %s3029 = ssub.s32 %s9, 2
      // Predicated region
      $region41: #{tpu_custom_call.1} parent=39 // pred_check
        %p3030 = pneg %p106
      $region42: #{tpu_custom_call.1} parent=39 // pred_check_branch
        %3032 = sbr.rel (%p3030) target = $region44
      $region43: #{tpu_custom_call.1} parent=39 // pred_region
        %p3033 = scmp.lt.s32.totalorder %s15, 1
        %s3034 = scalar_select %p3033, %s15, 1
        %s3035 = smul.addr %s3034, 7
        %s3036 = smul.addr %s3035, 8
        %s3037 = scalar_lea.vmem %s3, %s3036
      $region44: #{tpu_custom_call.1} parent=39 // pred_fallthru
        _
    $region40: #{tpu_custom_call.1} parent=5 // pred_fallthru
      _
  $region6: #{tpu_custom_call.1} parent=0 // loop_footer
    %s13 = sadd.s32 1, %s9
  $region7: #{tpu_custom_call.1} parent=0 // loop_footer_branch
    %8 = sbr.rel target = $region3
  $region8: #{tpu_custom_call.1} parent=0 // loop_exit
    _

</llo_original>
